<compile_context>
chip_gen: v7x
topology: tpu7x:2x2x1
jax: 0.10.0
libtpu: 0.0.40
codegen_flags: <defaults>
</compile_context>

<pallas_src>
import functools
import math

import jax
import jax.numpy as jnp
from jax.experimental import pallas as pl
from jax.experimental.pallas import tpu as pltpu


# ----------------------------------------------------------------------------
# tiling helper: return a block size that is either the full dim (always legal)
# or a divisor of the dim that is a multiple of `align` (8 sublane / 128 lane).
# ----------------------------------------------------------------------------
def _pick_tile(dim, target, align):
    if dim <= target:
        return dim
    t = (target // align) * align
    while t >= align:
        if dim % t == 0:
            return t
        t -= align
    return dim


_VMEM_LIMIT = 32 * 1024 * 1024  # conservative across v5e/v6e/v7x


# ----------------------------------------------------------------------------
# Fused dense kernel:  o = [residual +] act( [LN](x) @ w + b )
#   - x, w in bf16 on the MXU (LN statistics computed in f32 when fused)
#   - f32 accumulator scratch, K-axis reduction with pl.when init/finalize
# ----------------------------------------------------------------------------
def _fused_dense_kernel(*refs, act, fuse_ln, fuse_res, has_bias, nk):
    acc_ref = refs[-1]
    o_ref = refs[-2]
    ins = list(refs[:-2])
    x_ref = ins.pop(0)
    g_ref = bln_ref = b_ref = r_ref = None
    if fuse_ln:
        g_ref = ins.pop(0)
        bln_ref = ins.pop(0)
    w_ref = ins.pop(0)
    if has_bias:
        b_ref = ins.pop(0)
    if fuse_res:
        r_ref = ins.pop(0)

    kidx = pl.program_id(2)

    @pl.when(kidx == 0)
    def _():
        acc_ref[...] = jnp.zeros_like(acc_ref)

    if fuse_ln:
        # LayerNorm in f32 (full feature dim is resident: nk == 1 in this mode)
        x = x_ref[...].astype(jnp.float32)
        mu = jnp.mean(x, axis=-1, keepdims=True)
        xc = x - mu
        var = jnp.mean(xc * xc, axis=-1, keepdims=True)
        xn = xc * jax.lax.rsqrt(var + 1e-5) * g_ref[...] + bln_ref[...]
        lhs = xn.astype(jnp.bfloat16)
    else:
        lhs = x_ref[...]

    acc_ref[...] += jnp.dot(lhs, w_ref[...], preferred_element_type=jnp.float32)

    @pl.when(kidx == nk - 1)
    def _():
        y = acc_ref[...]
        if has_bias:
            y = y + b_ref[...]
        if act == "relu":
            y = jnp.maximum(y, 0.0)
        elif act == "quick_gelu":            # CLIP QuickGELU: x * sigmoid(1.702 x)
            y = y * jax.nn.sigmoid(1.702 * y)
        if fuse_res:
            y = y + r_ref[...].astype(jnp.float32)
        o_ref[...] = y.astype(o_ref.dtype)


def fused_dense(x, w, b=None, *, gamma=None, beta=None, residual=None,
                act="none", out_dtype=jnp.bfloat16,
                tm_target=256, tn_target=512, tk_target=512):
    """o = [residual +] act([LN](x) @ w + b);  x:[M,K], w:[K,N] -> [M,N]."""
    M, K = x.shape
    Kw, N = w.shape
    assert K == Kw
    fuse_ln = gamma is not None
    has_bias = b is not None
    fuse_res = residual is not None

    tm = _pick_tile(M, tm_target, 8)
    tn = _pick_tile(N, tn_target, 128)
    tk = K if fuse_ln else _pick_tile(K, tk_target, 128)  # LN needs full rows
    nm, nn_, nk = M // tm, N // tn, K // tk

    operands = []
    in_specs = []
    x_in = x.astype(jnp.float32 if fuse_ln else jnp.bfloat16)
    operands.append(x_in)
    in_specs.append(pl.BlockSpec((tm, tk), lambda i, j, k: (i, k)))
    if fuse_ln:
        operands.append(gamma.reshape(1, K).astype(jnp.float32))
        in_specs.append(pl.BlockSpec((1, K), lambda i, j, k: (0, 0)))
        operands.append(beta.reshape(1, K).astype(jnp.float32))
        in_specs.append(pl.BlockSpec((1, K), lambda i, j, k: (0, 0)))
    operands.append(w.astype(jnp.bfloat16))
    in_specs.append(pl.BlockSpec((tk, tn), lambda i, j, k: (k, j)))
    if has_bias:
        operands.append(b.reshape(1, N).astype(jnp.float32))
        in_specs.append(pl.BlockSpec((1, tn), lambda i, j, k: (0, j)))
    if fuse_res:
        operands.append(residual)
        in_specs.append(pl.BlockSpec((tm, tn), lambda i, j, k: (i, j)))

    kernel = functools.partial(_fused_dense_kernel, act=act, fuse_ln=fuse_ln,
                               fuse_res=fuse_res, has_bias=has_bias, nk=nk)

    bytes_accessed = int(x_in.size * x_in.dtype.itemsize
                         + w.size * 2
                         + M * N * jnp.dtype(out_dtype).itemsize)
    return pl.pallas_call(
        kernel,
        grid=(nm, nn_, nk),
        out_shape=jax.ShapeDtypeStruct((M, N), out_dtype),
        in_specs=in_specs,
        out_specs=pl.BlockSpec((tm, tn), lambda i, j, k: (i, j)),
        scratch_shapes=[pltpu.VMEM((tm, tn), jnp.float32)],
        compiler_params=pltpu.CompilerParams(
            dimension_semantics=("parallel", "parallel", "arbitrary"),
            vmem_limit_bytes=_VMEM_LIMIT),
        cost_estimate=pl.CostEstimate(flops=2 * M * N * K, transcendentals=0,
                                      bytes_accessed=bytes_accessed),
    )(*operands)


# ----------------------------------------------------------------------------
# Standalone LayerNorm (only ln_pre needs it; every other LN is fused above)
# ----------------------------------------------------------------------------
def _layernorm_kernel(x_ref, g_ref, b_ref, o_ref):
    x = x_ref[...].astype(jnp.float32)
    mu = jnp.mean(x, axis=-1, keepdims=True)
    xc = x - mu
    var = jnp.mean(xc * xc, axis=-1, keepdims=True)
    o_ref[...] = (xc * jax.lax.rsqrt(var + 1e-5) * g_ref[...]
                  + b_ref[...]).astype(o_ref.dtype)


def layernorm(x, g, b, out_dtype=jnp.float32, tm_target=256):
    M, D = x.shape
    tm = _pick_tile(M, tm_target, 8)
    return pl.pallas_call(
        _layernorm_kernel,
        grid=(M // tm,),
        out_shape=jax.ShapeDtypeStruct((M, D), out_dtype),
        in_specs=[pl.BlockSpec((tm, D), lambda i: (i, 0)),
                  pl.BlockSpec((1, D), lambda i: (0, 0)),
                  pl.BlockSpec((1, D), lambda i: (0, 0))],
        out_specs=pl.BlockSpec((tm, D), lambda i: (i, 0)),
        compiler_params=pltpu.CompilerParams(
            dimension_semantics=("parallel",),
            vmem_limit_bytes=_VMEM_LIMIT),
    )(x.astype(jnp.float32), g.reshape(1, D).astype(jnp.float32),
      b.reshape(1, D).astype(jnp.float32))


# ----------------------------------------------------------------------------
# Attention: gridded over B*heads ("parallel"), bf16 matmuls, f32 softmax,
# approx-reciprocal for the denominator.
# ----------------------------------------------------------------------------
def _attention_kernel(q_ref, k_ref, v_ref, o_ref, *, scale):
    q = q_ref[...]                                               # [1, L, Dh] bf16
    k = k_ref[...]
    v = v_ref[...]
    s = jnp.einsum("bqd,bkd->bqk", q, k,
                   preferred_element_type=jnp.float32) * scale
    s = s - jnp.max(s, axis=-1, keepdims=True)
    p = jnp.exp(s)
    denom = jnp.sum(p, axis=-1, keepdims=True)
    p = p * pl.reciprocal(denom, approx=True)
    o = jnp.einsum("bqk,bkd->bqd", p.astype(v.dtype), v,
                   preferred_element_type=jnp.float32)
    o_ref[...] = o.astype(o_ref.dtype)


def attention(q, k, v, scale):
    """q/k/v: [B*H, L, Dh] bf16 -> [B*H, L, Dh] bf16, one head per grid step."""
    BH, L, Dh = q.shape
    spec = pl.BlockSpec((1, L, Dh), lambda i: (i, 0, 0))
    return pl.pallas_call(
        functools.partial(_attention_kernel, scale=scale),
        grid=(BH,),
        out_shape=jax.ShapeDtypeStruct((BH, L, Dh), jnp.bfloat16),
        in_specs=[spec, spec, spec],
        out_specs=spec,
        compiler_params=pltpu.CompilerParams(
            dimension_semantics=("parallel",),
            vmem_limit_bytes=_VMEM_LIMIT),
    )(q.astype(jnp.bfloat16), k.astype(jnp.bfloat16), v.astype(jnp.bfloat16))


# ----------------------------------------------------------------------------
# Plain-JAX glue (reshapes / parameter plumbing)
# ----------------------------------------------------------------------------
def patchify_nchw(x, patch):
    """NCHW image -> [B*n_patches, C*patch*patch] (conv-as-matmul layout)."""
    B, C, H, W = x.shape
    gh, gw = H // patch, W // patch
    x = x.reshape(B, C, gh, patch, gw, patch)
    x = x.transpose(0, 2, 4, 1, 3, 5)          # B, gh, gw, C, p, p
    return x.reshape(B * gh * gw, C * patch * patch)


def residual_attention_block(h, blk, heads):
    B, L, D = h.shape
    Dh = D // heads
    scale = 1.0 / math.sqrt(Dh)
    h2 = h.reshape(B * L, D)                                     # f32 residual stream

    # --- x = x + attn(ln_1(x))  (LN fused into in_proj, residual fused into out_proj)
    qkv = fused_dense(h2, blk["in_proj_w"], blk["in_proj_b"],
                      gamma=blk["ln1_g"], beta=blk["ln1_b"],
                      out_dtype=jnp.bfloat16)                    # [B*L, 3D] bf16
    qkv = qkv.reshape(B, L, 3, heads, Dh).transpose(2, 0, 3, 1, 4)
    qkv = qkv.reshape(3, B * heads, L, Dh)
    ao = attention(qkv[0], qkv[1], qkv[2], scale)                # [B*H, L, Dh]
    ao = ao.reshape(B, heads, L, Dh).transpose(0, 2, 1, 3).reshape(B * L, D)
    h2 = fused_dense(ao, blk["out_proj_w"], blk["out_proj_b"],
                     residual=h2, out_dtype=jnp.float32)         # [B*L, D] f32

    # --- x = x + mlp(ln_2(x))  (LN+QuickGELU fused into w1, residual fused into w2)
    m = fused_dense(h2, blk["mlp_w1"], blk["mlp_b1"],
                    gamma=blk["ln2_g"], beta=blk["ln2_b"],
                    act="quick_gelu", out_dtype=jnp.bfloat16)    # [B*L, 4D] bf16
    h2 = fused_dense(m, blk["mlp_w2"], blk["mlp_b2"],
                     residual=h2, out_dtype=jnp.float32)
    return h2.reshape(B, L, D)


def clip_img_encoder_forward(x, params, cfg):
    """x: NCHW float image. Returns [B, hidden_size] float32."""
    B, C, H, W = x.shape
    p, width, heads = cfg["patch"], cfg["width"], cfg["heads"]
    gh, gw = H // p, W // p
    n_patch = gh * gw
    L = n_patch + 1

    # Patch-embedding conv (stride=patch, no bias) as a tiled bf16 Pallas matmul.
    xp = patchify_nchw(x, p)                                     # [B*P, C*p*p]
    emb = fused_dense(xp, params["conv_w"], out_dtype=jnp.float32)
    emb = emb.reshape(B, n_patch, width)

    cls = jnp.broadcast_to(params["class_emb"].reshape(1, 1, width),
                           (B, 1, width))
    tok = jnp.concatenate([cls, emb], axis=1)                    # [B, L, width]
    tok = tok + params["pos_emb"].reshape(1, L, width)

    h = layernorm(tok.reshape(B * L, width),
                  params["ln_pre_g"], params["ln_pre_b"]).reshape(B, L, width)

    for blk in params["blocks"]:
        h = residual_attention_block(h, blk, heads)

    cls_out = h[:, 0, :]                                         # [B, width] f32
    # ln_post fused with the CLIP projection (no bias); f32 output == .float()
    feat = fused_dense(cls_out, params["proj"], None,
                       gamma=params["ln_post_g"], beta=params["ln_post_b"],
                       out_dtype=jnp.float32)                    # [B, 512]

    # fc = Linear(512, hidden_size) + ReLU (bias + ReLU fused in-kernel)
    out = fused_dense(feat, params["fc_w"], params["fc_b"], act="relu",
                      out_dtype=jnp.float32)
    return out


# ----------------------------------------------------------------------------
# Deterministic synthetic parameter initialization
# ----------------------------------------------------------------------------
def init_params(key, cfg):
    C, p, width = cfg["in_ch"], cfg["patch"], cfg["width"]
    layers, embed_dim, hidden = cfg["layers"], cfg["embed_dim"], cfg["hidden"]
    L = cfg["seq_len"]

    ks = iter(jax.random.split(key, 16 + 12 * layers))
    nrm = lambda k, shp, s=0.02: (s * jax.random.normal(k, shp)).astype(jnp.float32)
    nrmw = lambda k, shp, s=0.02: (s * jax.random.normal(k, shp)).astype(jnp.bfloat16)

    params = {
        "conv_w": nrmw(next(ks), (C * p * p, width)),
        "class_emb": nrm(next(ks), (width,)),
        "pos_emb": nrm(next(ks), (L, width)),
        "ln_pre_g": jnp.ones((width,), jnp.float32),
        "ln_pre_b": jnp.zeros((width,), jnp.float32),
        "ln_post_g": jnp.ones((width,), jnp.float32),
        "ln_post_b": jnp.zeros((width,), jnp.float32),
        "proj": nrmw(next(ks), (width, embed_dim)),
        "fc_w": nrmw(next(ks), (embed_dim, hidden)),
        "fc_b": jnp.zeros((hidden,), jnp.float32),
        "blocks": [],
    }
    for _ in range(layers):
        blk = {
            "ln1_g": jnp.ones((width,), jnp.float32),
            "ln1_b": jnp.zeros((width,), jnp.float32),
            "in_proj_w": nrmw(next(ks), (width, 3 * width)),
            "in_proj_b": jnp.zeros((3 * width,), jnp.float32),
            "out_proj_w": nrmw(next(ks), (width, width)),
            "out_proj_b": jnp.zeros((width,), jnp.float32),
            "ln2_g": jnp.ones((width,), jnp.float32),
            "ln2_b": jnp.zeros((width,), jnp.float32),
            "mlp_w1": nrmw(next(ks), (width, 4 * width)),
            "mlp_b1": jnp.zeros((4 * width,), jnp.float32),
            "mlp_w2": nrmw(next(ks), (4 * width, width)),
            "mlp_b2": jnp.zeros((width,), jnp.float32),
        }
        params["blocks"].append(blk)
    return params


# ----------------------------------------------------------------------------
if __name__ == "__main__":
    # Small synthetic CLIP-ViT config (lane-dense width=128; embed_dim kept at
    # 512 because the module hard-codes nn.Linear(512, hidden_size)).
    B, C, H, W = 2, 3, 32, 32
    cfg = dict(
        in_ch=C, patch=8, width=128, heads=4, layers=2,
        embed_dim=512, hidden=128,
        seq_len=(H // 8) * (W // 8) + 1,
    )
    # TODO(synk): pretrained weights from clip.load() cannot be reproduced here;
    # parameters are deterministic synthetic initializations.

    key = jax.random.PRNGKey(0)
    k_x, k_p = jax.random.split(key)
    x = jax.random.normal(k_x, (B, C, H, W), dtype=jnp.float32)  # NCHW like PyTorch
    params = init_params(k_p, cfg)

    fwd = jax.jit(functools.partial(clip_img_encoder_forward, cfg=cfg))
    out = fwd(x, params)
    out = jax.block_until_ready(out)
    assert out.shape == (B, cfg["hidden"]), out.shape
    assert out.dtype == jnp.float32
    print("KERNEL_OK")
</pallas_src>

<mosaic_0001>
module attributes {stable_mosaic.version = 11 : i64} {
  func.func @_fused_dense_kernel(%arg0: i32, %arg1: i32, %arg2: i32, %arg3: memref<32x192xbf16, #tpu.memory_space<vmem>>, %arg4: memref<192x128xbf16, #tpu.memory_space<vmem>>, %arg5: memref<32x128xf32, #tpu.memory_space<vmem>>, %arg6: memref<32x128xf32, #tpu.memory_space<vmem>>) attributes {dimension_semantics = [#tpu.dimension_semantics<parallel>, #tpu.dimension_semantics<parallel>, #tpu.dimension_semantics<arbitrary>], iteration_bounds = array<i64: 1, 1, 1>, scalar_prefetch = 0 : i64, scratch_operands = 1 : i64, tpu.core_type = #tpu.core_type<tc>, window_params = [{transform_indices = @transform_0, window_bounds = array<i64: 32, 192>}, {transform_indices = @transform_1, window_bounds = array<i64: 192, 128>}, {transform_indices = @transform_2, window_bounds = array<i64: 32, 128>}]} {
    %c0_i32 = arith.constant 0 : i32
    %0 = arith.cmpi eq, %arg2, %c0_i32 : i32
    %1 = arith.extui %0 : i1 to i32
    %c0_i32_0 = arith.constant 0 : i32
    %2 = arith.cmpi ne, %1, %c0_i32_0 : i32
    scf.if %2 {
      %cst_10 = arith.constant 0.000000e+00 : f32
      %12 = vector.broadcast %cst_10 : f32 to vector<32x128xf32>
      %c0_11 = arith.constant 0 : index
      %c0_12 = arith.constant 0 : index
      %13 = vector.load %arg6[%c0_11, %c0_12] : memref<32x128xf32, #tpu.memory_space<vmem>>, vector<32x128xf32>
      tpu.vector_store %arg6[%c0_11, %c0_12], %12 {strides = array<i32>} : memref<32x128xf32, #tpu.memory_space<vmem>>, vector<32x128xf32>,
    } else {
    }
    %c0 = arith.constant 0 : index
    %c0_1 = arith.constant 0 : index
    %3 = vector.load %arg3[%c0, %c0_1] : memref<32x192xbf16, #tpu.memory_space<vmem>>, vector<32x192xbf16>
    %c0_2 = arith.constant 0 : index
    %c0_3 = arith.constant 0 : index
    %4 = vector.load %arg6[%c0_2, %c0_3] : memref<32x128xf32, #tpu.memory_space<vmem>>, vector<32x128xf32>
    %c0_4 = arith.constant 0 : index
    %c0_5 = arith.constant 0 : index
    %5 = vector.load %arg4[%c0_4, %c0_5] : memref<192x128xbf16, #tpu.memory_space<vmem>>, vector<192x128xbf16>
    %cst = arith.constant dense<0.000000e+00> : vector<32x128xf32>
    %6 = tpu.matmul %3, %5, %cst {dimension_numbers = #tpu.dot_dimension_numbers<[1], [0], [0], [1], [0, 0, 1, 1], [], []>} : vector<32x192xbf16>, vector<192x128xbf16>, vector<32x128xf32> -> vector<32x128xf32>
    %7 = arith.addf %4, %6 : vector<32x128xf32>
    %c0_6 = arith.constant 0 : index
    %c0_7 = arith.constant 0 : index
    %8 = vector.load %arg6[%c0_6, %c0_7] : memref<32x128xf32, #tpu.memory_space<vmem>>, vector<32x128xf32>
    tpu.vector_store %arg6[%c0_6, %c0_7], %7 {strides = array<i32>} : memref<32x128xf32, #tpu.memory_space<vmem>>, vector<32x128xf32>,
    %c0_i32_8 = arith.constant 0 : i32
    %9 = arith.cmpi eq, %arg2, %c0_i32_8 : i32
    %10 = arith.extui %9 : i1 to i32
    %c0_i32_9 = arith.constant 0 : i32
    %11 = arith.cmpi ne, %10, %c0_i32_9 : i32
    scf.if %11 {
      %c0_10 = arith.constant 0 : index
      %c0_11 = arith.constant 0 : index
      %12 = vector.load %arg6[%c0_10, %c0_11] : memref<32x128xf32, #tpu.memory_space<vmem>>, vector<32x128xf32>
      %c0_12 = arith.constant 0 : index
      %c0_13 = arith.constant 0 : index
      %13 = vector.load %arg5[%c0_12, %c0_13] : memref<32x128xf32, #tpu.memory_space<vmem>>, vector<32x128xf32>
      tpu.vector_store %arg5[%c0_12, %c0_13], %12 {strides = array<i32>} : memref<32x128xf32, #tpu.memory_space<vmem>>, vector<32x128xf32>,
    } else {
    }
    return
  }
  func.func @transform_0(%arg0: i32, %arg1: i32, %arg2: i32) -> (i32, i32) {
    %c0_i32 = arith.constant 0 : i32
    return %arg0, %arg2 : i32, i32
  }
  func.func @transform_1(%arg0: i32, %arg1: i32, %arg2: i32) -> (i32, i32) {
    %c0_i32 = arith.constant 0 : i32
    return %arg2, %arg1 : i32, i32
  }
  func.func @transform_2(%arg0: i32, %arg1: i32, %arg2: i32) -> (i32, i32) {
    %c0_i32 = arith.constant 0 : i32
    return %arg0, %arg1 : i32, i32
  }
}

module attributes {stable_mosaic.version = 11 : i64} {
  func.func @_fused_dense_kernel(%arg0: i32, %arg1: i32, %arg2: i32, %arg3: memref<34x128xf32, #tpu.memory_space<vmem>>, %arg4: memref<1x128xf32, #tpu.memory_space<vmem>>, %arg5: memref<1x128xf32, #tpu.memory_space<vmem>>, %arg6: memref<128x384xbf16, #tpu.memory_space<vmem>>, %arg7: memref<1x384xf32, #tpu.memory_space<vmem>>, %arg8: memref<34x384xbf16, #tpu.memory_space<vmem>>, %arg9: memref<34x384xf32, #tpu.memory_space<vmem>>) attributes {dimension_semantics = [#tpu.dimension_semantics<parallel>, #tpu.dimension_semantics<parallel>, #tpu.dimension_semantics<arbitrary>], iteration_bounds = array<i64: 1, 1, 1>, scalar_prefetch = 0 : i64, scratch_operands = 1 : i64, tpu.core_type = #tpu.core_type<tc>, window_params = [{transform_indices = @transform_0, window_bounds = array<i64: 34, 128>}, {pipeline_mode = #tpu.pipeline_mode<synchronous>, transform_indices = @transform_1, window_bounds = array<i64: 1, 128>}, {pipeline_mode = #tpu.pipeline_mode<synchronous>, transform_indices = @transform_2, window_bounds = array<i64: 1, 128>}, {transform_indices = @transform_3, window_bounds = array<i64: 128, 384>}, {transform_indices = @transform_4, window_bounds = array<i64: 1, 384>}, {transform_indices = @transform_5, window_bounds = array<i64: 34, 384>}]} {
    %c0_i32 = arith.constant 0 : i32
    %0 = arith.cmpi eq, %arg2, %c0_i32 : i32
    %1 = arith.extui %0 : i1 to i32
    %c0_i32_0 = arith.constant 0 : i32
    %2 = arith.cmpi ne, %1, %c0_i32_0 : i32
    scf.if %2 {
      %cst_19 = arith.constant 0.000000e+00 : f32
      %35 = vector.broadcast %cst_19 : f32 to vector<34x384xf32>
      %c0_20 = arith.constant 0 : index
      %c0_21 = arith.constant 0 : index
      %36 = vector.load %arg9[%c0_20, %c0_21] : memref<34x384xf32, #tpu.memory_space<vmem>>, vector<34x384xf32>
      tpu.vector_store %arg9[%c0_20, %c0_21], %35 {strides = array<i32>} : memref<34x384xf32, #tpu.memory_space<vmem>>, vector<34x384xf32>,
    } else {
    }
    %c0 = arith.constant 0 : index
    %c0_1 = arith.constant 0 : index
    %3 = vector.load %arg3[%c0, %c0_1] : memref<34x128xf32, #tpu.memory_space<vmem>>, vector<34x128xf32>
    %cst = arith.constant dense<0.000000e+00> : vector<34xf32>
    %4 = vector.multi_reduction <add>, %3, %cst [1] : vector<34x128xf32> to vector<34xf32>
    %5 = vector.shape_cast %4 : vector<34xf32> to vector<34x1xf32>
    %cst_2 = arith.constant 1.280000e+02 : f32
    %6 = vector.broadcast %cst_2 : f32 to vector<34x1xf32>
    %7 = arith.divf %5, %6 : vector<34x1xf32>
    %8 = vector.broadcast %7 : vector<34x1xf32> to vector<34x128xf32>
    %9 = arith.subf %3, %8 : vector<34x128xf32>
    %10 = arith.mulf %9, %9 : vector<34x128xf32>
    %cst_3 = arith.constant dense<0.000000e+00> : vector<34xf32>
    %11 = vector.multi_reduction <add>, %10, %cst_3 [1] : vector<34x128xf32> to vector<34xf32>
    %12 = vector.shape_cast %11 : vector<34xf32> to vector<34x1xf32>
    %cst_4 = arith.constant 1.280000e+02 : f32
    %13 = vector.broadcast %cst_4 : f32 to vector<34x1xf32>
    %14 = arith.divf %12, %13 : vector<34x1xf32>
    %cst_5 = arith.constant 9.99999974E-6 : f32
    %15 = vector.broadcast %cst_5 : f32 to vector<34x1xf32>
    %16 = arith.addf %14, %15 : vector<34x1xf32>
    %17 = math.rsqrt %16 : vector<34x1xf32>
    %18 = vector.broadcast %17 : vector<34x1xf32> to vector<34x128xf32>
    %19 = arith.mulf %9, %18 : vector<34x128xf32>
    %c0_6 = arith.constant 0 : index
    %c0_7 = arith.constant 0 : index
    %20 = vector.load %arg4[%c0_6, %c0_7] : memref<1x128xf32, #tpu.memory_space<vmem>>, vector<1x128xf32>
    %21 = vector.broadcast %20 : vector<1x128xf32> to vector<34x128xf32>
    %22 = arith.mulf %19, %21 : vector<34x128xf32>
    %c0_8 = arith.constant 0 : index
    %c0_9 = arith.constant 0 : index
    %23 = vector.load %arg5[%c0_8, %c0_9] : memref<1x128xf32, #tpu.memory_space<vmem>>, vector<1x128xf32>
    %24 = vector.broadcast %23 : vector<1x128xf32> to vector<34x128xf32>
    %25 = arith.addf %22, %24 : vector<34x128xf32>
    %26 = arith.truncf %25 : vector<34x128xf32> to vector<34x128xbf16>
    %c0_10 = arith.constant 0 : index
    %c0_11 = arith.constant 0 : index
    %27 = vector.load %arg9[%c0_10, %c0_11] : memref<34x384xf32, #tpu.memory_space<vmem>>, vector<34x384xf32>
    %c0_12 = arith.constant 0 : index
    %c0_13 = arith.constant 0 : index
    %28 = vector.load %arg6[%c0_12, %c0_13] : memref<128x384xbf16, #tpu.memory_space<vmem>>, vector<128x384xbf16>
    %cst_14 = arith.constant dense<0.000000e+00> : vector<34x384xf32>
    %29 = tpu.matmul %26, %28, %cst_14 {dimension_numbers = #tpu.dot_dimension_numbers<[1], [0], [0], [1], [0, 0, 1, 1], [], []>} : vector<34x128xbf16>, vector<128x384xbf16>, vector<34x384xf32> -> vector<34x384xf32>
    %30 = arith.addf %27, %29 : vector<34x384xf32>
    %c0_15 = arith.constant 0 : index
    %c0_16 = arith.constant 0 : index
    %31 = vector.load %arg9[%c0_15, %c0_16] : memref<34x384xf32, #tpu.memory_space<vmem>>, vector<34x384xf32>
    tpu.vector_store %arg9[%c0_15, %c0_16], %30 {strides = array<i32>} : memref<34x384xf32, #tpu.memory_space<vmem>>, vector<34x384xf32>,
    %c0_i32_17 = arith.constant 0 : i32
    %32 = arith.cmpi eq, %arg2, %c0_i32_17 : i32
    %33 = arith.extui %32 : i1 to i32
    %c0_i32_18 = arith.constant 0 : i32
    %34 = arith.cmpi ne, %33, %c0_i32_18 : i32
    scf.if %34 {
      %c0_19 = arith.constant 0 : index
      %c0_20 = arith.constant 0 : index
      %35 = vector.load %arg9[%c0_19, %c0_20] : memref<34x384xf32, #tpu.memory_space<vmem>>, vector<34x384xf32>
      %c0_21 = arith.constant 0 : index
      %c0_22 = arith.constant 0 : index
      %36 = vector.load %arg7[%c0_21, %c0_22] : memref<1x384xf32, #tpu.memory_space<vmem>>, vector<1x384xf32>
      %37 = vector.broadcast %36 : vector<1x384xf32> to vector<34x384xf32>
      %38 = arith.addf %35, %37 : vector<34x384xf32>
      %39 = arith.truncf %38 : vector<34x384xf32> to vector<34x384xbf16>
      %c0_23 = arith.constant 0 : index
      %c0_24 = arith.constant 0 : index
      %40 = vector.load %arg8[%c0_23, %c0_24] : memref<34x384xbf16, #tpu.memory_space<vmem>>, vector<34x384xbf16>
      tpu.vector_store %arg8[%c0_23, %c0_24], %39 {strides = array<i32>} : memref<34x384xbf16, #tpu.memory_space<vmem>>, vector<34x384xbf16>,
    } else {
    }
    return
  }
  func.func @transform_0(%arg0: i32, %arg1: i32, %arg2: i32) -> (i32, i32) {
    %c0_i32 = arith.constant 0 : i32
    return %arg0, %arg2 : i32, i32
  }
  func.func @transform_1(%arg0: i32, %arg1: i32, %arg2: i32) -> (i32, i32) {
    %c0_i32 = arith.constant 0 : i32
    %c0_i32_0 = arith.constant 0 : i32
    %c0_i32_1 = arith.constant 0 : i32
    return %c0_i32, %c0_i32_0 : i32, i32
  }
  func.func @transform_2(%arg0: i32, %arg1: i32, %arg2: i32) -> (i32, i32) {
    %c0_i32 = arith.constant 0 : i32
    %c0_i32_0 = arith.constant 0 : i32
    %c0_i32_1 = arith.constant 0 : i32
    return %c0_i32, %c0_i32_0 : i32, i32
  }
  func.func @transform_3(%arg0: i32, %arg1: i32, %arg2: i32) -> (i32, i32) {
    %c0_i32 = arith.constant 0 : i32
    return %arg2, %arg1 : i32, i32
  }
  func.func @transform_4(%arg0: i32, %arg1: i32, %arg2: i32) -> (i32, i32) {
    %c0_i32 = arith.constant 0 : i32
    %c0_i32_0 = arith.constant 0 : i32
    return %c0_i32, %arg1 : i32, i32
  }
  func.func @transform_5(%arg0: i32, %arg1: i32, %arg2: i32) -> (i32, i32) {
    %c0_i32 = arith.constant 0 : i32
    return %arg0, %arg1 : i32, i32
  }
}

module attributes {stable_mosaic.version = 11 : i64} {
  func.func @_layernorm_kernel(%arg0: i32, %arg1: memref<34x128xf32, #tpu.memory_space<vmem>>, %arg2: memref<1x128xf32, #tpu.memory_space<vmem>>, %arg3: memref<1x128xf32, #tpu.memory_space<vmem>>, %arg4: memref<34x128xf32, #tpu.memory_space<vmem>>) attributes {dimension_semantics = [#tpu.dimension_semantics<parallel>], iteration_bounds = array<i64: 1>, scalar_prefetch = 0 : i64, scratch_operands = 0 : i64, tpu.core_type = #tpu.core_type<tc>, window_params = [{transform_indices = @transform_0, window_bounds = array<i64: 34, 128>}, {pipeline_mode = #tpu.pipeline_mode<synchronous>, transform_indices = @transform_1, window_bounds = array<i64: 1, 128>}, {pipeline_mode = #tpu.pipeline_mode<synchronous>, transform_indices = @transform_2, window_bounds = array<i64: 1, 128>}, {transform_indices = @transform_3, window_bounds = array<i64: 34, 128>}]} {
    %c0 = arith.constant 0 : index
    %c0_0 = arith.constant 0 : index
    %0 = vector.load %arg1[%c0, %c0_0] : memref<34x128xf32, #tpu.memory_space<vmem>>, vector<34x128xf32>
    %cst = arith.constant dense<0.000000e+00> : vector<34xf32>
    %1 = vector.multi_reduction <add>, %0, %cst [1] : vector<34x128xf32> to vector<34xf32>
    %2 = vector.shape_cast %1 : vector<34xf32> to vector<34x1xf32>
    %cst_1 = arith.constant 1.280000e+02 : f32
    %3 = vector.broadcast %cst_1 : f32 to vector<34x1xf32>
    %4 = arith.divf %2, %3 : vector<34x1xf32>
    %5 = vector.broadcast %4 : vector<34x1xf32> to vector<34x128xf32>
    %6 = arith.subf %0, %5 : vector<34x128xf32>
    %7 = arith.mulf %6, %6 : vector<34x128xf32>
    %cst_2 = arith.constant dense<0.000000e+00> : vector<34xf32>
    %8 = vector.multi_reduction <add>, %7, %cst_2 [1] : vector<34x128xf32> to vector<34xf32>
    %9 = vector.shape_cast %8 : vector<34xf32> to vector<34x1xf32>
    %cst_3 = arith.constant 1.280000e+02 : f32
    %10 = vector.broadcast %cst_3 : f32 to vector<34x1xf32>
    %11 = arith.divf %9, %10 : vector<34x1xf32>
    %cst_4 = arith.constant 9.99999974E-6 : f32
    %12 = vector.broadcast %cst_4 : f32 to vector<34x1xf32>
    %13 = arith.addf %11, %12 : vector<34x1xf32>
    %14 = math.rsqrt %13 : vector<34x1xf32>
    %15 = vector.broadcast %14 : vector<34x1xf32> to vector<34x128xf32>
    %16 = arith.mulf %6, %15 : vector<34x128xf32>
    %c0_5 = arith.constant 0 : index
    %c0_6 = arith.constant 0 : index
    %17 = vector.load %arg2[%c0_5, %c0_6] : memref<1x128xf32, #tpu.memory_space<vmem>>, vector<1x128xf32>
    %18 = vector.broadcast %17 : vector<1x128xf32> to vector<34x128xf32>
    %19 = arith.mulf %16, %18 : vector<34x128xf32>
    %c0_7 = arith.constant 0 : index
    %c0_8 = arith.constant 0 : index
    %20 = vector.load %arg3[%c0_7, %c0_8] : memref<1x128xf32, #tpu.memory_space<vmem>>, vector<1x128xf32>
    %21 = vector.broadcast %20 : vector<1x128xf32> to vector<34x128xf32>
    %22 = arith.addf %19, %21 : vector<34x128xf32>
    %c0_9 = arith.constant 0 : index
    %c0_10 = arith.constant 0 : index
    %23 = vector.load %arg4[%c0_9, %c0_10] : memref<34x128xf32, #tpu.memory_space<vmem>>, vector<34x128xf32>
    tpu.vector_store %arg4[%c0_9, %c0_10], %22 {strides = array<i32>} : memref<34x128xf32, #tpu.memory_space<vmem>>, vector<34x128xf32>,
    return
  }
  func.func @transform_0(%arg0: i32) -> (i32, i32) {
    %c0_i32 = arith.constant 0 : i32
    %c0_i32_0 = arith.constant 0 : i32
    return %arg0, %c0_i32 : i32, i32
  }
  func.func @transform_1(%arg0: i32) -> (i32, i32) {
    %c0_i32 = arith.constant 0 : i32
    %c0_i32_0 = arith.constant 0 : i32
    %c0_i32_1 = arith.constant 0 : i32
    return %c0_i32, %c0_i32_0 : i32, i32
  }
  func.func @transform_2(%arg0: i32) -> (i32, i32) {
    %c0_i32 = arith.constant 0 : i32
    %c0_i32_0 = arith.constant 0 : i32
    %c0_i32_1 = arith.constant 0 : i32
    return %c0_i32, %c0_i32_0 : i32, i32
  }
  func.func @transform_3(%arg0: i32) -> (i32, i32) {
    %c0_i32 = arith.constant 0 : i32
    %c0_i32_0 = arith.constant 0 : i32
    return %arg0, %c0_i32 : i32, i32
  }
}

module attributes {stable_mosaic.version = 11 : i64} {
  func.func @_attention_kernel(%arg0: i32, %arg1: memref<1x17x32xbf16, #tpu.memory_space<vmem>>, %arg2: memref<1x17x32xbf16, #tpu.memory_space<vmem>>, %arg3: memref<1x17x32xbf16, #tpu.memory_space<vmem>>, %arg4: memref<1x17x32xbf16, #tpu.memory_space<vmem>>) attributes {dimension_semantics = [#tpu.dimension_semantics<parallel>], iteration_bounds = array<i64: 8>, scalar_prefetch = 0 : i64, scratch_operands = 0 : i64, tpu.core_type = #tpu.core_type<tc>, window_params = [{transform_indices = @transform_0, window_bounds = array<i64: 1, 17, 32>}, {transform_indices = @transform_1, window_bounds = array<i64: 1, 17, 32>}, {transform_indices = @transform_2, window_bounds = array<i64: 1, 17, 32>}, {transform_indices = @transform_3, window_bounds = array<i64: 1, 17, 32>}]} {
    %c0 = arith.constant 0 : index
    %c0_0 = arith.constant 0 : index
    %c0_1 = arith.constant 0 : index
    %0 = vector.load %arg1[%c0, %c0_0, %c0_1] : memref<1x17x32xbf16, #tpu.memory_space<vmem>>, vector<1x17x32xbf16>
    %c0_2 = arith.constant 0 : index
    %c0_3 = arith.constant 0 : index
    %c0_4 = arith.constant 0 : index
    %1 = vector.load %arg2[%c0_2, %c0_3, %c0_4] : memref<1x17x32xbf16, #tpu.memory_space<vmem>>, vector<1x17x32xbf16>
    %c0_5 = arith.constant 0 : index
    %c0_6 = arith.constant 0 : index
    %c0_7 = arith.constant 0 : index
    %2 = vector.load %arg3[%c0_5, %c0_6, %c0_7] : memref<1x17x32xbf16, #tpu.memory_space<vmem>>, vector<1x17x32xbf16>
    "tpu.trace_start"() <{level = 10 : i32, message = "bqd,bkd->bqk"}> : () -> ()
    %cst = arith.constant dense<0.000000e+00> : vector<1x17x17xf32>
    %3 = tpu.matmul %0, %1, %cst {dimension_numbers = #tpu.dot_dimension_numbers<[2], [2], [1], [1], [0, 0, 0, 1, 1, 1], [0], [0]>} : vector<1x17x32xbf16>, vector<1x17x32xbf16>, vector<1x17x17xf32> -> vector<1x17x17xf32>
    "tpu.trace_stop"() : () -> ()
    %cst_8 = arith.constant 0.176776692 : f32
    %4 = vector.broadcast %cst_8 : f32 to vector<1x17x17xf32>
    %5 = arith.mulf %3, %4 : vector<1x17x17xf32>
    %cst_9 = arith.constant dense<0xFF800000> : vector<1x17xf32>
    %6 = vector.multi_reduction <maximumf>, %5, %cst_9 [2] : vector<1x17x17xf32> to vector<1x17xf32>
    %7 = vector.shape_cast %6 : vector<1x17xf32> to vector<1x17x1xf32>
    %8 = vector.broadcast %7 : vector<1x17x1xf32> to vector<1x17x17xf32>
    %9 = arith.subf %5, %8 : vector<1x17x17xf32>
    %10 = math.exp %9 : vector<1x17x17xf32>
    %cst_10 = arith.constant dense<0.000000e+00> : vector<1x17xf32>
    %11 = vector.multi_reduction <add>, %10, %cst_10 [2] : vector<1x17x17xf32> to vector<1x17xf32>
    %12 = vector.shape_cast %11 : vector<1x17xf32> to vector<1x17x1xf32>
    %13 = tpu.reciprocal %12 {approx = true} : vector<1x17x1xf32> -> vector<1x17x1xf32>
    %14 = vector.broadcast %13 : vector<1x17x1xf32> to vector<1x17x17xf32>
    %15 = arith.mulf %10, %14 : vector<1x17x17xf32>
    %16 = arith.truncf %15 : vector<1x17x17xf32> to vector<1x17x17xbf16>
    "tpu.trace_start"() <{level = 10 : i32, message = "bqk,bkd->bqd"}> : () -> ()
    %cst_11 = arith.constant dense<0.000000e+00> : vector<1x17x32xf32>
    %17 = tpu.matmul %16, %2, %cst_11 {dimension_numbers = #tpu.dot_dimension_numbers<[2], [1], [1], [2], [0, 0, 0, 1, 1, 2], [0], [0]>} : vector<1x17x17xbf16>, vector<1x17x32xbf16>, vector<1x17x32xf32> -> vector<1x17x32xf32>
    "tpu.trace_stop"() : () -> ()
    %18 = arith.truncf %17 : vector<1x17x32xf32> to vector<1x17x32xbf16>
    %c0_12 = arith.constant 0 : index
    %c0_13 = arith.constant 0 : index
    %c0_14 = arith.constant 0 : index
    %19 = vector.load %arg4[%c0_12, %c0_13, %c0_14] : memref<1x17x32xbf16, #tpu.memory_space<vmem>>, vector<1x17x32xbf16>
    tpu.vector_store %arg4[%c0_12, %c0_13, %c0_14], %18 {strides = array<i32>} : memref<1x17x32xbf16, #tpu.memory_space<vmem>>, vector<1x17x32xbf16>,
    return
  }
  func.func @transform_0(%arg0: i32) -> (i32, i32, i32) {
    %c0_i32 = arith.constant 0 : i32
    %c0_i32_0 = arith.constant 0 : i32
    %c0_i32_1 = arith.constant 0 : i32
    return %arg0, %c0_i32, %c0_i32_0 : i32, i32, i32
  }
  func.func @transform_1(%arg0: i32) -> (i32, i32, i32) {
    %c0_i32 = arith.constant 0 : i32
    %c0_i32_0 = arith.constant 0 : i32
    %c0_i32_1 = arith.constant 0 : i32
    return %arg0, %c0_i32, %c0_i32_0 : i32, i32, i32
  }
  func.func @transform_2(%arg0: i32) -> (i32, i32, i32) {
    %c0_i32 = arith.constant 0 : i32
    %c0_i32_0 = arith.constant 0 : i32
    %c0_i32_1 = arith.constant 0 : i32
    return %arg0, %c0_i32, %c0_i32_0 : i32, i32, i32
  }
  func.func @transform_3(%arg0: i32) -> (i32, i32, i32) {
    %c0_i32 = arith.constant 0 : i32
    %c0_i32_0 = arith.constant 0 : i32
    %c0_i32_1 = arith.constant 0 : i32
    return %arg0, %c0_i32, %c0_i32_0 : i32, i32, i32
  }
}

module attributes {stable_mosaic.version = 11 : i64} {
  func.func @_fused_dense_kernel(%arg0: i32, %arg1: i32, %arg2: i32, %arg3: memref<34x128xbf16, #tpu.memory_space<vmem>>, %arg4: memref<128x128xbf16, #tpu.memory_space<vmem>>, %arg5: memref<1x128xf32, #tpu.memory_space<vmem>>, %arg6: memref<34x128xf32, #tpu.memory_space<vmem>>, %arg7: memref<34x128xf32, #tpu.memory_space<vmem>>, %arg8: memref<34x128xf32, #tpu.memory_space<vmem>>) attributes {dimension_semantics = [#tpu.dimension_semantics<parallel>, #tpu.dimension_semantics<parallel>, #tpu.dimension_semantics<arbitrary>], iteration_bounds = array<i64: 1, 1, 1>, scalar_prefetch = 0 : i64, scratch_operands = 1 : i64, tpu.core_type = #tpu.core_type<tc>, window_params = [{transform_indices = @transform_0, window_bounds = array<i64: 34, 128>}, {transform_indices = @transform_1, window_bounds = array<i64: 128, 128>}, {transform_indices = @transform_2, window_bounds = array<i64: 1, 128>}, {transform_indices = @transform_3, window_bounds = array<i64: 34, 128>}, {transform_indices = @transform_4, window_bounds = array<i64: 34, 128>}]} {
    %c0_i32 = arith.constant 0 : i32
    %0 = arith.cmpi eq, %arg2, %c0_i32 : i32
    %1 = arith.extui %0 : i1 to i32
    %c0_i32_0 = arith.constant 0 : i32
    %2 = arith.cmpi ne, %1, %c0_i32_0 : i32
    scf.if %2 {
      %cst_10 = arith.constant 0.000000e+00 : f32
      %12 = vector.broadcast %cst_10 : f32 to vector<34x128xf32>
      %c0_11 = arith.constant 0 : index
      %c0_12 = arith.constant 0 : index
      %13 = vector.load %arg8[%c0_11, %c0_12] : memref<34x128xf32, #tpu.memory_space<vmem>>, vector<34x128xf32>
      tpu.vector_store %arg8[%c0_11, %c0_12], %12 {strides = array<i32>} : memref<34x128xf32, #tpu.memory_space<vmem>>, vector<34x128xf32>,
    } else {
    }
    %c0 = arith.constant 0 : index
    %c0_1 = arith.constant 0 : index
    %3 = vector.load %arg3[%c0, %c0_1] : memref<34x128xbf16, #tpu.memory_space<vmem>>, vector<34x128xbf16>
    %c0_2 = arith.constant 0 : index
    %c0_3 = arith.constant 0 : index
    %4 = vector.load %arg8[%c0_2, %c0_3] : memref<34x128xf32, #tpu.memory_space<vmem>>, vector<34x128xf32>
    %c0_4 = arith.constant 0 : index
    %c0_5 = arith.constant 0 : index
    %5 = vector.load %arg4[%c0_4, %c0_5] : memref<128x128xbf16, #tpu.memory_space<vmem>>, vector<128x128xbf16>
    %cst = arith.constant dense<0.000000e+00> : vector<34x128xf32>
    %6 = tpu.matmul %3, %5, %cst {dimension_numbers = #tpu.dot_dimension_numbers<[1], [0], [0], [1], [0, 0, 1, 1], [], []>} : vector<34x128xbf16>, vector<128x128xbf16>, vector<34x128xf32> -> vector<34x128xf32>
    %7 = arith.addf %4, %6 : vector<34x128xf32>
    %c0_6 = arith.constant 0 : index
    %c0_7 = arith.constant 0 : index
    %8 = vector.load %arg8[%c0_6, %c0_7] : memref<34x128xf32, #tpu.memory_space<vmem>>, vector<34x128xf32>
    tpu.vector_store %arg8[%c0_6, %c0_7], %7 {strides = array<i32>} : memref<34x128xf32, #tpu.memory_space<vmem>>, vector<34x128xf32>,
    %c0_i32_8 = arith.constant 0 : i32
    %9 = arith.cmpi eq, %arg2, %c0_i32_8 : i32
    %10 = arith.extui %9 : i1 to i32
    %c0_i32_9 = arith.constant 0 : i32
    %11 = arith.cmpi ne, %10, %c0_i32_9 : i32
    scf.if %11 {
      %c0_10 = arith.constant 0 : index
      %c0_11 = arith.constant 0 : index
      %12 = vector.load %arg8[%c0_10, %c0_11] : memref<34x128xf32, #tpu.memory_space<vmem>>, vector<34x128xf32>
      %c0_12 = arith.constant 0 : index
      %c0_13 = arith.constant 0 : index
      %13 = vector.load %arg5[%c0_12, %c0_13] : memref<1x128xf32, #tpu.memory_space<vmem>>, vector<1x128xf32>
      %14 = vector.broadcast %13 : vector<1x128xf32> to vector<34x128xf32>
      %15 = arith.addf %12, %14 : vector<34x128xf32>
      %c0_14 = arith.constant 0 : index
      %c0_15 = arith.constant 0 : index
      %16 = vector.load %arg6[%c0_14, %c0_15] : memref<34x128xf32, #tpu.memory_space<vmem>>, vector<34x128xf32>
      %17 = arith.addf %15, %16 : vector<34x128xf32>
      %c0_16 = arith.constant 0 : index
      %c0_17 = arith.constant 0 : index
      %18 = vector.load %arg7[%c0_16, %c0_17] : memref<34x128xf32, #tpu.memory_space<vmem>>, vector<34x128xf32>
      tpu.vector_store %arg7[%c0_16, %c0_17], %17 {strides = array<i32>} : memref<34x128xf32, #tpu.memory_space<vmem>>, vector<34x128xf32>,
    } else {
    }
    return
  }
  func.func @transform_0(%arg0: i32, %arg1: i32, %arg2: i32) -> (i32, i32) {
    %c0_i32 = arith.constant 0 : i32
    return %arg0, %arg2 : i32, i32
  }
  func.func @transform_1(%arg0: i32, %arg1: i32, %arg2: i32) -> (i32, i32) {
    %c0_i32 = arith.constant 0 : i32
    return %arg2, %arg1 : i32, i32
  }
  func.func @transform_2(%arg0: i32, %arg1: i32, %arg2: i32) -> (i32, i32) {
    %c0_i32 = arith.constant 0 : i32
    %c0_i32_0 = arith.constant 0 : i32
    return %c0_i32, %arg1 : i32, i32
  }
  func.func @transform_3(%arg0: i32, %arg1: i32, %arg2: i32) -> (i32, i32) {
    %c0_i32 = arith.constant 0 : i32
    return %arg0, %arg1 : i32, i32
  }
  func.func @transform_4(%arg0: i32, %arg1: i32, %arg2: i32) -> (i32, i32) {
    %c0_i32 = arith.constant 0 : i32
    return %arg0, %arg1 : i32, i32
  }
}

module attributes {stable_mosaic.version = 11 : i64} {
  func.func @_fused_dense_kernel(%arg0: i32, %arg1: i32, %arg2: i32, %arg3: memref<34x128xf32, #tpu.memory_space<vmem>>, %arg4: memref<1x128xf32, #tpu.memory_space<vmem>>, %arg5: memref<1x128xf32, #tpu.memory_space<vmem>>, %arg6: memref<128x512xbf16, #tpu.memory_space<vmem>>, %arg7: memref<1x512xf32, #tpu.memory_space<vmem>>, %arg8: memref<34x512xbf16, #tpu.memory_space<vmem>>, %arg9: memref<34x512xf32, #tpu.memory_space<vmem>>) attributes {dimension_semantics = [#tpu.dimension_semantics<parallel>, #tpu.dimension_semantics<parallel>, #tpu.dimension_semantics<arbitrary>], iteration_bounds = array<i64: 1, 1, 1>, scalar_prefetch = 0 : i64, scratch_operands = 1 : i64, tpu.core_type = #tpu.core_type<tc>, window_params = [{transform_indices = @transform_0, window_bounds = array<i64: 34, 128>}, {pipeline_mode = #tpu.pipeline_mode<synchronous>, transform_indices = @transform_1, window_bounds = array<i64: 1, 128>}, {pipeline_mode = #tpu.pipeline_mode<synchronous>, transform_indices = @transform_2, window_bounds = array<i64: 1, 128>}, {transform_indices = @transform_3, window_bounds = array<i64: 128, 512>}, {transform_indices = @transform_4, window_bounds = array<i64: 1, 512>}, {transform_indices = @transform_5, window_bounds = array<i64: 34, 512>}]} {
    %c0_i32 = arith.constant 0 : i32
    %0 = arith.cmpi eq, %arg2, %c0_i32 : i32
    %1 = arith.extui %0 : i1 to i32
    %c0_i32_0 = arith.constant 0 : i32
    %2 = arith.cmpi ne, %1, %c0_i32_0 : i32
    scf.if %2 {
      %cst_19 = arith.constant 0.000000e+00 : f32
      %35 = vector.broadcast %cst_19 : f32 to vector<34x512xf32>
      %c0_20 = arith.constant 0 : index
      %c0_21 = arith.constant 0 : index
      %36 = vector.load %arg9[%c0_20, %c0_21] : memref<34x512xf32, #tpu.memory_space<vmem>>, vector<34x512xf32>
      tpu.vector_store %arg9[%c0_20, %c0_21], %35 {strides = array<i32>} : memref<34x512xf32, #tpu.memory_space<vmem>>, vector<34x512xf32>,
    } else {
    }
    %c0 = arith.constant 0 : index
    %c0_1 = arith.constant 0 : index
    %3 = vector.load %arg3[%c0, %c0_1] : memref<34x128xf32, #tpu.memory_space<vmem>>, vector<34x128xf32>
    %cst = arith.constant dense<0.000000e+00> : vector<34xf32>
    %4 = vector.multi_reduction <add>, %3, %cst [1] : vector<34x128xf32> to vector<34xf32>
    %5 = vector.shape_cast %4 : vector<34xf32> to vector<34x1xf32>
    %cst_2 = arith.constant 1.280000e+02 : f32
    %6 = vector.broadcast %cst_2 : f32 to vector<34x1xf32>
    %7 = arith.divf %5, %6 : vector<34x1xf32>
    %8 = vector.broadcast %7 : vector<34x1xf32> to vector<34x128xf32>
    %9 = arith.subf %3, %8 : vector<34x128xf32>
    %10 = arith.mulf %9, %9 : vector<34x128xf32>
    %cst_3 = arith.constant dense<0.000000e+00> : vector<34xf32>
    %11 = vector.multi_reduction <add>, %10, %cst_3 [1] : vector<34x128xf32> to vector<34xf32>
    %12 = vector.shape_cast %11 : vector<34xf32> to vector<34x1xf32>
    %cst_4 = arith.constant 1.280000e+02 : f32
    %13 = vector.broadcast %cst_4 : f32 to vector<34x1xf32>
    %14 = arith.divf %12, %13 : vector<34x1xf32>
    %cst_5 = arith.constant 9.99999974E-6 : f32
    %15 = vector.broadcast %cst_5 : f32 to vector<34x1xf32>
    %16 = arith.addf %14, %15 : vector<34x1xf32>
    %17 = math.rsqrt %16 : vector<34x1xf32>
    %18 = vector.broadcast %17 : vector<34x1xf32> to vector<34x128xf32>
    %19 = arith.mulf %9, %18 : vector<34x128xf32>
    %c0_6 = arith.constant 0 : index
    %c0_7 = arith.constant 0 : index
    %20 = vector.load %arg4[%c0_6, %c0_7] : memref<1x128xf32, #tpu.memory_space<vmem>>, vector<1x128xf32>
    %21 = vector.broadcast %20 : vector<1x128xf32> to vector<34x128xf32>
    %22 = arith.mulf %19, %21 : vector<34x128xf32>
    %c0_8 = arith.constant 0 : index
    %c0_9 = arith.constant 0 : index
    %23 = vector.load %arg5[%c0_8, %c0_9] : memref<1x128xf32, #tpu.memory_space<vmem>>, vector<1x128xf32>
    %24 = vector.broadcast %23 : vector<1x128xf32> to vector<34x128xf32>
    %25 = arith.addf %22, %24 : vector<34x128xf32>
    %26 = arith.truncf %25 : vector<34x128xf32> to vector<34x128xbf16>
    %c0_10 = arith.constant 0 : index
    %c0_11 = arith.constant 0 : index
    %27 = vector.load %arg9[%c0_10, %c0_11] : memref<34x512xf32, #tpu.memory_space<vmem>>, vector<34x512xf32>
    %c0_12 = arith.constant 0 : index
    %c0_13 = arith.constant 0 : index
    %28 = vector.load %arg6[%c0_12, %c0_13] : memref<128x512xbf16, #tpu.memory_space<vmem>>, vector<128x512xbf16>
    %cst_14 = arith.constant dense<0.000000e+00> : vector<34x512xf32>
    %29 = tpu.matmul %26, %28, %cst_14 {dimension_numbers = #tpu.dot_dimension_numbers<[1], [0], [0], [1], [0, 0, 1, 1], [], []>} : vector<34x128xbf16>, vector<128x512xbf16>, vector<34x512xf32> -> vector<34x512xf32>
    %30 = arith.addf %27, %29 : vector<34x512xf32>
    %c0_15 = arith.constant 0 : index
    %c0_16 = arith.constant 0 : index
    %31 = vector.load %arg9[%c0_15, %c0_16] : memref<34x512xf32, #tpu.memory_space<vmem>>, vector<34x512xf32>
    tpu.vector_store %arg9[%c0_15, %c0_16], %30 {strides = array<i32>} : memref<34x512xf32, #tpu.memory_space<vmem>>, vector<34x512xf32>,
    %c0_i32_17 = arith.constant 0 : i32
    %32 = arith.cmpi eq, %arg2, %c0_i32_17 : i32
    %33 = arith.extui %32 : i1 to i32
    %c0_i32_18 = arith.constant 0 : i32
    %34 = arith.cmpi ne, %33, %c0_i32_18 : i32
    scf.if %34 {
      %c0_19 = arith.constant 0 : index
      %c0_20 = arith.constant 0 : index
      %35 = vector.load %arg9[%c0_19, %c0_20] : memref<34x512xf32, #tpu.memory_space<vmem>>, vector<34x512xf32>
      %c0_21 = arith.constant 0 : index
      %c0_22 = arith.constant 0 : index
      %36 = vector.load %arg7[%c0_21, %c0_22] : memref<1x512xf32, #tpu.memory_space<vmem>>, vector<1x512xf32>
      %37 = vector.broadcast %36 : vector<1x512xf32> to vector<34x512xf32>
      %38 = arith.addf %35, %37 : vector<34x512xf32>
      %cst_23 = arith.constant 1.702000e+00 : f32
      %39 = vector.broadcast %cst_23 : f32 to vector<34x512xf32>
      %40 = arith.mulf %39, %38 : vector<34x512xf32>
      %41 = arith.negf %40 : vector<34x512xf32>
      %42 = math.exp %41 : vector<34x512xf32>
      %cst_24 = arith.constant 1.000000e+00 : f32
      %43 = vector.broadcast %cst_24 : f32 to vector<34x512xf32>
      %44 = arith.addf %43, %42 : vector<34x512xf32>
      %45 = arith.divf %43, %44 : vector<34x512xf32>
      %46 = arith.mulf %38, %45 : vector<34x512xf32>
      %47 = arith.truncf %46 : vector<34x512xf32> to vector<34x512xbf16>
      %c0_25 = arith.constant 0 : index
      %c0_26 = arith.constant 0 : index
      %48 = vector.load %arg8[%c0_25, %c0_26] : memref<34x512xbf16, #tpu.memory_space<vmem>>, vector<34x512xbf16>
      tpu.vector_store %arg8[%c0_25, %c0_26], %47 {strides = array<i32>} : memref<34x512xbf16, #tpu.memory_space<vmem>>, vector<34x512xbf16>,
    } else {
    }
    return
  }
  func.func @transform_0(%arg0: i32, %arg1: i32, %arg2: i32) -> (i32, i32) {
    %c0_i32 = arith.constant 0 : i32
    return %arg0, %arg2 : i32, i32
  }
  func.func @transform_1(%arg0: i32, %arg1: i32, %arg2: i32) -> (i32, i32) {
    %c0_i32 = arith.constant 0 : i32
    %c0_i32_0 = arith.constant 0 : i32
    %c0_i32_1 = arith.constant 0 : i32
    return %c0_i32, %c0_i32_0 : i32, i32
  }
  func.func @transform_2(%arg0: i32, %arg1: i32, %arg2: i32) -> (i32, i32) {
    %c0_i32 = arith.constant 0 : i32
    %c0_i32_0 = arith.constant 0 : i32
    %c0_i32_1 = arith.constant 0 : i32
    return %c0_i32, %c0_i32_0 : i32, i32
  }
  func.func @transform_3(%arg0: i32, %arg1: i32, %arg2: i32) -> (i32, i32) {
    %c0_i32 = arith.constant 0 : i32
    return %arg2, %arg1 : i32, i32
  }
  func.func @transform_4(%arg0: i32, %arg1: i32, %arg2: i32) -> (i32, i32) {
    %c0_i32 = arith.constant 0 : i32
    %c0_i32_0 = arith.constant 0 : i32
    return %c0_i32, %arg1 : i32, i32
  }
  func.func @transform_5(%arg0: i32, %arg1: i32, %arg2: i32) -> (i32, i32) {
    %c0_i32 = arith.constant 0 : i32
    return %arg0, %arg1 : i32, i32
  }
}

module attributes {stable_mosaic.version = 11 : i64} {
  func.func @_fused_dense_kernel(%arg0: i32, %arg1: i32, %arg2: i32, %arg3: memref<34x512xbf16, #tpu.memory_space<vmem>>, %arg4: memref<512x128xbf16, #tpu.memory_space<vmem>>, %arg5: memref<1x128xf32, #tpu.memory_space<vmem>>, %arg6: memref<34x128xf32, #tpu.memory_space<vmem>>, %arg7: memref<34x128xf32, #tpu.memory_space<vmem>>, %arg8: memref<34x128xf32, #tpu.memory_space<vmem>>) attributes {dimension_semantics = [#tpu.dimension_semantics<parallel>, #tpu.dimension_semantics<parallel>, #tpu.dimension_semantics<arbitrary>], iteration_bounds = array<i64: 1, 1, 1>, scalar_prefetch = 0 : i64, scratch_operands = 1 : i64, tpu.core_type = #tpu.core_type<tc>, window_params = [{transform_indices = @transform_0, window_bounds = array<i64: 34, 512>}, {transform_indices = @transform_1, window_bounds = array<i64: 512, 128>}, {transform_indices = @transform_2, window_bounds = array<i64: 1, 128>}, {transform_indices = @transform_3, window_bounds = array<i64: 34, 128>}, {transform_indices = @transform_4, window_bounds = array<i64: 34, 128>}]} {
    %c0_i32 = arith.constant 0 : i32
    %0 = arith.cmpi eq, %arg2, %c0_i32 : i32
    %1 = arith.extui %0 : i1 to i32
    %c0_i32_0 = arith.constant 0 : i32
    %2 = arith.cmpi ne, %1, %c0_i32_0 : i32
    scf.if %2 {
      %cst_10 = arith.constant 0.000000e+00 : f32
      %12 = vector.broadcast %cst_10 : f32 to vector<34x128xf32>
      %c0_11 = arith.constant 0 : index
      %c0_12 = arith.constant 0 : index
      %13 = vector.load %arg8[%c0_11, %c0_12] : memref<34x128xf32, #tpu.memory_space<vmem>>, vector<34x128xf32>
      tpu.vector_store %arg8[%c0_11, %c0_12], %12 {strides = array<i32>} : memref<34x128xf32, #tpu.memory_space<vmem>>, vector<34x128xf32>,
    } else {
    }
    %c0 = arith.constant 0 : index
    %c0_1 = arith.constant 0 : index
    %3 = vector.load %arg3[%c0, %c0_1] : memref<34x512xbf16, #tpu.memory_space<vmem>>, vector<34x512xbf16>
    %c0_2 = arith.constant 0 : index
    %c0_3 = arith.constant 0 : index
    %4 = vector.load %arg8[%c0_2, %c0_3] : memref<34x128xf32, #tpu.memory_space<vmem>>, vector<34x128xf32>
    %c0_4 = arith.constant 0 : index
    %c0_5 = arith.constant 0 : index
    %5 = vector.load %arg4[%c0_4, %c0_5] : memref<512x128xbf16, #tpu.memory_space<vmem>>, vector<512x128xbf16>
    %cst = arith.constant dense<0.000000e+00> : vector<34x128xf32>
    %6 = tpu.matmul %3, %5, %cst {dimension_numbers = #tpu.dot_dimension_numbers<[1], [0], [0], [1], [0, 0, 1, 1], [], []>} : vector<34x512xbf16>, vector<512x128xbf16>, vector<34x128xf32> -> vector<34x128xf32>
    %7 = arith.addf %4, %6 : vector<34x128xf32>
    %c0_6 = arith.constant 0 : index
    %c0_7 = arith.constant 0 : index
    %8 = vector.load %arg8[%c0_6, %c0_7] : memref<34x128xf32, #tpu.memory_space<vmem>>, vector<34x128xf32>
    tpu.vector_store %arg8[%c0_6, %c0_7], %7 {strides = array<i32>} : memref<34x128xf32, #tpu.memory_space<vmem>>, vector<34x128xf32>,
    %c0_i32_8 = arith.constant 0 : i32
    %9 = arith.cmpi eq, %arg2, %c0_i32_8 : i32
    %10 = arith.extui %9 : i1 to i32
    %c0_i32_9 = arith.constant 0 : i32
    %11 = arith.cmpi ne, %10, %c0_i32_9 : i32
    scf.if %11 {
      %c0_10 = arith.constant 0 : index
      %c0_11 = arith.constant 0 : index
      %12 = vector.load %arg8[%c0_10, %c0_11] : memref<34x128xf32, #tpu.memory_space<vmem>>, vector<34x128xf32>
      %c0_12 = arith.constant 0 : index
      %c0_13 = arith.constant 0 : index
      %13 = vector.load %arg5[%c0_12, %c0_13] : memref<1x128xf32, #tpu.memory_space<vmem>>, vector<1x128xf32>
      %14 = vector.broadcast %13 : vector<1x128xf32> to vector<34x128xf32>
      %15 = arith.addf %12, %14 : vector<34x128xf32>
      %c0_14 = arith.constant 0 : index
      %c0_15 = arith.constant 0 : index
      %16 = vector.load %arg6[%c0_14, %c0_15] : memref<34x128xf32, #tpu.memory_space<vmem>>, vector<34x128xf32>
      %17 = arith.addf %15, %16 : vector<34x128xf32>
      %c0_16 = arith.constant 0 : index
      %c0_17 = arith.constant 0 : index
      %18 = vector.load %arg7[%c0_16, %c0_17] : memref<34x128xf32, #tpu.memory_space<vmem>>, vector<34x128xf32>
      tpu.vector_store %arg7[%c0_16, %c0_17], %17 {strides = array<i32>} : memref<34x128xf32, #tpu.memory_space<vmem>>, vector<34x128xf32>,
    } else {
    }
    return
  }
  func.func @transform_0(%arg0: i32, %arg1: i32, %arg2: i32) -> (i32, i32) {
    %c0_i32 = arith.constant 0 : i32
    return %arg0, %arg2 : i32, i32
  }
  func.func @transform_1(%arg0: i32, %arg1: i32, %arg2: i32) -> (i32, i32) {
    %c0_i32 = arith.constant 0 : i32
    return %arg2, %arg1 : i32, i32
  }
  func.func @transform_2(%arg0: i32, %arg1: i32, %arg2: i32) -> (i32, i32) {
    %c0_i32 = arith.constant 0 : i32
    %c0_i32_0 = arith.constant 0 : i32
    return %c0_i32, %arg1 : i32, i32
  }
  func.func @transform_3(%arg0: i32, %arg1: i32, %arg2: i32) -> (i32, i32) {
    %c0_i32 = arith.constant 0 : i32
    return %arg0, %arg1 : i32, i32
  }
  func.func @transform_4(%arg0: i32, %arg1: i32, %arg2: i32) -> (i32, i32) {
    %c0_i32 = arith.constant 0 : i32
    return %arg0, %arg1 : i32, i32
  }
}

module attributes {stable_mosaic.version = 11 : i64} {
  func.func @_fused_dense_kernel(%arg0: i32, %arg1: i32, %arg2: i32, %arg3: memref<2x128xf32, #tpu.memory_space<vmem>>, %arg4: memref<1x128xf32, #tpu.memory_space<vmem>>, %arg5: memref<1x128xf32, #tpu.memory_space<vmem>>, %arg6: memref<128x512xbf16, #tpu.memory_space<vmem>>, %arg7: memref<2x512xf32, #tpu.memory_space<vmem>>, %arg8: memref<2x512xf32, #tpu.memory_space<vmem>>) attributes {dimension_semantics = [#tpu.dimension_semantics<parallel>, #tpu.dimension_semantics<parallel>, #tpu.dimension_semantics<arbitrary>], iteration_bounds = array<i64: 1, 1, 1>, scalar_prefetch = 0 : i64, scratch_operands = 1 : i64, tpu.core_type = #tpu.core_type<tc>, window_params = [{transform_indices = @transform_0, window_bounds = array<i64: 2, 128>}, {pipeline_mode = #tpu.pipeline_mode<synchronous>, transform_indices = @transform_1, window_bounds = array<i64: 1, 128>}, {pipeline_mode = #tpu.pipeline_mode<synchronous>, transform_indices = @transform_2, window_bounds = array<i64: 1, 128>}, {transform_indices = @transform_3, window_bounds = array<i64: 128, 512>}, {transform_indices = @transform_4, window_bounds = array<i64: 2, 512>}]} {
    %c0_i32 = arith.constant 0 : i32
    %0 = arith.cmpi eq, %arg2, %c0_i32 : i32
    %1 = arith.extui %0 : i1 to i32
    %c0_i32_0 = arith.constant 0 : i32
    %2 = arith.cmpi ne, %1, %c0_i32_0 : i32
    scf.if %2 {
      %cst_19 = arith.constant 0.000000e+00 : f32
      %35 = vector.broadcast %cst_19 : f32 to vector<2x512xf32>
      %c0_20 = arith.constant 0 : index
      %c0_21 = arith.constant 0 : index
      %36 = vector.load %arg8[%c0_20, %c0_21] : memref<2x512xf32, #tpu.memory_space<vmem>>, vector<2x512xf32>
      tpu.vector_store %arg8[%c0_20, %c0_21], %35 {strides = array<i32>} : memref<2x512xf32, #tpu.memory_space<vmem>>, vector<2x512xf32>,
    } else {
    }
    %c0 = arith.constant 0 : index
    %c0_1 = arith.constant 0 : index
    %3 = vector.load %arg3[%c0, %c0_1] : memref<2x128xf32, #tpu.memory_space<vmem>>, vector<2x128xf32>
    %cst = arith.constant dense<0.000000e+00> : vector<2xf32>
    %4 = vector.multi_reduction <add>, %3, %cst [1] : vector<2x128xf32> to vector<2xf32>
    %5 = vector.shape_cast %4 : vector<2xf32> to vector<2x1xf32>
    %cst_2 = arith.constant 1.280000e+02 : f32
    %6 = vector.broadcast %cst_2 : f32 to vector<2x1xf32>
    %7 = arith.divf %5, %6 : vector<2x1xf32>
    %8 = vector.broadcast %7 : vector<2x1xf32> to vector<2x128xf32>
    %9 = arith.subf %3, %8 : vector<2x128xf32>
    %10 = arith.mulf %9, %9 : vector<2x128xf32>
    %cst_3 = arith.constant dense<0.000000e+00> : vector<2xf32>
    %11 = vector.multi_reduction <add>, %10, %cst_3 [1] : vector<2x128xf32> to vector<2xf32>
    %12 = vector.shape_cast %11 : vector<2xf32> to vector<2x1xf32>
    %cst_4 = arith.constant 1.280000e+02 : f32
    %13 = vector.broadcast %cst_4 : f32 to vector<2x1xf32>
    %14 = arith.divf %12, %13 : vector<2x1xf32>
    %cst_5 = arith.constant 9.99999974E-6 : f32
    %15 = vector.broadcast %cst_5 : f32 to vector<2x1xf32>
    %16 = arith.addf %14, %15 : vector<2x1xf32>
    %17 = math.rsqrt %16 : vector<2x1xf32>
    %18 = vector.broadcast %17 : vector<2x1xf32> to vector<2x128xf32>
    %19 = arith.mulf %9, %18 : vector<2x128xf32>
    %c0_6 = arith.constant 0 : index
    %c0_7 = arith.constant 0 : index
    %20 = vector.load %arg4[%c0_6, %c0_7] : memref<1x128xf32, #tpu.memory_space<vmem>>, vector<1x128xf32>
    %21 = vector.broadcast %20 : vector<1x128xf32> to vector<2x128xf32>
    %22 = arith.mulf %19, %21 : vector<2x128xf32>
    %c0_8 = arith.constant 0 : index
    %c0_9 = arith.constant 0 : index
    %23 = vector.load %arg5[%c0_8, %c0_9] : memref<1x128xf32, #tpu.memory_space<vmem>>, vector<1x128xf32>
    %24 = vector.broadcast %23 : vector<1x128xf32> to vector<2x128xf32>
    %25 = arith.addf %22, %24 : vector<2x128xf32>
    %26 = arith.truncf %25 : vector<2x128xf32> to vector<2x128xbf16>
    %c0_10 = arith.constant 0 : index
    %c0_11 = arith.constant 0 : index
    %27 = vector.load %arg8[%c0_10, %c0_11] : memref<2x512xf32, #tpu.memory_space<vmem>>, vector<2x512xf32>
    %c0_12 = arith.constant 0 : index
    %c0_13 = arith.constant 0 : index
    %28 = vector.load %arg6[%c0_12, %c0_13] : memref<128x512xbf16, #tpu.memory_space<vmem>>, vector<128x512xbf16>
    %cst_14 = arith.constant dense<0.000000e+00> : vector<2x512xf32>
    %29 = tpu.matmul %26, %28, %cst_14 {dimension_numbers = #tpu.dot_dimension_numbers<[1], [0], [0], [1], [0, 0, 1, 1], [], []>} : vector<2x128xbf16>, vector<128x512xbf16>, vector<2x512xf32> -> vector<2x512xf32>
    %30 = arith.addf %27, %29 : vector<2x512xf32>
    %c0_15 = arith.constant 0 : index
    %c0_16 = arith.constant 0 : index
    %31 = vector.load %arg8[%c0_15, %c0_16] : memref<2x512xf32, #tpu.memory_space<vmem>>, vector<2x512xf32>
    tpu.vector_store %arg8[%c0_15, %c0_16], %30 {strides = array<i32>} : memref<2x512xf32, #tpu.memory_space<vmem>>, vector<2x512xf32>,
    %c0_i32_17 = arith.constant 0 : i32
    %32 = arith.cmpi eq, %arg2, %c0_i32_17 : i32
    %33 = arith.extui %32 : i1 to i32
    %c0_i32_18 = arith.constant 0 : i32
    %34 = arith.cmpi ne, %33, %c0_i32_18 : i32
    scf.if %34 {
      %c0_19 = arith.constant 0 : index
      %c0_20 = arith.constant 0 : index
      %35 = vector.load %arg8[%c0_19, %c0_20] : memref<2x512xf32, #tpu.memory_space<vmem>>, vector<2x512xf32>
      %c0_21 = arith.constant 0 : index
      %c0_22 = arith.constant 0 : index
      %36 = vector.load %arg7[%c0_21, %c0_22] : memref<2x512xf32, #tpu.memory_space<vmem>>, vector<2x512xf32>
      tpu.vector_store %arg7[%c0_21, %c0_22], %35 {strides = array<i32>} : memref<2x512xf32, #tpu.memory_space<vmem>>, vector<2x512xf32>,
    } else {
    }
    return
  }
  func.func @transform_0(%arg0: i32, %arg1: i32, %arg2: i32) -> (i32, i32) {
    %c0_i32 = arith.constant 0 : i32
    return %arg0, %arg2 : i32, i32
  }
  func.func @transform_1(%arg0: i32, %arg1: i32, %arg2: i32) -> (i32, i32) {
    %c0_i32 = arith.constant 0 : i32
    %c0_i32_0 = arith.constant 0 : i32
    %c0_i32_1 = arith.constant 0 : i32
    return %c0_i32, %c0_i32_0 : i32, i32
  }
  func.func @transform_2(%arg0: i32, %arg1: i32, %arg2: i32) -> (i32, i32) {
    %c0_i32 = arith.constant 0 : i32
    %c0_i32_0 = arith.constant 0 : i32
    %c0_i32_1 = arith.constant 0 : i32
    return %c0_i32, %c0_i32_0 : i32, i32
  }
  func.func @transform_3(%arg0: i32, %arg1: i32, %arg2: i32) -> (i32, i32) {
    %c0_i32 = arith.constant 0 : i32
    return %arg2, %arg1 : i32, i32
  }
  func.func @transform_4(%arg0: i32, %arg1: i32, %arg2: i32) -> (i32, i32) {
    %c0_i32 = arith.constant 0 : i32
    return %arg0, %arg1 : i32, i32
  }
}

module attributes {stable_mosaic.version = 11 : i64} {
  func.func @_fused_dense_kernel(%arg0: i32, %arg1: i32, %arg2: i32, %arg3: memref<2x512xbf16, #tpu.memory_space<vmem>>, %arg4: memref<512x128xbf16, #tpu.memory_space<vmem>>, %arg5: memref<1x128xf32, #tpu.memory_space<vmem>>, %arg6: memref<2x128xf32, #tpu.memory_space<vmem>>, %arg7: memref<2x128xf32, #tpu.memory_space<vmem>>) attributes {dimension_semantics = [#tpu.dimension_semantics<parallel>, #tpu.dimension_semantics<parallel>, #tpu.dimension_semantics<arbitrary>], iteration_bounds = array<i64: 1, 1, 1>, scalar_prefetch = 0 : i64, scratch_operands = 1 : i64, tpu.core_type = #tpu.core_type<tc>, window_params = [{transform_indices = @transform_0, window_bounds = array<i64: 2, 512>}, {transform_indices = @transform_1, window_bounds = array<i64: 512, 128>}, {transform_indices = @transform_2, window_bounds = array<i64: 1, 128>}, {transform_indices = @transform_3, window_bounds = array<i64: 2, 128>}]} {
    %c0_i32 = arith.constant 0 : i32
    %0 = arith.cmpi eq, %arg2, %c0_i32 : i32
    %1 = arith.extui %0 : i1 to i32
    %c0_i32_0 = arith.constant 0 : i32
    %2 = arith.cmpi ne, %1, %c0_i32_0 : i32
    scf.if %2 {
      %cst_10 = arith.constant 0.000000e+00 : f32
      %12 = vector.broadcast %cst_10 : f32 to vector<2x128xf32>
      %c0_11 = arith.constant 0 : index
      %c0_12 = arith.constant 0 : index
      %13 = vector.load %arg7[%c0_11, %c0_12] : memref<2x128xf32, #tpu.memory_space<vmem>>, vector<2x128xf32>
      tpu.vector_store %arg7[%c0_11, %c0_12], %12 {strides = array<i32>} : memref<2x128xf32, #tpu.memory_space<vmem>>, vector<2x128xf32>,
    } else {
    }
    %c0 = arith.constant 0 : index
    %c0_1 = arith.constant 0 : index
    %3 = vector.load %arg3[%c0, %c0_1] : memref<2x512xbf16, #tpu.memory_space<vmem>>, vector<2x512xbf16>
    %c0_2 = arith.constant 0 : index
    %c0_3 = arith.constant 0 : index
    %4 = vector.load %arg7[%c0_2, %c0_3] : memref<2x128xf32, #tpu.memory_space<vmem>>, vector<2x128xf32>
    %c0_4 = arith.constant 0 : index
    %c0_5 = arith.constant 0 : index
    %5 = vector.load %arg4[%c0_4, %c0_5] : memref<512x128xbf16, #tpu.memory_space<vmem>>, vector<512x128xbf16>
    %cst = arith.constant dense<0.000000e+00> : vector<2x128xf32>
    %6 = tpu.matmul %3, %5, %cst {dimension_numbers = #tpu.dot_dimension_numbers<[1], [0], [0], [1], [0, 0, 1, 1], [], []>} : vector<2x512xbf16>, vector<512x128xbf16>, vector<2x128xf32> -> vector<2x128xf32>
    %7 = arith.addf %4, %6 : vector<2x128xf32>
    %c0_6 = arith.constant 0 : index
    %c0_7 = arith.constant 0 : index
    %8 = vector.load %arg7[%c0_6, %c0_7] : memref<2x128xf32, #tpu.memory_space<vmem>>, vector<2x128xf32>
    tpu.vector_store %arg7[%c0_6, %c0_7], %7 {strides = array<i32>} : memref<2x128xf32, #tpu.memory_space<vmem>>, vector<2x128xf32>,
    %c0_i32_8 = arith.constant 0 : i32
    %9 = arith.cmpi eq, %arg2, %c0_i32_8 : i32
    %10 = arith.extui %9 : i1 to i32
    %c0_i32_9 = arith.constant 0 : i32
    %11 = arith.cmpi ne, %10, %c0_i32_9 : i32
    scf.if %11 {
      %c0_10 = arith.constant 0 : index
      %c0_11 = arith.constant 0 : index
      %12 = vector.load %arg7[%c0_10, %c0_11] : memref<2x128xf32, #tpu.memory_space<vmem>>, vector<2x128xf32>
      %c0_12 = arith.constant 0 : index
      %c0_13 = arith.constant 0 : index
      %13 = vector.load %arg5[%c0_12, %c0_13] : memref<1x128xf32, #tpu.memory_space<vmem>>, vector<1x128xf32>
      %14 = vector.broadcast %13 : vector<1x128xf32> to vector<2x128xf32>
      %15 = arith.addf %12, %14 : vector<2x128xf32>
      %cst_14 = arith.constant 0.000000e+00 : f32
      %16 = vector.broadcast %cst_14 : f32 to vector<2x128xf32>
      %17 = arith.maximumf %15, %16 : vector<2x128xf32>
      %c0_15 = arith.constant 0 : index
      %c0_16 = arith.constant 0 : index
      %18 = vector.load %arg6[%c0_15, %c0_16] : memref<2x128xf32, #tpu.memory_space<vmem>>, vector<2x128xf32>
      tpu.vector_store %arg6[%c0_15, %c0_16], %17 {strides = array<i32>} : memref<2x128xf32, #tpu.memory_space<vmem>>, vector<2x128xf32>,
    } else {
    }
    return
  }
  func.func @transform_0(%arg0: i32, %arg1: i32, %arg2: i32) -> (i32, i32) {
    %c0_i32 = arith.constant 0 : i32
    return %arg0, %arg2 : i32, i32
  }
  func.func @transform_1(%arg0: i32, %arg1: i32, %arg2: i32) -> (i32, i32) {
    %c0_i32 = arith.constant 0 : i32
    return %arg2, %arg1 : i32, i32
  }
  func.func @transform_2(%arg0: i32, %arg1: i32, %arg2: i32) -> (i32, i32) {
    %c0_i32 = arith.constant 0 : i32
    %c0_i32_0 = arith.constant 0 : i32
    return %c0_i32, %arg1 : i32, i32
  }
  func.func @transform_3(%arg0: i32, %arg1: i32, %arg2: i32) -> (i32, i32) {
    %c0_i32 = arith.constant 0 : i32
    return %arg0, %arg1 : i32, i32
  }
}

</mosaic_0001>

<llo_original>
// kernel: clip_img_encoder_forward.15
$region0: #{clip_img_encoder_forward.15}
  #allocation0 [shape = 'u32[]', space=smem, size = 0x4, offset = 0x4, fixed_abs, tag = 'smem constant byte address 0x4 - core index']
  #allocation1 [shape = 'u32[144,128]{1,0:T(1,128)}', space=vmem, size = 0x12000, scoped, tag = 'internal scratch']
  %s0 = inlined_call_operand.vmem [shape: f32[34,128], index: 0, kind: input, shape index: {}]
  %s1 = inlined_call_operand.vmem [shape: f32[1,128], index: 1, kind: input, shape index: {}]
  %s2 = inlined_call_operand.vmem [shape: f32[1,128], index: 2, kind: input, shape index: {}]
  %s3 = inlined_call_operand.vmem [shape: f32[34,128], index: 3, kind: output, shape index: {}]
  %s4 = sld [smem:[#allocation0]]
  $region22: #{clip_img_encoder_forward.15} parent=0
    _
  %s6 = ssub.s32 1, %s4
  %s7 = scalar_select 0, %s6, %s4
  // Predicated region
  $region2: #{clip_img_encoder_forward.15} parent=0 // pred_check
    _
  $region3: #{clip_img_encoder_forward.15} parent=0 // pred_check_branch
    %9 = sbr.rel (0) target = $region5
  $region4: #{clip_img_encoder_forward.15} parent=0 // pred_region
    _
  $region5: #{clip_img_encoder_forward.15} parent=0 // pred_fallthru
    _
  // Predicated region
  $region6: #{clip_img_encoder_forward.15} parent=0 // pred_check
    _
  $region7: #{clip_img_encoder_forward.15} parent=0 // pred_check_branch
    %11 = sbr.rel (0) target = $region9
  $region8: #{clip_img_encoder_forward.15} parent=0 // pred_region
    _
  $region9: #{clip_img_encoder_forward.15} parent=0 // pred_fallthru
    _
  // Predicated region
  $region10: #{clip_img_encoder_forward.15} parent=0 // pred_check
    _
  $region11: #{clip_img_encoder_forward.15} parent=0 // pred_check_branch
    %13 = sbr.rel (0) target = $region13
  $region12: #{clip_img_encoder_forward.15} parent=0 // pred_region
    _
  $region13: #{clip_img_encoder_forward.15} parent=0 // pred_fallthru
    _
  %v14 = vld [vmem:[%s0] sm:$0xff]
  %v15 = vld [vmem:[%s0 + $0x8] sm:$0xff]
  %v16 = vld [vmem:[%s0 + $0x10] sm:$0xff]
  %v17 = vld [vmem:[%s0 + $0x18] sm:$0xff]
  %v18 = vld [vmem:[%s0 + $0x20] sm:$0x3]
  %19 = vadd.xlane.f32.xlu0 %v14
  %v20 = vpop.xlane.xlu0 %19
  %21 = vadd.xlane.f32.xlu0 %v15
  %v22 = vpop.xlane.xlu0 %21
  %23 = vadd.xlane.f32.xlu0 %v16
  %v24 = vpop.xlane.xlu0 %23
  %25 = vadd.xlane.f32.xlu0 %v17
  %v26 = vpop.xlane.xlu0 %25
  %vm27 = vcmask 1041408
  %v28 = vsel %vm27, %v18, 0.0
  %29 = vadd.xlane.f32.xlu0 %v28
  %v30 = vpop.xlane.xlu0 %29
  %v31 = vrcp.pop 128.0
  %v32 = vmul.f32 %v20, %v31
  %v33 = vmul.f32 %v22, %v31
  %v34 = vmul.f32 %v24, %v31
  %v35 = vmul.f32 %v26, %v31
  %v36 = vmul.f32 %v30, %v31
  %v37 = vsub.f32 %v14, %v32
  %v38 = vsub.f32 %v15, %v33
  %v39 = vsub.f32 %v16, %v34
  %v40 = vsub.f32 %v17, %v35
  %v41 = vsub.f32 %v18, %v36
  %v42 = vmul.f32 %v37, %v37
  %v43 = vmul.f32 %v38, %v38
  %v44 = vmul.f32 %v39, %v39
  %v45 = vmul.f32 %v40, %v40
  %v46 = vmul.f32 %v41, %v41
  %47 = vadd.xlane.f32.xlu0 %v42
  %v48 = vpop.xlane.xlu0 %47
  %49 = vadd.xlane.f32.xlu0 %v43
  %v50 = vpop.xlane.xlu0 %49
  %51 = vadd.xlane.f32.xlu0 %v44
  %v52 = vpop.xlane.xlu0 %51
  %53 = vadd.xlane.f32.xlu0 %v45
  %v54 = vpop.xlane.xlu0 %53
  %v55 = vsel %vm27, %v46, 0.0
  %56 = vadd.xlane.f32.xlu0 %v55
  %v57 = vpop.xlane.xlu0 %56
  %v58 = vmul.f32 %v48, %v31
  %v59 = vmul.f32 %v50, %v31
  %v60 = vmul.f32 %v52, %v31
  %v61 = vmul.f32 %v54, %v31
  %v62 = vmul.f32 %v57, %v31
  %v63 = vadd.f32 %v58, 1e-05
  %v64 = vadd.f32 %v59, 1e-05
  %v65 = vadd.f32 %v60, 1e-05
  %v66 = vadd.f32 %v61, 1e-05
  %v67 = vadd.f32 %v62, 1e-05
  %v68 = vrsqrt.pop %v63
  %v69 = vrsqrt.pop %v64
  %v70 = vrsqrt.pop %v65
  %v71 = vrsqrt.pop %v66
  %v72 = vrsqrt.pop %v67
  %v73 = vmul.f32 %v37, %v68
  %v74 = vmul.f32 %v38, %v69
  %v75 = vmul.f32 %v39, %v70
  %v76 = vmul.f32 %v40, %v71
  %v77 = vmul.f32 %v41, %v72
  %v78 = vld [vmem:[%s1] sm:$0x1]
  %v80 = vlaneseq
  %v81 = vshrl.u32 %v80, 7
  %v82 = vsub.s32 0, %v81
  %v83 = vrot.slane %v78, %v82
  %v85 = vmul.f32 %v73, %v83
  %v86 = vmul.f32 %v74, %v83
  %v87 = vmul.f32 %v75, %v83
  %v88 = vmul.f32 %v76, %v83
  %v89 = vmul.f32 %v77, %v83
  %v90 = vld [vmem:[%s2] sm:$0x1]
  %v92 = vlaneseq
  %v93 = vshrl.u32 %v92, 7
  %v94 = vsub.s32 0, %v93
  %v95 = vrot.slane %v90, %v94
  %v97 = vadd.f32 %v85, %v95
  %v98 = vadd.f32 %v86, %v95
  %v99 = vadd.f32 %v87, %v95
  %v100 = vadd.f32 %v88, %v95
  %v101 = vadd.f32 %v89, %v95
  %102 = vst [vmem:[%s3] sm:$0xff] %v97
  %103 = vst [vmem:[%s3 + $0x8] sm:$0xff] %v98
  %104 = vst [vmem:[%s3 + $0x10] sm:$0xff] %v99
  %105 = vst [vmem:[%s3 + $0x18] sm:$0xff] %v100
  %106 = vst [vmem:[%s3 + $0x20] sm:$0x3] %v101
  // Predicated region
  $region14: #{clip_img_encoder_forward.15} parent=0 // pred_check
    _
  $region15: #{clip_img_encoder_forward.15} parent=0 // pred_check_branch
    %108 = sbr.rel (0) target = $region17
  $region16: #{clip_img_encoder_forward.15} parent=0 // pred_region
    _
  $region17: #{clip_img_encoder_forward.15} parent=0 // pred_fallthru
    _
  // Predicated region
  $region18: #{clip_img_encoder_forward.15} parent=0 // pred_check
    _
  $region19: #{clip_img_encoder_forward.15} parent=0 // pred_check_branch
    %110 = sbr.rel (0) target = $region21
  $region20: #{clip_img_encoder_forward.15} parent=0 // pred_region
    _
  $region21: #{clip_img_encoder_forward.15} parent=0 // pred_fallthru
    _

// kernel: clip_img_encoder_forward.14
$region0: #{clip_img_encoder_forward.14}
  #allocation0 [shape = 'u32[]', space=smem, size = 0x4, offset = 0x4, fixed_abs, tag = 'smem constant byte address 0x4 - core index']
  #allocation1 [shape = 'u32[144,128]{1,0:T(1,128)}', space=vmem, size = 0x12000, scoped, tag = 'internal scratch']
  #allocation2 [shape = 'f32[32,128]{1,0:T(8,128)}', space=vmem, size = 0x4000, scoped, tag = 'scratch operand']
  %s0 = inlined_call_operand.vmem [shape: bf16[32,192], index: 0, kind: input, shape index: {}]
  %s1 = inlined_call_operand.vmem [shape: bf16[192,128], index: 1, kind: input, shape index: {}]
  %s2 = inlined_call_operand.vmem [shape: f32[32,128], index: 2, kind: output, shape index: {}]
  %s3 = sld [smem:[#allocation0]]
  $region26: #{clip_img_encoder_forward.14} parent=0
    _
  %s5 = ssub.s32 1, %s3
  %s6 = scalar_select 0, %s5, %s3
  // Predicated region
  $region2: #{clip_img_encoder_forward.14} parent=0 // pred_check
    _
  $region3: #{clip_img_encoder_forward.14} parent=0 // pred_check_branch
    %8 = sbr.rel (0) target = $region5
  $region4: #{clip_img_encoder_forward.14} parent=0 // pred_region
    _
  $region5: #{clip_img_encoder_forward.14} parent=0 // pred_fallthru
    _
  // Predicated region
  $region6: #{clip_img_encoder_forward.14} parent=0 // pred_check
    _
  $region7: #{clip_img_encoder_forward.14} parent=0 // pred_check_branch
    %10 = sbr.rel (0) target = $region9
  $region8: #{clip_img_encoder_forward.14} parent=0 // pred_region
    _
  $region9: #{clip_img_encoder_forward.14} parent=0 // pred_fallthru
    _
  %p12 = scmp.eq.s32.totalorder 0, 0
  // Predicated region
  $region10: #{clip_img_encoder_forward.14} parent=0 // pred_check
    %p13 = pneg %p12
  $region11: #{clip_img_encoder_forward.14} parent=0 // pred_check_branch
    %15 = sbr.rel (%p13) target = $region13
  $region12: #{clip_img_encoder_forward.14} parent=0 // pred_region
    %16 = vst [vmem:[#allocation2] sm:$0xff] 0.0
    %17 = vst [vmem:[#allocation2 + $0x8] sm:$0xff] 0.0
    %18 = vst [vmem:[#allocation2 + $0x10] sm:$0xff] 0.0
    %19 = vst [vmem:[#allocation2 + $0x18] sm:$0xff] 0.0
  $region13: #{clip_img_encoder_forward.14} parent=0 // pred_fallthru
    _
  %v20 = vld [vmem:[%s0] sm:$0xff]
  %v21 = vld [vmem:[%s0 + $0x8] sm:$0xff]
  %v22 = vld [vmem:[%s0 + $0x10] sm:$0xff]
  %v23 = vld [vmem:[%s0 + $0x18] sm:$0xff]
  %v24 = vld [vmem:[#allocation2] sm:$0xff]
  %v25 = vld [vmem:[#allocation2 + $0x8] sm:$0xff]
  %v26 = vld [vmem:[#allocation2 + $0x10] sm:$0xff]
  %v27 = vld [vmem:[#allocation2 + $0x18] sm:$0xff]
  %v28 = vld [vmem:[%s1] sm:$0xf]
  %v29 = vld [vmem:[%s1 + $0x4] sm:$0xf]
  %v30 = vld [vmem:[%s1 + $0x8] sm:$0xf]
  %v31 = vld [vmem:[%s1 + $0xc] sm:$0xf]
  %v32 = vld [vmem:[%s1 + $0x10] sm:$0xf]
  %v33 = vld [vmem:[%s1 + $0x14] sm:$0xf]
  %v34 = vld [vmem:[%s1 + $0x18] sm:$0xf]
  %v35 = vld [vmem:[%s1 + $0x1c] sm:$0xf]
  %v36 = vld [vmem:[%s1 + $0x20] sm:$0xf]
  %v37 = vld [vmem:[%s1 + $0x24] sm:$0xf]
  %v38 = vld [vmem:[%s1 + $0x28] sm:$0xf]
  %v39 = vld [vmem:[%s1 + $0x2c] sm:$0xf]
  %v40 = vld [vmem:[%s1 + $0x30] sm:$0xf]
  %v41 = vld [vmem:[%s1 + $0x34] sm:$0xf]
  %v42 = vld [vmem:[%s1 + $0x38] sm:$0xf]
  %v43 = vld [vmem:[%s1 + $0x3c] sm:$0xf]
  %v44 = vld [vmem:[%s1 + $0x40] sm:$0xf]
  %v45 = vld [vmem:[%s1 + $0x44] sm:$0xf]
  %v46 = vld [vmem:[%s1 + $0x48] sm:$0xf]
  %v47 = vld [vmem:[%s1 + $0x4c] sm:$0xf]
  %v48 = vld [vmem:[%s1 + $0x50] sm:$0xf]
  %v49 = vld [vmem:[%s1 + $0x54] sm:$0xf]
  %v50 = vld [vmem:[%s1 + $0x58] sm:$0xf]
  %v51 = vld [vmem:[%s1 + $0x5c] sm:$0xf]
  %v56 = vunpack.c.l.b16 %v20
  %v57 = vunpack.c.h.b16 %v20
  %v58 = vunpack.c.l.b16 %v21
  %v59 = vunpack.c.h.b16 %v21
  %v60 = vunpack.c.l.b16 %v22
  %v61 = vunpack.c.h.b16 %v22
  %v62 = vunpack.c.l.b16 %v23
  %v63 = vunpack.c.h.b16 %v23
  %v64 = vpack.c.b16 %v58, %v56
  %v65 = vpack.c.b16 %v59, %v57
  %v66 = vpack.c.b16 %v62, %v60
  %v67 = vpack.c.b16 %v63, %v61
  %v94 = vunpack.c.l.b16 %v28
  %v95 = vunpack.c.l.b16 %v29
  %v96 = vunpack.c.l.b16 %v30
  %v97 = vunpack.c.l.b16 %v31
  %v98 = vunpack.c.l.b16 %v32
  %v99 = vunpack.c.l.b16 %v33
  %v100 = vunpack.c.l.b16 %v34
  %v101 = vunpack.c.l.b16 %v35
  %v102 = vunpack.c.l.b16 %v36
  %v103 = vunpack.c.l.b16 %v37
  %v104 = vunpack.c.l.b16 %v38
  %v105 = vunpack.c.l.b16 %v39
  %v106 = vunpack.c.l.b16 %v40
  %v107 = vunpack.c.l.b16 %v41
  %v108 = vunpack.c.l.b16 %v42
  %v109 = vunpack.c.l.b16 %v43
  %v110 = vunpack.c.l.b16 %v44
  %v111 = vunpack.c.l.b16 %v45
  %v112 = vunpack.c.l.b16 %v46
  %v113 = vunpack.c.l.b16 %v47
  %v114 = vunpack.c.l.b16 %v48
  %v115 = vunpack.c.l.b16 %v49
  %v116 = vunpack.c.l.b16 %v50
  %v117 = vunpack.c.l.b16 %v51
  %v118 = vpack.c.b16 %v95, %v94
  %v119 = vpack.c.b16 %v97, %v96
  %v120 = vpack.c.b16 %v99, %v98
  %v121 = vpack.c.b16 %v101, %v100
  %v122 = vpack.c.b16 %v103, %v102
  %v123 = vpack.c.b16 %v105, %v104
  %v124 = vpack.c.b16 %v107, %v106
  %v125 = vpack.c.b16 %v109, %v108
  %v126 = vpack.c.b16 %v111, %v110
  %v127 = vpack.c.b16 %v113, %v112
  %v128 = vpack.c.b16 %v115, %v114
  %v129 = vpack.c.b16 %v117, %v116
  %vm142 = vcmask 523264
  %v144 = vsel %vm142, %v65, 0
  %v147 = vsel %vm142, %v67, 0
  %149 = vmatprep.subr.bf16.mxu0 0
  %150 = vmatpush1.bf16.msra.mxu0 %v118
  %151 = vmatprep.subr.bf16.mxu0 0
  %152 = vmatpush1.bf16.msra.mxu0 %v119
  %153 = vmatprep.subr.bf16.mxu0 0
  %154 = vmatpush1.bf16.msra.mxu0 %v120
  %155 = vmatprep.subr.bf16.mxu0 0
  %156 = vmatpush1.bf16.msra.mxu0 %v121
  %157 = vmatprep.subr.bf16.mxu0 0
  %158 = vmatpush1.bf16.msra.mxu0 %v122
  %159 = vmatprep.subr.bf16.mxu0 0
  %160 = vmatpush1.bf16.msra.mxu0 %v123
  %161 = vmatprep.subr.bf16.mxu0 0
  %162 = vmatpush1.bf16.msra.mxu0 %v124
  %163 = vmatprep.subr.bf16.mxu0 0
  %164 = vmatpush1.bf16.msra.mxu0 %v125
  %165 = vmatprep.subr.bf16.mxu0 0
  %166 = vmatpush1.bf16.msra.mxu0 %v126
  %167 = vmatprep.subr.bf16.mxu0 0
  %168 = vmatpush1.bf16.msra.mxu0 %v127
  %169 = vmatprep.subr.bf16.mxu0 0
  %170 = vmatpush1.bf16.msra.mxu0 %v128
  %171 = vmatprep.subr.bf16.mxu0 0
  %172 = vmatpush1.bf16.msra.mxu0 %v129
  %173 = vmatprep.subr.bf16.mxu0 0
  %174 = vmatpush1.bf16.msra.mxu0 0
  %175 = vmatprep.subr.bf16.mxu0 0
  %176 = vmatpush1.bf16.msra.mxu0 0
  %177 = vmatprep.subr.bf16.mxu0 0
  %178 = vmatpush1.bf16.msra.mxu0 0
  %179 = vmatprep.subr.bf16.mxu0 0
  %180 = vmatpush1.bf16.msra.mxu0 0
  %181 = vmatprep.mubr.bf16.mxu0 %v144
  %182 = vmatmul.mubr.bf16.gmra.mrb[0].mxu0 %v64
  %v183 = vpop.f32.mrb[0].mxu0
  %v184 = vadd.f32 0.0, %v183
  %v185 = vpop.f32.mrb[0].mxu0
  %v186 = vpop.f32.mrb[0].mxu0
  %v187 = vadd.f32 0.0, %v186
  %v188 = vpop.f32.mrb[0].mxu0
  %189 = vmatprep.mubr.bf16.mxu0 %v147
  %190 = vmatmul.mubr.bf16.gmra.mrb[0].mxu0 %v66
  %v191 = vpop.f32.mrb[0].mxu0
  %v192 = vadd.f32 0.0, %v191
  %v193 = vpop.f32.mrb[0].mxu0
  %v194 = vpop.f32.mrb[0].mxu0
  %v195 = vadd.f32 0.0, %v194
  %v196 = vpop.f32.mrb[0].mxu0
  %197 = vdwg.mxu0
  %v198 = vadd.f32 %v24, %v184
  %v199 = vadd.f32 %v25, %v187
  %v200 = vadd.f32 %v26, %v192
  %v201 = vadd.f32 %v27, %v195
  %202 = vst [vmem:[#allocation2] sm:$0xff] %v198
  %203 = vst [vmem:[#allocation2 + $0x8] sm:$0xff] %v199
  %204 = vst [vmem:[#allocation2 + $0x10] sm:$0xff] %v200
  %205 = vst [vmem:[#allocation2 + $0x18] sm:$0xff] %v201
  // Predicated region
  $region14: #{clip_img_encoder_forward.14} parent=0 // pred_check
    %p206 = pneg %p12
  $region15: #{clip_img_encoder_forward.14} parent=0 // pred_check_branch
    %208 = sbr.rel (%p206) target = $region17
  $region16: #{clip_img_encoder_forward.14} parent=0 // pred_region
    %v209 = vld [vmem:[#allocation2] sm:$0xff]
    %v210 = vld [vmem:[#allocation2 + $0x8] sm:$0xff]
    %v211 = vld [vmem:[#allocation2 + $0x10] sm:$0xff]
    %v212 = vld [vmem:[#allocation2 + $0x18] sm:$0xff]
    %213 = vst [vmem:[%s2] sm:$0xff] %v209
    %214 = vst [vmem:[%s2 + $0x8] sm:$0xff] %v210
    %215 = vst [vmem:[%s2 + $0x10] sm:$0xff] %v211
    %216 = vst [vmem:[%s2 + $0x18] sm:$0xff] %v212
  $region17: #{clip_img_encoder_forward.14} parent=0 // pred_fallthru
    _
  // Predicated region
  $region18: #{clip_img_encoder_forward.14} parent=0 // pred_check
    _
  $region19: #{clip_img_encoder_forward.14} parent=0 // pred_check_branch
    %218 = sbr.rel (0) target = $region21
  $region20: #{clip_img_encoder_forward.14} parent=0 // pred_region
    _
  $region21: #{clip_img_encoder_forward.14} parent=0 // pred_fallthru
    _
  // Predicated region
  $region22: #{clip_img_encoder_forward.14} parent=0 // pred_check
    _
  $region23: #{clip_img_encoder_forward.14} parent=0 // pred_check_branch
    %220 = sbr.rel (0) target = $region25
  $region24: #{clip_img_encoder_forward.14} parent=0 // pred_region
    _
  $region25: #{clip_img_encoder_forward.14} parent=0 // pred_fallthru
    _

// kernel: clip_img_encoder_forward.16
$region0: #{clip_img_encoder_forward.16}
  #allocation0 [shape = 'u32[]', space=smem, size = 0x4, offset = 0x4, fixed_abs, tag = 'smem constant byte address 0x4 - core index']
  #allocation1 [shape = 'u32[144,128]{1,0:T(1,128)}', space=vmem, size = 0x12000, scoped, tag = 'internal scratch']
  #allocation2 [shape = 'f32[34,384]{1,0:T(8,128)}', space=vmem, size = 0xf000, scoped, tag = 'scratch operand']
  %s0 = inlined_call_operand.vmem [shape: f32[34,128], index: 0, kind: input, shape index: {}]
  %s1 = inlined_call_operand.vmem [shape: f32[1,128], index: 1, kind: input, shape index: {}]
  %s2 = inlined_call_operand.vmem [shape: f32[1,128], index: 2, kind: input, shape index: {}]
  %s3 = inlined_call_operand.vmem [shape: bf16[128,384], index: 3, kind: input, shape index: {}]
  %s4 = inlined_call_operand.vmem [shape: f32[1,384], index: 4, kind: input, shape index: {}]
  %s5 = inlined_call_operand.vmem [shape: bf16[34,384], index: 5, kind: output, shape index: {}]
  %s6 = sld [smem:[#allocation0]]
  $region38: #{clip_img_encoder_forward.16} parent=0
    _
  %s8 = ssub.s32 1, %s6
  %s9 = scalar_select 0, %s8, %s6
  // Predicated region
  $region2: #{clip_img_encoder_forward.16} parent=0 // pred_check
    _
  $region3: #{clip_img_encoder_forward.16} parent=0 // pred_check_branch
    %11 = sbr.rel (0) target = $region5
  $region4: #{clip_img_encoder_forward.16} parent=0 // pred_region
    _
  $region5: #{clip_img_encoder_forward.16} parent=0 // pred_fallthru
    _
  // Predicated region
  $region6: #{clip_img_encoder_forward.16} parent=0 // pred_check
    _
  $region7: #{clip_img_encoder_forward.16} parent=0 // pred_check_branch
    %13 = sbr.rel (0) target = $region9
  $region8: #{clip_img_encoder_forward.16} parent=0 // pred_region
    _
  $region9: #{clip_img_encoder_forward.16} parent=0 // pred_fallthru
    _
  // Predicated region
  $region10: #{clip_img_encoder_forward.16} parent=0 // pred_check
    _
  $region11: #{clip_img_encoder_forward.16} parent=0 // pred_check_branch
    %15 = sbr.rel (0) target = $region13
  $region12: #{clip_img_encoder_forward.16} parent=0 // pred_region
    _
  $region13: #{clip_img_encoder_forward.16} parent=0 // pred_fallthru
    _
  // Predicated region
  $region14: #{clip_img_encoder_forward.16} parent=0 // pred_check
    _
  $region15: #{clip_img_encoder_forward.16} parent=0 // pred_check_branch
    %17 = sbr.rel (0) target = $region17
  $region16: #{clip_img_encoder_forward.16} parent=0 // pred_region
    _
  $region17: #{clip_img_encoder_forward.16} parent=0 // pred_fallthru
    _
  // Predicated region
  $region18: #{clip_img_encoder_forward.16} parent=0 // pred_check
    _
  $region19: #{clip_img_encoder_forward.16} parent=0 // pred_check_branch
    %19 = sbr.rel (0) target = $region21
  $region20: #{clip_img_encoder_forward.16} parent=0 // pred_region
    _
  $region21: #{clip_img_encoder_forward.16} parent=0 // pred_fallthru
    _
  %p21 = scmp.eq.s32.totalorder 0, 0
  // Predicated region
  $region22: #{clip_img_encoder_forward.16} parent=0 // pred_check
    %p22 = pneg %p21
  $region23: #{clip_img_encoder_forward.16} parent=0 // pred_check_branch
    %24 = sbr.rel (%p22) target = $region25
  $region24: #{clip_img_encoder_forward.16} parent=0 // pred_region
    %25 = vst [vmem:[#allocation2] sm:$0xff] 0.0
    %26 = vst [vmem:[#allocation2 + $0x8] sm:$0xff] 0.0
    %27 = vst [vmem:[#allocation2 + $0x10] sm:$0xff] 0.0
    %28 = vst [vmem:[#allocation2 + $0x18] sm:$0xff] 0.0
    %29 = vst [vmem:[#allocation2 + $0x20] sm:$0xff] 0.0
    %30 = vst [vmem:[#allocation2 + $0x28] sm:$0xff] 0.0
    %31 = vst [vmem:[#allocation2 + $0x30] sm:$0xff] 0.0
    %32 = vst [vmem:[#allocation2 + $0x38] sm:$0xff] 0.0
    %33 = vst [vmem:[#allocation2 + $0x40] sm:$0xff] 0.0
    %34 = vst [vmem:[#allocation2 + $0x48] sm:$0xff] 0.0
    %35 = vst [vmem:[#allocation2 + $0x50] sm:$0xff] 0.0
    %36 = vst [vmem:[#allocation2 + $0x58] sm:$0xff] 0.0
    %37 = vst [vmem:[#allocation2 + $0x60] sm:$0x3] 0.0
    %38 = vst [vmem:[#allocation2 + $0x68] sm:$0x3] 0.0
    %39 = vst [vmem:[#allocation2 + $0x70] sm:$0x3] 0.0
  $region25: #{clip_img_encoder_forward.16} parent=0 // pred_fallthru
    _
  %v40 = vld [vmem:[%s0] sm:$0xff]
  %v41 = vld [vmem:[%s0 + $0x8] sm:$0xff]
  %v42 = vld [vmem:[%s0 + $0x10] sm:$0xff]
  %v43 = vld [vmem:[%s0 + $0x18] sm:$0xff]
  %v44 = vld [vmem:[%s0 + $0x20] sm:$0x3]
  %45 = vadd.xlane.f32.xlu0 %v40
  %v46 = vpop.xlane.xlu0 %45
  %47 = vadd.xlane.f32.xlu0 %v41
  %v48 = vpop.xlane.xlu0 %47
  %49 = vadd.xlane.f32.xlu0 %v42
  %v50 = vpop.xlane.xlu0 %49
  %51 = vadd.xlane.f32.xlu0 %v43
  %v52 = vpop.xlane.xlu0 %51
  %vm53 = vcmask 1041408
  %v54 = vsel %vm53, %v44, 0.0
  %55 = vadd.xlane.f32.xlu0 %v54
  %v56 = vpop.xlane.xlu0 %55
  %v57 = vrcp.pop 128.0
  %v58 = vmul.f32 %v46, %v57
  %v59 = vmul.f32 %v48, %v57
  %v60 = vmul.f32 %v50, %v57
  %v61 = vmul.f32 %v52, %v57
  %v62 = vmul.f32 %v56, %v57
  %v63 = vsub.f32 %v40, %v58
  %v64 = vsub.f32 %v41, %v59
  %v65 = vsub.f32 %v42, %v60
  %v66 = vsub.f32 %v43, %v61
  %v67 = vsub.f32 %v44, %v62
  %v68 = vmul.f32 %v63, %v63
  %v69 = vmul.f32 %v64, %v64
  %v70 = vmul.f32 %v65, %v65
  %v71 = vmul.f32 %v66, %v66
  %v72 = vmul.f32 %v67, %v67
  %73 = vadd.xlane.f32.xlu0 %v68
  %v74 = vpop.xlane.xlu0 %73
  %75 = vadd.xlane.f32.xlu0 %v69
  %v76 = vpop.xlane.xlu0 %75
  %77 = vadd.xlane.f32.xlu0 %v70
  %v78 = vpop.xlane.xlu0 %77
  %79 = vadd.xlane.f32.xlu0 %v71
  %v80 = vpop.xlane.xlu0 %79
  %v81 = vsel %vm53, %v72, 0.0
  %82 = vadd.xlane.f32.xlu0 %v81
  %v83 = vpop.xlane.xlu0 %82
  %v84 = vmul.f32 %v74, %v57
  %v85 = vmul.f32 %v76, %v57
  %v86 = vmul.f32 %v78, %v57
  %v87 = vmul.f32 %v80, %v57
  %v88 = vmul.f32 %v83, %v57
  %v89 = vadd.f32 %v84, 1e-05
  %v90 = vadd.f32 %v85, 1e-05
  %v91 = vadd.f32 %v86, 1e-05
  %v92 = vadd.f32 %v87, 1e-05
  %v93 = vadd.f32 %v88, 1e-05
  %v94 = vrsqrt.pop %v89
  %v95 = vrsqrt.pop %v90
  %v96 = vrsqrt.pop %v91
  %v97 = vrsqrt.pop %v92
  %v98 = vrsqrt.pop %v93
  %v99 = vmul.f32 %v63, %v94
  %v100 = vmul.f32 %v64, %v95
  %v101 = vmul.f32 %v65, %v96
  %v102 = vmul.f32 %v66, %v97
  %v103 = vmul.f32 %v67, %v98
  %v104 = vld [vmem:[%s1] sm:$0x1]
  %v106 = vlaneseq
  %v107 = vshrl.u32 %v106, 7
  %v108 = vsub.s32 0, %v107
  %v109 = vrot.slane %v104, %v108
  %v111 = vmul.f32 %v99, %v109
  %v112 = vmul.f32 %v100, %v109
  %v113 = vmul.f32 %v101, %v109
  %v114 = vmul.f32 %v102, %v109
  %v115 = vmul.f32 %v103, %v109
  %v116 = vld [vmem:[%s2] sm:$0x1]
  %v118 = vlaneseq
  %v119 = vshrl.u32 %v118, 7
  %v120 = vsub.s32 0, %v119
  %v121 = vrot.slane %v116, %v120
  %v123 = vadd.f32 %v111, %v121
  %v124 = vadd.f32 %v112, %v121
  %v125 = vadd.f32 %v113, %v121
  %v126 = vadd.f32 %v114, %v121
  %v127 = vadd.f32 %v115, %v121
  %v128 = vpack.c.bf16 %v124, %v123
  %v129 = vpack.c.bf16 %v126, %v125
  %v130 = vpack.c.bf16 %v127, %v127
  %v131 = vld [vmem:[#allocation2] sm:$0xff]
  %v132 = vld [vmem:[#allocation2 + $0x8] sm:$0xff]
  %v133 = vld [vmem:[#allocation2 + $0x10] sm:$0xff]
  %v134 = vld [vmem:[#allocation2 + $0x18] sm:$0xff]
  %v135 = vld [vmem:[#allocation2 + $0x20] sm:$0xff]
  %v136 = vld [vmem:[#allocation2 + $0x28] sm:$0xff]
  %v137 = vld [vmem:[#allocation2 + $0x30] sm:$0xff]
  %v138 = vld [vmem:[#allocation2 + $0x38] sm:$0xff]
  %v139 = vld [vmem:[#allocation2 + $0x40] sm:$0xff]
  %v140 = vld [vmem:[#allocation2 + $0x48] sm:$0xff]
  %v141 = vld [vmem:[#allocation2 + $0x50] sm:$0xff]
  %v142 = vld [vmem:[#allocation2 + $0x58] sm:$0xff]
  %v143 = vld [vmem:[#allocation2 + $0x60] sm:$0x3]
  %v144 = vld [vmem:[#allocation2 + $0x68] sm:$0x3]
  %v145 = vld [vmem:[#allocation2 + $0x70] sm:$0x3]
  %v146 = vld [vmem:[%s3] sm:$0xff]
  %v147 = vld [vmem:[%s3 + $0x8] sm:$0xf]
  %v148 = vld [vmem:[%s3 + $0xc] sm:$0xff]
  %v149 = vld [vmem:[%s3 + $0x14] sm:$0xf]
  %v150 = vld [vmem:[%s3 + $0x18] sm:$0xff]
  %v151 = vld [vmem:[%s3 + $0x20] sm:$0xf]
  %v152 = vld [vmem:[%s3 + $0x24] sm:$0xff]
  %v153 = vld [vmem:[%s3 + $0x2c] sm:$0xf]
  %v154 = vld [vmem:[%s3 + $0x30] sm:$0xff]
  %v155 = vld [vmem:[%s3 + $0x38] sm:$0xf]
  %v156 = vld [vmem:[%s3 + $0x3c] sm:$0xff]
  %v157 = vld [vmem:[%s3 + $0x44] sm:$0xf]
  %v158 = vld [vmem:[%s3 + $0x48] sm:$0xff]
  %v159 = vld [vmem:[%s3 + $0x50] sm:$0xf]
  %v160 = vld [vmem:[%s3 + $0x54] sm:$0xff]
  %v161 = vld [vmem:[%s3 + $0x5c] sm:$0xf]
  %v162 = vld [vmem:[%s3 + $0x60] sm:$0xff]
  %v163 = vld [vmem:[%s3 + $0x68] sm:$0xf]
  %v164 = vld [vmem:[%s3 + $0x6c] sm:$0xff]
  %v165 = vld [vmem:[%s3 + $0x74] sm:$0xf]
  %v166 = vld [vmem:[%s3 + $0x78] sm:$0xff]
  %v167 = vld [vmem:[%s3 + $0x80] sm:$0xf]
  %v168 = vld [vmem:[%s3 + $0x84] sm:$0xff]
  %v169 = vld [vmem:[%s3 + $0x8c] sm:$0xf]
  %v170 = vld [vmem:[%s3 + $0x90] sm:$0xff]
  %v171 = vld [vmem:[%s3 + $0x98] sm:$0xf]
  %v172 = vld [vmem:[%s3 + $0x9c] sm:$0xff]
  %v173 = vld [vmem:[%s3 + $0xa4] sm:$0xf]
  %v174 = vld [vmem:[%s3 + $0xa8] sm:$0xff]
  %v175 = vld [vmem:[%s3 + $0xb0] sm:$0xf]
  %v176 = vld [vmem:[%s3 + $0xb4] sm:$0xff]
  %v177 = vld [vmem:[%s3 + $0xbc] sm:$0xf]
  %v210 = vunpack.c.l.b16 %v146
  %v211 = vunpack.c.h.b16 %v146
  %v212 = vunpack.c.l.b16 %v147
  %v213 = vunpack.c.l.b16 %v148
  %v214 = vunpack.c.h.b16 %v148
  %v215 = vunpack.c.l.b16 %v149
  %v216 = vunpack.c.l.b16 %v150
  %v217 = vunpack.c.h.b16 %v150
  %v218 = vunpack.c.l.b16 %v151
  %v219 = vunpack.c.l.b16 %v152
  %v220 = vunpack.c.h.b16 %v152
  %v221 = vunpack.c.l.b16 %v153
  %v222 = vunpack.c.l.b16 %v154
  %v223 = vunpack.c.h.b16 %v154
  %v224 = vunpack.c.l.b16 %v155
  %v225 = vunpack.c.l.b16 %v156
  %v226 = vunpack.c.h.b16 %v156
  %v227 = vunpack.c.l.b16 %v157
  %v228 = vunpack.c.l.b16 %v158
  %v229 = vunpack.c.h.b16 %v158
  %v230 = vunpack.c.l.b16 %v159
  %v231 = vunpack.c.l.b16 %v160
  %v232 = vunpack.c.h.b16 %v160
  %v233 = vunpack.c.l.b16 %v161
  %v234 = vunpack.c.l.b16 %v162
  %v235 = vunpack.c.h.b16 %v162
  %v236 = vunpack.c.l.b16 %v163
  %v237 = vunpack.c.l.b16 %v164
  %v238 = vunpack.c.h.b16 %v164
  %v239 = vunpack.c.l.b16 %v165
  %v240 = vunpack.c.l.b16 %v166
  %v241 = vunpack.c.h.b16 %v166
  %v242 = vunpack.c.l.b16 %v167
  %v243 = vunpack.c.l.b16 %v168
  %v244 = vunpack.c.h.b16 %v168
  %v245 = vunpack.c.l.b16 %v169
  %v246 = vunpack.c.l.b16 %v170
  %v247 = vunpack.c.h.b16 %v170
  %v248 = vunpack.c.l.b16 %v171
  %v249 = vunpack.c.l.b16 %v172
  %v250 = vunpack.c.h.b16 %v172
  %v251 = vunpack.c.l.b16 %v173
  %v252 = vunpack.c.l.b16 %v174
  %v253 = vunpack.c.h.b16 %v174
  %v254 = vunpack.c.l.b16 %v175
  %v255 = vunpack.c.l.b16 %v176
  %v256 = vunpack.c.h.b16 %v176
  %v257 = vunpack.c.l.b16 %v177
  %v258 = vpack.c.b16 %v213, %v210
  %v259 = vpack.c.b16 %v214, %v211
  %v260 = vpack.c.b16 %v215, %v212
  %v261 = vpack.c.b16 %v219, %v216
  %v262 = vpack.c.b16 %v220, %v217
  %v263 = vpack.c.b16 %v221, %v218
  %v264 = vpack.c.b16 %v225, %v222
  %v265 = vpack.c.b16 %v226, %v223
  %v266 = vpack.c.b16 %v227, %v224
  %v267 = vpack.c.b16 %v231, %v228
  %v268 = vpack.c.b16 %v232, %v229
  %v269 = vpack.c.b16 %v233, %v230
  %v270 = vpack.c.b16 %v237, %v234
  %v271 = vpack.c.b16 %v238, %v235
  %v272 = vpack.c.b16 %v239, %v236
  %v273 = vpack.c.b16 %v243, %v240
  %v274 = vpack.c.b16 %v244, %v241
  %v275 = vpack.c.b16 %v245, %v242
  %v276 = vpack.c.b16 %v249, %v246
  %v277 = vpack.c.b16 %v250, %v247
  %v278 = vpack.c.b16 %v251, %v248
  %v279 = vpack.c.b16 %v255, %v252
  %v280 = vpack.c.b16 %v256, %v253
  %v281 = vpack.c.b16 %v257, %v254
  %306 = vmatprep.subr.bf16.mxu0 %v259
  %307 = vmatpush1.bf16.msra.mxu0 %v258
  %308 = vmatprep.subr.bf16.mxu0 %v262
  %309 = vmatpush1.bf16.msra.mxu0 %v261
  %310 = vmatprep.subr.bf16.mxu0 %v265
  %311 = vmatpush1.bf16.msra.mxu0 %v264
  %312 = vmatprep.subr.bf16.mxu0 %v268
  %313 = vmatpush1.bf16.msra.mxu0 %v267
  %314 = vmatprep.subr.bf16.mxu0 %v271
  %315 = vmatpush1.bf16.msra.mxu0 %v270
  %316 = vmatprep.subr.bf16.mxu0 %v274
  %317 = vmatpush1.bf16.msra.mxu0 %v273
  %318 = vmatprep.subr.bf16.mxu0 %v277
  %319 = vmatpush1.bf16.msra.mxu0 %v276
  %320 = vmatprep.subr.bf16.mxu0 %v280
  %321 = vmatpush1.bf16.msra.mxu0 %v279
  %322 = vmatprep.subr.bf16.mxu0 0
  %323 = vmatpush1.bf16.msra.mxu0 0
  %324 = vmatprep.subr.bf16.mxu0 0
  %325 = vmatpush1.bf16.msra.mxu0 0
  %326 = vmatprep.subr.bf16.mxu0 0
  %327 = vmatpush1.bf16.msra.mxu0 0
  %328 = vmatprep.subr.bf16.mxu0 0
  %329 = vmatpush1.bf16.msra.mxu0 0
  %330 = vmatprep.subr.bf16.mxu0 0
  %331 = vmatpush1.bf16.msra.mxu0 0
  %332 = vmatprep.subr.bf16.mxu0 0
  %333 = vmatpush1.bf16.msra.mxu0 0
  %334 = vmatprep.subr.bf16.mxu0 0
  %335 = vmatpush1.bf16.msra.mxu0 0
  %336 = vmatprep.subr.bf16.mxu0 0
  %337 = vmatpush1.bf16.msra.mxu0 0
  %338 = vmatprep.mubr.bf16.mxu0 0
  %339 = vmatmul.mubr.bf16.gmra.mrb[0].mxu0 %v128
  %v340 = vpop.f32.mrb[0].mxu0
  %v341 = vadd.f32 0.0, %v340
  %v342 = vpop.f32.mrb[0].mxu0
  %v343 = vadd.f32 0.0, %v342
  %v344 = vpop.f32.mrb[0].mxu0
  %v345 = vadd.f32 0.0, %v344
  %v346 = vpop.f32.mrb[0].mxu0
  %v347 = vadd.f32 0.0, %v346
  %348 = vmatprep.mubr.bf16.mxu0 0
  %349 = vmatmul.mubr.bf16.gmra.mrb[0].mxu0 %v129
  %v350 = vpop.f32.mrb[0].mxu0
  %v351 = vadd.f32 0.0, %v350
  %v352 = vpop.f32.mrb[0].mxu0
  %v353 = vadd.f32 0.0, %v352
  %v354 = vpop.f32.mrb[0].mxu0
  %v355 = vadd.f32 0.0, %v354
  %v356 = vpop.f32.mrb[0].mxu0
  %v357 = vadd.f32 0.0, %v356
  %358 = vmatprep.mubr.bf16.mxu0 0
  %359 = vmatmul.mubr.bf16.gmra.mrb[0].mxu0 %v130
  %v360 = vpop.f32.mrb[0].mxu0
  %v361 = vadd.f32 0.0, %v360
  %v362 = vpop.f32.mrb[0].mxu0
  %v363 = vadd.f32 0.0, %v362
  %v364 = vpop.f32.mrb[0].mxu0
  %v365 = vpop.f32.mrb[0].mxu0
  %366 = vdwg.mxu0
  %367 = vmatprep.subr.bf16.mxu0 0
  %368 = vmatpush1.bf16.msra.mxu0 %v260
  %369 = vmatprep.subr.bf16.mxu0 0
  %370 = vmatpush1.bf16.msra.mxu0 %v263
  %371 = vmatprep.subr.bf16.mxu0 0
  %372 = vmatpush1.bf16.msra.mxu0 %v266
  %373 = vmatprep.subr.bf16.mxu0 0
  %374 = vmatpush1.bf16.msra.mxu0 %v269
  %375 = vmatprep.subr.bf16.mxu0 0
  %376 = vmatpush1.bf16.msra.mxu0 %v272
  %377 = vmatprep.subr.bf16.mxu0 0
  %378 = vmatpush1.bf16.msra.mxu0 %v275
  %379 = vmatprep.subr.bf16.mxu0 0
  %380 = vmatpush1.bf16.msra.mxu0 %v278
  %381 = vmatprep.subr.bf16.mxu0 0
  %382 = vmatpush1.bf16.msra.mxu0 %v281
  %383 = vmatprep.subr.bf16.mxu0 0
  %384 = vmatpush1.bf16.msra.mxu0 0
  %385 = vmatprep.subr.bf16.mxu0 0
  %386 = vmatpush1.bf16.msra.mxu0 0
  %387 = vmatprep.subr.bf16.mxu0 0
  %388 = vmatpush1.bf16.msra.mxu0 0
  %389 = vmatprep.subr.bf16.mxu0 0
  %390 = vmatpush1.bf16.msra.mxu0 0
  %391 = vmatprep.subr.bf16.mxu0 0
  %392 = vmatpush1.bf16.msra.mxu0 0
  %393 = vmatprep.subr.bf16.mxu0 0
  %394 = vmatpush1.bf16.msra.mxu0 0
  %395 = vmatprep.subr.bf16.mxu0 0
  %396 = vmatpush1.bf16.msra.mxu0 0
  %397 = vmatprep.subr.bf16.mxu0 0
  %398 = vmatpush1.bf16.msra.mxu0 0
  %399 = vmatprep.mubr.bf16.mxu0 0
  %400 = vmatmul.mubr.bf16.gmra.mrb[0].mxu0 %v128
  %v401 = vpop.f32.mrb[0].mxu0
  %v402 = vadd.f32 0.0, %v401
  %v403 = vpop.f32.mrb[0].mxu0
  %v404 = vpop.f32.mrb[0].mxu0
  %v405 = vadd.f32 0.0, %v404
  %v406 = vpop.f32.mrb[0].mxu0
  %407 = vmatprep.mubr.bf16.mxu0 0
  %408 = vmatmul.mubr.bf16.gmra.mrb[0].mxu0 %v129
  %v409 = vpop.f32.mrb[0].mxu0
  %v410 = vadd.f32 0.0, %v409
  %v411 = vpop.f32.mrb[0].mxu0
  %v412 = vpop.f32.mrb[0].mxu0
  %v413 = vadd.f32 0.0, %v412
  %v414 = vpop.f32.mrb[0].mxu0
  %415 = vmatprep.mubr.bf16.mxu0 0
  %416 = vmatmul.mubr.bf16.gmra.mrb[0].mxu0 %v130
  %v417 = vpop.f32.mrb[0].mxu0
  %v418 = vadd.f32 0.0, %v417
  %v419 = vpop.f32.mrb[0].mxu0
  %v420 = vpop.f32.mrb[0].mxu0
  %v421 = vpop.f32.mrb[0].mxu0
  %422 = vdwg.mxu0
  %v423 = vadd.f32 %v131, %v341
  %v424 = vadd.f32 %v132, %v343
  %v425 = vadd.f32 %v133, %v402
  %v426 = vadd.f32 %v134, %v345
  %v427 = vadd.f32 %v135, %v347
  %v428 = vadd.f32 %v136, %v405
  %v429 = vadd.f32 %v137, %v351
  %v430 = vadd.f32 %v138, %v353
  %v431 = vadd.f32 %v139, %v410
  %v432 = vadd.f32 %v140, %v355
  %v433 = vadd.f32 %v141, %v357
  %v434 = vadd.f32 %v142, %v413
  %v435 = vadd.f32 %v143, %v361
  %v436 = vadd.f32 %v144, %v363
  %v437 = vadd.f32 %v145, %v418
  %438 = vst [vmem:[#allocation2] sm:$0xff] %v423
  %439 = vst [vmem:[#allocation2 + $0x8] sm:$0xff] %v424
  %440 = vst [vmem:[#allocation2 + $0x10] sm:$0xff] %v425
  %441 = vst [vmem:[#allocation2 + $0x18] sm:$0xff] %v426
  %442 = vst [vmem:[#allocation2 + $0x20] sm:$0xff] %v427
  %443 = vst [vmem:[#allocation2 + $0x28] sm:$0xff] %v428
  %444 = vst [vmem:[#allocation2 + $0x30] sm:$0xff] %v429
  %445 = vst [vmem:[#allocation2 + $0x38] sm:$0xff] %v430
  %446 = vst [vmem:[#allocation2 + $0x40] sm:$0xff] %v431
  %447 = vst [vmem:[#allocation2 + $0x48] sm:$0xff] %v432
  %448 = vst [vmem:[#allocation2 + $0x50] sm:$0xff] %v433
  %449 = vst [vmem:[#allocation2 + $0x58] sm:$0xff] %v434
  %450 = vst [vmem:[#allocation2 + $0x60] sm:$0x3] %v435
  %451 = vst [vmem:[#allocation2 + $0x68] sm:$0x3] %v436
  %452 = vst [vmem:[#allocation2 + $0x70] sm:$0x3] %v437
  // Predicated region
  $region26: #{clip_img_encoder_forward.16} parent=0 // pred_check
    %p453 = pneg %p21
  $region27: #{clip_img_encoder_forward.16} parent=0 // pred_check_branch
    %455 = sbr.rel (%p453) target = $region29
  $region28: #{clip_img_encoder_forward.16} parent=0 // pred_region
    %v456 = vld [vmem:[#allocation2] sm:$0xff]
    %v457 = vld [vmem:[#allocation2 + $0x8] sm:$0xff]
    %v458 = vld [vmem:[#allocation2 + $0x10] sm:$0xff]
    %v459 = vld [vmem:[#allocation2 + $0x18] sm:$0xff]
    %v460 = vld [vmem:[#allocation2 + $0x20] sm:$0xff]
    %v461 = vld [vmem:[#allocation2 + $0x28] sm:$0xff]
    %v462 = vld [vmem:[#allocation2 + $0x30] sm:$0xff]
    %v463 = vld [vmem:[#allocation2 + $0x38] sm:$0xff]
    %v464 = vld [vmem:[#allocation2 + $0x40] sm:$0xff]
    %v465 = vld [vmem:[#allocation2 + $0x48] sm:$0xff]
    %v466 = vld [vmem:[#allocation2 + $0x50] sm:$0xff]
    %v467 = vld [vmem:[#allocation2 + $0x58] sm:$0xff]
    %v468 = vld [vmem:[#allocation2 + $0x60] sm:$0x3]
    %v469 = vld [vmem:[#allocation2 + $0x68] sm:$0x3]
    %v470 = vld [vmem:[#allocation2 + $0x70] sm:$0x3]
    %v471 = vld [vmem:[%s4] sm:$0x7]
    %v473 = vlaneseq
    %v474 = vshrl.u32 %v473, 7
    %v475 = vsub.s32 0, %v474
    %v476 = vrot.slane %v471, %v475
    %v477 = vlaneseq
    %v478 = vshrl.u32 %v477, 7
    %v479 = vsub.s32 1, %v478
    %v480 = vrot.slane %v471, %v479
    %v481 = vlaneseq
    %v482 = vshrl.u32 %v481, 7
    %v483 = vsub.s32 2, %v482
    %v484 = vrot.slane %v471, %v483
    %v488 = vadd.f32 %v456, %v476
    %v489 = vadd.f32 %v457, %v480
    %v490 = vadd.f32 %v458, %v484
    %v491 = vadd.f32 %v459, %v476
    %v492 = vadd.f32 %v460, %v480
    %v493 = vadd.f32 %v461, %v484
    %v494 = vadd.f32 %v462, %v476
    %v495 = vadd.f32 %v463, %v480
    %v496 = vadd.f32 %v464, %v484
    %v497 = vadd.f32 %v465, %v476
    %v498 = vadd.f32 %v466, %v480
    %v499 = vadd.f32 %v467, %v484
    %v500 = vadd.f32 %v468, %v476
    %v501 = vadd.f32 %v469, %v480
    %v502 = vadd.f32 %v470, %v484
    %v503 = vpack.c.bf16 %v491, %v488
    %v504 = vpack.c.bf16 %v492, %v489
    %v505 = vpack.c.bf16 %v493, %v490
    %v506 = vpack.c.bf16 %v497, %v494
    %v507 = vpack.c.bf16 %v498, %v495
    %v508 = vpack.c.bf16 %v499, %v496
    %v509 = vpack.c.bf16 %v500, %v500
    %v510 = vpack.c.bf16 %v501, %v501
    %v511 = vpack.c.bf16 %v502, %v502
    %v521 = vunpack.c.l.b16 %v503
    %v522 = vunpack.c.l.b16 %v504
    %v523 = vunpack.c.l.b16 %v505
    %v524 = vunpack.c.h.b16 %v503
    %v525 = vunpack.c.h.b16 %v504
    %v526 = vunpack.c.h.b16 %v505
    %v527 = vunpack.c.l.b16 %v506
    %v528 = vunpack.c.l.b16 %v507
    %v529 = vunpack.c.l.b16 %v508
    %v530 = vunpack.c.h.b16 %v506
    %v531 = vunpack.c.h.b16 %v507
    %v532 = vunpack.c.h.b16 %v508
    %v533 = vunpack.c.l.b16 %v509
    %v534 = vunpack.c.l.b16 %v510
    %v535 = vunpack.c.l.b16 %v511
    %v536 = vpack.c.b16 %v522, %v521
    %v537 = vpack.c.b16 %v523, %v523
    %v538 = vpack.c.b16 %v525, %v524
    %v539 = vpack.c.b16 %v526, %v526
    %v540 = vpack.c.b16 %v528, %v527
    %v541 = vpack.c.b16 %v529, %v529
    %v542 = vpack.c.b16 %v531, %v530
    %v543 = vpack.c.b16 %v532, %v532
    %v544 = vpack.c.b16 %v534, %v533
    %v545 = vpack.c.b16 %v535, %v535
    %556 = vst [vmem:[%s5] sm:$0xff] %v536
    %557 = vst [vmem:[%s5 + $0x8] sm:$0xf] %v537
    %558 = vst [vmem:[%s5 + $0xc] sm:$0xff] %v538
    %559 = vst [vmem:[%s5 + $0x14] sm:$0xf] %v539
    %560 = vst [vmem:[%s5 + $0x18] sm:$0xff] %v540
    %561 = vst [vmem:[%s5 + $0x20] sm:$0xf] %v541
    %562 = vst [vmem:[%s5 + $0x24] sm:$0xff] %v542
    %563 = vst [vmem:[%s5 + $0x2c] sm:$0xf] %v543
    %564 = vst [vmem:[%s5 + $0x30] sm:$0x11] %v544
    %565 = vst [vmem:[%s5 + $0x38] sm:$0x1] %v545
  $region29: #{clip_img_encoder_forward.16} parent=0 // pred_fallthru
    _
  // Predicated region
  $region30: #{clip_img_encoder_forward.16} parent=0 // pred_check
    _
  $region31: #{clip_img_encoder_forward.16} parent=0 // pred_check_branch
    %567 = sbr.rel (0) target = $region33
  $region32: #{clip_img_encoder_forward.16} parent=0 // pred_region
    _
  $region33: #{clip_img_encoder_forward.16} parent=0 // pred_fallthru
    _
  // Predicated region
  $region34: #{clip_img_encoder_forward.16} parent=0 // pred_check
    _
  $region35: #{clip_img_encoder_forward.16} parent=0 // pred_check_branch
    %569 = sbr.rel (0) target = $region37
  $region36: #{clip_img_encoder_forward.16} parent=0 // pred_region
    _
  $region37: #{clip_img_encoder_forward.16} parent=0 // pred_fallthru
    _

// kernel: clip_img_encoder_forward.17
$region0: #{clip_img_encoder_forward.17}
  #allocation0 [shape = 'u32[]', space=smem, size = 0x4, offset = 0x4, fixed_abs, tag = 'smem constant byte address 0x4 - core index']
  #allocation1 [shape = 'u32[144,128]{1,0:T(1,128)}', space=vmem, size = 0x12000, scoped, tag = 'internal scratch']
  %s0 = inlined_call_operand.vmem [shape: bf16[8,17,32], index: 0, kind: input, shape index: {}]
  %s1 = inlined_call_operand.vmem [shape: bf16[8,17,32], index: 1, kind: input, shape index: {}]
  %s2 = inlined_call_operand.vmem [shape: bf16[8,17,32], index: 2, kind: input, shape index: {}]
  %s3 = inlined_call_operand.vmem [shape: bf16[8,17,32], index: 3, kind: output, shape index: {}]
  %s4 = sld [smem:[#allocation0]]
  $region45: #{clip_img_encoder_forward.17} parent=0
    _
  %s6 = ssub.s32 1, %s4
  %s7 = scalar_select 0, %s6, %s4
  loop: start=0, step=1, limit=10
  $region2: #{clip_img_encoder_forward.17} parent=0 // loop_pre_header
    _
  $region3: #{clip_img_encoder_forward.17} parent=0 // loop_header
    %s9 = sphi 0, %s13
    %p10 = scmp.ge.s32.totalorder %s9, 10
    %s19 = sphi 0, %s21
    %s22 = sphi 0, %s19
    %s23 = sphi 0, %s22
    %s39 = sphi 0, %s23
    %s45 = sphi 0, %s47
    %s48 = sphi 0, %s45
    %s49 = sphi 0, %s48
    %s65 = sphi 0, %s49
    %s71 = sphi 0, %s73
    %s74 = sphi 0, %s71
    %s75 = sphi 0, %s74
    %s91 = sphi 0, %s75
    %s97 = sphi 0, %s99
    %s100 = sphi 0, %s97
    %s101 = sphi 0, %s100
    %s117 = sphi 0, %s101
  $region4: #{clip_img_encoder_forward.17} parent=0 // loop_header_branch
    %12 = sbr.rel (%p10) target = $region8
  $region5: #{clip_img_encoder_forward.17} parent=0 // loop_body
    %s14 = ssub.s32 %s9, 1
    %s15 = ssub.s32 %s9, 2
    %s16 = sadd.s32 %s9, 1
    %s17 = ssub.s32 %s9, %s16
    %p18 = scmp.eq.s32.totalorder %s17, 0
    %s20 = sadd.s32 %s19, 1
    %s21 = scalar_select %p18, %s19, %s20
    %p24 = pneg %p18
    %p25 = scmp.eq.s32.totalorder %s9, 7
    %p26 = por %p24, %p25
    %p27 = scmp.ne.s32.totalorder %s19, %s22
    %p28 = scmp.eq.s32.totalorder %s9, 0
    %p29 = por %p27, %p28
    %p30 = scmp.ne.s32.totalorder %s19, %s22
    %p31 = scmp.eq.s32.totalorder %s14, 7
    %p32 = por %p30, %p31
    %p33 = scmp.ne.s32.totalorder %s22, %s23
    %p34 = scmp.eq.s32.totalorder %s14, 0
    %p35 = por %p33, %p34
    %p36 = scmp.ne.s32.totalorder %s22, %s23
    %p37 = scmp.eq.s32.totalorder %s15, 7
    %p38 = por %p36, %p37
    %p40 = scmp.ne.s32.totalorder %s23, %s39
    %p41 = scmp.eq.s32.totalorder %s15, 0
    %p42 = por %p40, %p41
    %s43 = ssub.s32 %s9, %s16
    %p44 = scmp.eq.s32.totalorder %s43, 0
    %s46 = sadd.s32 %s45, 1
    %s47 = scalar_select %p44, %s45, %s46
    %p50 = pneg %p44
    %p51 = scmp.eq.s32.totalorder %s9, 7
    %p52 = por %p50, %p51
    %p53 = scmp.ne.s32.totalorder %s45, %s48
    %p54 = scmp.eq.s32.totalorder %s9, 0
    %p55 = por %p53, %p54
    %p56 = scmp.ne.s32.totalorder %s45, %s48
    %p57 = scmp.eq.s32.totalorder %s14, 7
    %p58 = por %p56, %p57
    %p59 = scmp.ne.s32.totalorder %s48, %s49
    %p60 = scmp.eq.s32.totalorder %s14, 0
    %p61 = por %p59, %p60
    %p62 = scmp.ne.s32.totalorder %s48, %s49
    %p63 = scmp.eq.s32.totalorder %s15, 7
    %p64 = por %p62, %p63
    %p66 = scmp.ne.s32.totalorder %s49, %s65
    %p67 = scmp.eq.s32.totalorder %s15, 0
    %p68 = por %p66, %p67
    %s69 = ssub.s32 %s9, %s16
    %p70 = scmp.eq.s32.totalorder %s69, 0
    %s72 = sadd.s32 %s71, 1
    %s73 = scalar_select %p70, %s71, %s72
    %p76 = pneg %p70
    %p77 = scmp.eq.s32.totalorder %s9, 7
    %p78 = por %p76, %p77
    %p79 = scmp.ne.s32.totalorder %s71, %s74
    %p80 = scmp.eq.s32.totalorder %s9, 0
    %p81 = por %p79, %p80
    %p82 = scmp.ne.s32.totalorder %s71, %s74
    %p83 = scmp.eq.s32.totalorder %s14, 7
    %p84 = por %p82, %p83
    %p85 = scmp.ne.s32.totalorder %s74, %s75
    %p86 = scmp.eq.s32.totalorder %s14, 0
    %p87 = por %p85, %p86
    %p88 = scmp.ne.s32.totalorder %s74, %s75
    %p89 = scmp.eq.s32.totalorder %s15, 7
    %p90 = por %p88, %p89
    %p92 = scmp.ne.s32.totalorder %s75, %s91
    %p93 = scmp.eq.s32.totalorder %s15, 0
    %p94 = por %p92, %p93
    %s95 = ssub.s32 %s9, %s16
    %p96 = scmp.eq.s32.totalorder %s95, 0
    %s98 = sadd.s32 %s97, 1
    %s99 = scalar_select %p96, %s97, %s98
    %p102 = pneg %p96
    %p103 = scmp.eq.s32.totalorder %s9, 7
    %p104 = por %p102, %p103
    %p105 = scmp.ne.s32.totalorder %s97, %s100
    %p106 = scmp.eq.s32.totalorder %s9, 0
    %p107 = por %p105, %p106
    %p108 = scmp.ne.s32.totalorder %s97, %s100
    %p109 = scmp.eq.s32.totalorder %s14, 7
    %p110 = por %p108, %p109
    %p111 = scmp.ne.s32.totalorder %s100, %s101
    %p112 = scmp.eq.s32.totalorder %s14, 0
    %p113 = por %p111, %p112
    %p114 = scmp.ne.s32.totalorder %s100, %s101
    %p115 = scmp.eq.s32.totalorder %s15, 7
    %p116 = por %p114, %p115
    %p118 = scmp.ne.s32.totalorder %s101, %s117
    %p119 = scmp.eq.s32.totalorder %s15, 0
    %p120 = por %p118, %p119
    %p121 = scmp.le.s32.totalorder 1, %s9
    %p122 = scmp.lt.s32.totalorder %s9, 9
    %p123 = pnand %p121, %p122
    %p124 = pneg %p123
    // Predicated region
    $region9: #{clip_img_encoder_forward.17} parent=5 // pred_check
      _
    $region10: #{clip_img_encoder_forward.17} parent=5 // pred_check_branch
      %126 = sbr.rel (%p123) target = $region12
    $region11: #{clip_img_encoder_forward.17} parent=5 // pred_region
      %s127 = ssub.s32 %s9, 1
    $region12: #{clip_img_encoder_forward.17} parent=5 // pred_fallthru
      _
    %p128 = scmp.lt.s32.totalorder %s9, 8
    // Predicated region
    $region13: #{clip_img_encoder_forward.17} parent=5 // pred_check
      %p129 = pneg %p128
    $region14: #{clip_img_encoder_forward.17} parent=5 // pred_check_branch
      %131 = sbr.rel (%p129) target = $region16
    $region15: #{clip_img_encoder_forward.17} parent=5 // pred_region
      // Predicated region
      $region17: #{clip_img_encoder_forward.17} parent=15 // pred_check
        %p132 = pneg %p29
      $region18: #{clip_img_encoder_forward.17} parent=15 // pred_check_branch
        %134 = sbr.rel (%p132) target = $region20
      $region19: #{clip_img_encoder_forward.17} parent=15 // pred_region
        %p135 = scmp.lt.s32.totalorder %s9, 7
        %s136 = scalar_select %p135, %s9, 7
        %s137 = smul.addr %s136, 3
        %s138 = smul.addr %s137, 4
        %s139 = scalar_lea.vmem %s0, %s138
      $region20: #{clip_img_encoder_forward.17} parent=15 // pred_fallthru
        _
      // Predicated region
      $region21: #{clip_img_encoder_forward.17} parent=15 // pred_check
        %p140 = pneg %p55
      $region22: #{clip_img_encoder_forward.17} parent=15 // pred_check_branch
        %142 = sbr.rel (%p140) target = $region24
      $region23: #{clip_img_encoder_forward.17} parent=15 // pred_region
        %p143 = scmp.lt.s32.totalorder %s9, 7
        %s144 = scalar_select %p143, %s9, 7
        %s145 = smul.addr %s144, 3
        %s146 = smul.addr %s145, 4
        %s147 = scalar_lea.vmem %s1, %s146
      $region24: #{clip_img_encoder_forward.17} parent=15 // pred_fallthru
        _
      // Predicated region
      $region25: #{clip_img_encoder_forward.17} parent=15 // pred_check
        %p148 = pneg %p81
      $region26: #{clip_img_encoder_forward.17} parent=15 // pred_check_branch
        %150 = sbr.rel (%p148) target = $region28
      $region27: #{clip_img_encoder_forward.17} parent=15 // pred_region
        %p151 = scmp.lt.s32.totalorder %s9, 7
        %s152 = scalar_select %p151, %s9, 7
        %s153 = smul.addr %s152, 3
        %s154 = smul.addr %s153, 4
        %s155 = scalar_lea.vmem %s2, %s154
      $region28: #{clip_img_encoder_forward.17} parent=15 // pred_fallthru
        _
    $region16: #{clip_img_encoder_forward.17} parent=5 // pred_fallthru
      _
    %p156 = scmp.le.s32.totalorder 1, %s9
    %p157 = scmp.lt.s32.totalorder %s9, 9
    %p158 = pnand %p156, %p157
    %p159 = pneg %p158
    // Predicated region
    $region29: #{clip_img_encoder_forward.17} parent=5 // pred_check
      _
    $region30: #{clip_img_encoder_forward.17} parent=5 // pred_check_branch
      %161 = sbr.rel (%p158) target = $region32
    $region31: #{clip_img_encoder_forward.17} parent=5 // pred_region
      %s162 = ssub.s32 %s9, 1
      %p163 = scmp.lt.s32.totalorder %s14, 7
      %s164 = scalar_select %p163, %s14, 7
      %s165 = smul.addr %s164, 3
      %s166 = smul.addr %s165, 4
      %s167 = scalar_lea.vmem %s0, %s166
      %p168 = pneg %p35
      %p169 = pneg %p32
      %p170 = scmp.lt.s32.totalorder %s14, 7
      %s171 = scalar_select %p170, %s14, 7
      %s172 = smul.addr %s171, 3
      %s173 = smul.addr %s172, 4
      %s174 = scalar_lea.vmem %s1, %s173
      %p175 = pneg %p61
      %p176 = pneg %p58
      %p177 = scmp.lt.s32.totalorder %s14, 7
      %s178 = scalar_select %p177, %s14, 7
      %s179 = smul.addr %s178, 3
      %s180 = smul.addr %s179, 4
      %s181 = scalar_lea.vmem %s2, %s180
      %p182 = pneg %p87
      %p183 = pneg %p84
      %p184 = pneg %p113
      %p185 = pneg %p110
      %p186 = scmp.lt.s32.totalorder %s14, 7
      %s187 = scalar_select %p186, %s14, 7
      %s188 = smul.addr %s187, 3
      %s189 = smul.addr %s188, 4
      %s190 = scalar_lea.vmem %s3, %s189
      %p191 = scmp.lt.s32.totalorder %s14, 7
      %s192 = scalar_select %p191, %s14, 7
      %s193 = smul.addr %s192, 3
      %s194 = smul.addr %s193, 4
      %s195 = scalar_lea.vmem %s0, %s194
      %p196 = scmp.lt.s32.totalorder %s14, 7
      %s197 = scalar_select %p196, %s14, 7
      %s198 = smul.addr %s197, 3
      %s199 = smul.addr %s198, 4
      %s200 = scalar_lea.vmem %s1, %s199
      %p201 = scmp.lt.s32.totalorder %s14, 7
      %s202 = scalar_select %p201, %s14, 7
      %s203 = smul.addr %s202, 3
      %s204 = smul.addr %s203, 4
      %s205 = scalar_lea.vmem %s2, %s204
      %p206 = scmp.lt.s32.totalorder %s14, 7
      %s207 = scalar_select %p206, %s14, 7
      %s208 = smul.addr %s207, 3
      %s209 = smul.addr %s208, 4
      %s210 = scalar_lea.vmem %s3, %s209
      %v212 = vld [vmem:[%s195] sm:$0xf]
      %v213 = vld [vmem:[%s195 + $0x4] sm:$0xf]
      %v214 = vld [vmem:[%s195 + $0x8] sm:$0x1]
      %v215 = vld [vmem:[%s200] sm:$0xf]
      %v216 = vld [vmem:[%s200 + $0x4] sm:$0xf]
      %v217 = vld [vmem:[%s200 + $0x8] sm:$0x1]
      %v218 = vld [vmem:[%s205] sm:$0xf]
      %v219 = vld [vmem:[%s205 + $0x4] sm:$0xf]
      %v220 = vld [vmem:[%s205 + $0x8] sm:$0x1]
      %v224 = vunpack.c.l.b16 %v212
      %v225 = vunpack.c.l.b16 %v213
      %v226 = vunpack.c.l.b16 %v214
      %v227 = vpack.c.b16 %v225, %v224
      %v228 = vpack.c.b16 %v226, %v226
      %v232 = vunpack.c.l.b16 %v215
      %v233 = vunpack.c.l.b16 %v216
      %v234 = vunpack.c.l.b16 %v217
      %v235 = vpack.c.b16 %v233, %v232
      %v236 = vpack.c.b16 %v234, %v234
      %vm237 = vcmask 261120
      %v239 = vsel %vm237, %v227, 0
      %v242 = vsel %vm237, %v228, 0
      %v245 = vsel %vm237, %v235, 0
      %v248 = vsel %vm237, %v236, 0
      %250 = vmatprep.subr.bf16.mxu0 0
      %251 = vmatpush1.bf16.xpose.msra.mxu0 %v245
      %252 = vmatprep.subr.bf16.mxu0 0
      %253 = vmatpush1.bf16.xpose.msra.mxu0 %v248
      %254 = vmatprep.subr.bf16.mxu0 0
      %255 = vmatpush1.bf16.xpose.msra.mxu0 0
      %256 = vmatprep.subr.bf16.mxu0 0
      %257 = vmatpush1.bf16.xpose.msra.mxu0 0
      %258 = vmatprep.subr.bf16.mxu0 0
      %259 = vmatpush1.bf16.xpose.msra.mxu0 0
      %260 = vmatprep.subr.bf16.mxu0 0
      %261 = vmatpush1.bf16.xpose.msra.mxu0 0
      %262 = vmatprep.subr.bf16.mxu0 0
      %263 = vmatpush1.bf16.xpose.msra.mxu0 0
      %264 = vmatprep.subr.bf16.mxu0 0
      %265 = vmatpush1.bf16.xpose.msra.mxu0 0
      %266 = vmatprep.subr.bf16.mxu0 0
      %267 = vmatpush1.bf16.xpose.msra.mxu0 0
      %268 = vmatprep.subr.bf16.mxu0 0
      %269 = vmatpush1.bf16.xpose.msra.mxu0 0
      %270 = vmatprep.subr.bf16.mxu0 0
      %271 = vmatpush1.bf16.xpose.msra.mxu0 0
      %272 = vmatprep.subr.bf16.mxu0 0
      %273 = vmatpush1.bf16.xpose.msra.mxu0 0
      %274 = vmatprep.subr.bf16.mxu0 0
      %275 = vmatpush1.bf16.xpose.msra.mxu0 0
      %276 = vmatprep.subr.bf16.mxu0 0
      %277 = vmatpush1.bf16.xpose.msra.mxu0 0
      %278 = vmatprep.subr.bf16.mxu0 0
      %279 = vmatpush1.bf16.xpose.msra.mxu0 0
      %280 = vmatprep.subr.bf16.mxu0 0
      %281 = vmatpush1.bf16.xpose.msra.mxu0 0
      %282 = vmatprep.mubr.bf16.mxu0 0
      %283 = vmatmul.mubr.bf16.gmra.mrb[0].mxu0 %v239
      %v284 = vpop.f32.mrb[0].mxu0
      %v285 = vadd.f32 0.0, %v284
      %v286 = vpop.f32.mrb[0].mxu0
      %v287 = vpop.f32.mrb[0].mxu0
      %v288 = vadd.f32 0.0, %v287
      %v289 = vpop.f32.mrb[0].mxu0
      %290 = vmatprep.mubr.bf16.mxu0 0
      %291 = vmatmul.mubr.bf16.gmra.mrb[0].mxu0 %v242
      %v292 = vpop.f32.mrb[0].mxu0
      %v293 = vadd.f32 0.0, %v292
      %v294 = vpop.f32.mrb[0].mxu0
      %v295 = vpop.f32.mrb[0].mxu0
      %v296 = vpop.f32.mrb[0].mxu0
      %297 = vdwg.mxu0
      %v298 = vmul.f32 %v285, 0.17677669
      %v299 = vmul.f32 %v288, 0.17677669
      %v300 = vmul.f32 %v293, 0.17677669
      %vm301 = vcmask 138240
      %v302 = vsel %vm301, %v298, -inf
      %303 = vmax.xlane.f32.xlu0 %v302
      %v304 = vpop.xlane.xlu0 %303
      %v305 = vsel %vm301, %v299, -inf
      %306 = vmax.xlane.f32.xlu0 %v305
      %v307 = vpop.xlane.xlu0 %306
      %vm308 = vcmask 131072
      %v309 = vsel %vm308, %v300, -inf
      %310 = vmax.xlane.f32.xlu0 %v309
      %v311 = vpop.xlane.xlu0 %310
      %v312 = vsub.f32 %v298, %v304
      %v313 = vsub.f32 %v299, %v307
      %v314 = vsub.f32 %v300, %v311
      %v315 = vmul.f32 %v312, 1.442695
      %v316 = vpow.pop %v315
      %v317 = vmul.f32 %v313, 1.442695
      %v318 = vpow.pop %v317
      %v319 = vmul.f32 %v314, 1.442695
      %v320 = vpow.pop %v319
      %v321 = vsel %vm301, %v316, 0.0
      %322 = vadd.xlane.f32.xlu0 %v321
      %v323 = vpop.xlane.xlu0 %322
      %v324 = vsel %vm301, %v318, 0.0
      %325 = vadd.xlane.f32.xlu0 %v324
      %v326 = vpop.xlane.xlu0 %325
      %v327 = vsel %vm308, %v320, 0.0
      %328 = vadd.xlane.f32.xlu0 %v327
      %v329 = vpop.xlane.xlu0 %328
      %v330 = vrcp.pop %v323
      %v331 = vrcp.pop %v326
      %v332 = vrcp.pop %v329
      %v333 = vmul.f32 %v316, %v330
      %v334 = vmul.f32 %v318, %v331
      %v335 = vmul.f32 %v320, %v332
      %v336 = vpack.c.bf16 %v334, %v333
      %v337 = vpack.c.bf16 %v335, %v335
      %v341 = vunpack.c.l.b16 %v218
      %v342 = vunpack.c.l.b16 %v219
      %v343 = vunpack.c.l.b16 %v220
      %v344 = vpack.c.b16 %v342, %v341
      %v345 = vpack.c.b16 %v343, %v343
      %v348 = vsel %vm301, %v336, 0
      %v351 = vsel %vm301, %v337, 0
      %vm353 = vcmask 1040384
      %v354 = vsel 0, 4294967295, 65535
      %v355 = vsel %vm353, %v354, 0
      %v357 = vand.u32 %v345, %v355
      %359 = vmatprep.subr.bf16.mxu0 0
      %360 = vmatpush1.bf16.msra.mxu0 %v344
      %361 = vmatprep.subr.bf16.mxu0 0
      %362 = vmatpush1.bf16.msra.mxu0 %v357
      %363 = vmatprep.subr.bf16.mxu0 0
      %364 = vmatpush1.bf16.msra.mxu0 0
      %365 = vmatprep.subr.bf16.mxu0 0
      %366 = vmatpush1.bf16.msra.mxu0 0
      %367 = vmatprep.subr.bf16.mxu0 0
      %368 = vmatpush1.bf16.msra.mxu0 0
      %369 = vmatprep.subr.bf16.mxu0 0
      %370 = vmatpush1.bf16.msra.mxu0 0
      %371 = vmatprep.subr.bf16.mxu0 0
      %372 = vmatpush1.bf16.msra.mxu0 0
      %373 = vmatprep.subr.bf16.mxu0 0
      %374 = vmatpush1.bf16.msra.mxu0 0
      %375 = vmatprep.subr.bf16.mxu0 0
      %376 = vmatpush1.bf16.msra.mxu0 0
      %377 = vmatprep.subr.bf16.mxu0 0
      %378 = vmatpush1.bf16.msra.mxu0 0
      %379 = vmatprep.subr.bf16.mxu0 0
      %380 = vmatpush1.bf16.msra.mxu0 0
      %381 = vmatprep.subr.bf16.mxu0 0
      %382 = vmatpush1.bf16.msra.mxu0 0
      %383 = vmatprep.subr.bf16.mxu0 0
      %384 = vmatpush1.bf16.msra.mxu0 0
      %385 = vmatprep.subr.bf16.mxu0 0
      %386 = vmatpush1.bf16.msra.mxu0 0
      %387 = vmatprep.subr.bf16.mxu0 0
      %388 = vmatpush1.bf16.msra.mxu0 0
      %389 = vmatprep.subr.bf16.mxu0 0
      %390 = vmatpush1.bf16.msra.mxu0 0
      %391 = vmatprep.mubr.bf16.mxu0 0
      %392 = vmatmul.mubr.bf16.gmra.mrb[0].mxu0 %v348
      %v393 = vpop.f32.mrb[0].mxu0
      %v394 = vadd.f32 0.0, %v393
      %v395 = vpop.f32.mrb[0].mxu0
      %v396 = vpop.f32.mrb[0].mxu0
      %v397 = vadd.f32 0.0, %v396
      %v398 = vpop.f32.mrb[0].mxu0
      %399 = vmatprep.mubr.bf16.mxu0 0
      %400 = vmatmul.mubr.bf16.gmra.mrb[0].mxu0 %v351
      %v401 = vpop.f32.mrb[0].mxu0
      %v402 = vadd.f32 0.0, %v401
      %v403 = vpop.f32.mrb[0].mxu0
      %v404 = vpop.f32.mrb[0].mxu0
      %v405 = vpop.f32.mrb[0].mxu0
      %406 = vdwg.mxu0
      %v407 = vpack.c.bf16 %v397, %v394
      %v408 = vpack.c.bf16 %v402, %v402
      %v411 = vunpack.c.l.b16 %v407
      %v412 = vunpack.c.h.b16 %v407
      %v413 = vunpack.c.l.b16 %v408
      %v414 = vpack.c.b16 %v411, %v411
      %v415 = vpack.c.b16 %v412, %v412
      %v416 = vpack.c.b16 %v413, %v413
      %vm420 = vcmask 257024
      %421 = vst.msk [vmem:[%s210] sm:$0xf] %vm420, %v414
      %422 = vst.msk [vmem:[%s210 + $0x4] sm:$0xf] %vm420, %v415
      %vm423 = vcmask 253952
      %vm424 = vsmask.f32 256
      %vm425 = vmand %vm423, %vm424
      %v426 = vld [vmem:[%s210 + $0x8] sm:$0x1]
      %v427 = vsel %vm425, %v416, %v426
      %428 = vst [vmem:[%s210 + $0x8] sm:$0x1] %v427
      %p429 = scmp.lt.s32.totalorder %s14, 7
      %s430 = scalar_select %p429, %s14, 7
      %s431 = smul.addr %s430, 3
      %s432 = smul.addr %s431, 4
      %s433 = scalar_lea.vmem %s3, %s432
      // Predicated region
      $region33: #{clip_img_encoder_forward.17} parent=31 // pred_check
        %p434 = pneg %p110
      $region34: #{clip_img_encoder_forward.17} parent=31 // pred_check_branch
        %436 = sbr.rel (%p434) target = $region36
      $region35: #{clip_img_encoder_forward.17} parent=31 // pred_region
        _
      $region36: #{clip_img_encoder_forward.17} parent=31 // pred_fallthru
        _
    $region32: #{clip_img_encoder_forward.17} parent=5 // pred_fallthru
      _
    %p437 = scmp.le.s32.totalorder 2, %s9
    // Predicated region
    $region37: #{clip_img_encoder_forward.17} parent=5 // pred_check
      %p438 = pneg %p437
    $region38: #{clip_img_encoder_forward.17} parent=5 // pred_check_branch
      %440 = sbr.rel (%p438) target = $region40
    $region39: #{clip_img_encoder_forward.17} parent=5 // pred_region
      %s441 = ssub.s32 %s9, 2
      // Predicated region
      $region41: #{clip_img_encoder_forward.17} parent=39 // pred_check
        %p442 = pneg %p116
      $region42: #{clip_img_encoder_forward.17} parent=39 // pred_check_branch
        %444 = sbr.rel (%p442) target = $region44
      $region43: #{clip_img_encoder_forward.17} parent=39 // pred_region
        %p445 = scmp.lt.s32.totalorder %s15, 7
        %s446 = scalar_select %p445, %s15, 7
        %s447 = smul.addr %s446, 3
        %s448 = smul.addr %s447, 4
        %s449 = scalar_lea.vmem %s3, %s448
      $region44: #{clip_img_encoder_forward.17} parent=39 // pred_fallthru
        _
    $region40: #{clip_img_encoder_forward.17} parent=5 // pred_fallthru
      _
  $region6: #{clip_img_encoder_forward.17} parent=0 // loop_footer
    %s13 = sadd.s32 1, %s9
  $region7: #{clip_img_encoder_forward.17} parent=0 // loop_footer_branch
    %8 = sbr.rel target = $region3
  $region8: #{clip_img_encoder_forward.17} parent=0 // loop_exit
    _

// kernel: clip_img_encoder_forward.18
$region0: #{clip_img_encoder_forward.18}
  #allocation0 [shape = 'u32[]', space=smem, size = 0x4, offset = 0x4, fixed_abs, tag = 'smem constant byte address 0x4 - core index']
  #allocation1 [shape = 'u32[144,128]{1,0:T(1,128)}', space=vmem, size = 0x12000, scoped, tag = 'internal scratch']
  #allocation2 [shape = 'f32[34,128]{1,0:T(8,128)}', space=vmem, size = 0x5000, scoped, tag = 'scratch operand']
  %s0 = inlined_call_operand.vmem [shape: bf16[34,128], index: 0, kind: input, shape index: {}]
  %s1 = inlined_call_operand.vmem [shape: bf16[128,128], index: 1, kind: input, shape index: {}]
  %s2 = inlined_call_operand.vmem [shape: f32[1,128], index: 2, kind: input, shape index: {}]
  %s3 = inlined_call_operand.vmem [shape: f32[34,128], index: 3, kind: input, shape index: {}]
  %s4 = inlined_call_operand.vmem [shape: f32[34,128], index: 4, kind: output, shape index: {}]
  %s5 = sld [smem:[#allocation0]]
  $region34: #{clip_img_encoder_forward.18} parent=0
    _
  %s7 = ssub.s32 1, %s5
  %s8 = scalar_select 0, %s7, %s5
  // Predicated region
  $region2: #{clip_img_encoder_forward.18} parent=0 // pred_check
    _
  $region3: #{clip_img_encoder_forward.18} parent=0 // pred_check_branch
    %10 = sbr.rel (0) target = $region5
  $region4: #{clip_img_encoder_forward.18} parent=0 // pred_region
    _
  $region5: #{clip_img_encoder_forward.18} parent=0 // pred_fallthru
    _
  // Predicated region
  $region6: #{clip_img_encoder_forward.18} parent=0 // pred_check
    _
  $region7: #{clip_img_encoder_forward.18} parent=0 // pred_check_branch
    %12 = sbr.rel (0) target = $region9
  $region8: #{clip_img_encoder_forward.18} parent=0 // pred_region
    _
  $region9: #{clip_img_encoder_forward.18} parent=0 // pred_fallthru
    _
  // Predicated region
  $region10: #{clip_img_encoder_forward.18} parent=0 // pred_check
    _
  $region11: #{clip_img_encoder_forward.18} parent=0 // pred_check_branch
    %14 = sbr.rel (0) target = $region13
  $region12: #{clip_img_encoder_forward.18} parent=0 // pred_region
    _
  $region13: #{clip_img_encoder_forward.18} parent=0 // pred_fallthru
    _
  // Predicated region
  $region14: #{clip_img_encoder_forward.18} parent=0 // pred_check
    _
  $region15: #{clip_img_encoder_forward.18} parent=0 // pred_check_branch
    %16 = sbr.rel (0) target = $region17
  $region16: #{clip_img_encoder_forward.18} parent=0 // pred_region
    _
  $region17: #{clip_img_encoder_forward.18} parent=0 // pred_fallthru
    _
  %p18 = scmp.eq.s32.totalorder 0, 0
  // Predicated region
  $region18: #{clip_img_encoder_forward.18} parent=0 // pred_check
    %p19 = pneg %p18
  $region19: #{clip_img_encoder_forward.18} parent=0 // pred_check_branch
    %21 = sbr.rel (%p19) target = $region21
  $region20: #{clip_img_encoder_forward.18} parent=0 // pred_region
    %22 = vst [vmem:[#allocation2] sm:$0xff] 0.0
    %23 = vst [vmem:[#allocation2 + $0x8] sm:$0xff] 0.0
    %24 = vst [vmem:[#allocation2 + $0x10] sm:$0xff] 0.0
    %25 = vst [vmem:[#allocation2 + $0x18] sm:$0xff] 0.0
    %26 = vst [vmem:[#allocation2 + $0x20] sm:$0x3] 0.0
  $region21: #{clip_img_encoder_forward.18} parent=0 // pred_fallthru
    _
  %v27 = vld [vmem:[%s0] sm:$0xf]
  %v28 = vld [vmem:[%s0 + $0x4] sm:$0xf]
  %v29 = vld [vmem:[%s0 + $0x8] sm:$0xf]
  %v30 = vld [vmem:[%s0 + $0xc] sm:$0xf]
  %v31 = vld [vmem:[%s0 + $0x10] sm:$0x1]
  %v32 = vld [vmem:[#allocation2] sm:$0xff]
  %v33 = vld [vmem:[#allocation2 + $0x8] sm:$0xff]
  %v34 = vld [vmem:[#allocation2 + $0x10] sm:$0xff]
  %v35 = vld [vmem:[#allocation2 + $0x18] sm:$0xff]
  %v36 = vld [vmem:[#allocation2 + $0x20] sm:$0x3]
  %v37 = vld [vmem:[%s1] sm:$0xf]
  %v38 = vld [vmem:[%s1 + $0x4] sm:$0xf]
  %v39 = vld [vmem:[%s1 + $0x8] sm:$0xf]
  %v40 = vld [vmem:[%s1 + $0xc] sm:$0xf]
  %v41 = vld [vmem:[%s1 + $0x10] sm:$0xf]
  %v42 = vld [vmem:[%s1 + $0x14] sm:$0xf]
  %v43 = vld [vmem:[%s1 + $0x18] sm:$0xf]
  %v44 = vld [vmem:[%s1 + $0x1c] sm:$0xf]
  %v45 = vld [vmem:[%s1 + $0x20] sm:$0xf]
  %v46 = vld [vmem:[%s1 + $0x24] sm:$0xf]
  %v47 = vld [vmem:[%s1 + $0x28] sm:$0xf]
  %v48 = vld [vmem:[%s1 + $0x2c] sm:$0xf]
  %v49 = vld [vmem:[%s1 + $0x30] sm:$0xf]
  %v50 = vld [vmem:[%s1 + $0x34] sm:$0xf]
  %v51 = vld [vmem:[%s1 + $0x38] sm:$0xf]
  %v52 = vld [vmem:[%s1 + $0x3c] sm:$0xf]
  %v58 = vunpack.c.l.b16 %v27
  %v59 = vunpack.c.l.b16 %v28
  %v60 = vunpack.c.l.b16 %v29
  %v61 = vunpack.c.l.b16 %v30
  %v62 = vunpack.c.l.b16 %v31
  %v63 = vpack.c.b16 %v59, %v58
  %v64 = vpack.c.b16 %v61, %v60
  %v65 = vpack.c.b16 %v62, %v62
  %v85 = vunpack.c.l.b16 %v37
  %v86 = vunpack.c.l.b16 %v38
  %v87 = vunpack.c.l.b16 %v39
  %v88 = vunpack.c.l.b16 %v40
  %v89 = vunpack.c.l.b16 %v41
  %v90 = vunpack.c.l.b16 %v42
  %v91 = vunpack.c.l.b16 %v43
  %v92 = vunpack.c.l.b16 %v44
  %v93 = vunpack.c.l.b16 %v45
  %v94 = vunpack.c.l.b16 %v46
  %v95 = vunpack.c.l.b16 %v47
  %v96 = vunpack.c.l.b16 %v48
  %v97 = vunpack.c.l.b16 %v49
  %v98 = vunpack.c.l.b16 %v50
  %v99 = vunpack.c.l.b16 %v51
  %v100 = vunpack.c.l.b16 %v52
  %v101 = vpack.c.b16 %v86, %v85
  %v102 = vpack.c.b16 %v88, %v87
  %v103 = vpack.c.b16 %v90, %v89
  %v104 = vpack.c.b16 %v92, %v91
  %v105 = vpack.c.b16 %v94, %v93
  %v106 = vpack.c.b16 %v96, %v95
  %v107 = vpack.c.b16 %v98, %v97
  %v108 = vpack.c.b16 %v100, %v99
  %117 = vmatprep.subr.bf16.mxu0 0
  %118 = vmatpush1.bf16.msra.mxu0 %v101
  %119 = vmatprep.subr.bf16.mxu0 0
  %120 = vmatpush1.bf16.msra.mxu0 %v102
  %121 = vmatprep.subr.bf16.mxu0 0
  %122 = vmatpush1.bf16.msra.mxu0 %v103
  %123 = vmatprep.subr.bf16.mxu0 0
  %124 = vmatpush1.bf16.msra.mxu0 %v104
  %125 = vmatprep.subr.bf16.mxu0 0
  %126 = vmatpush1.bf16.msra.mxu0 %v105
  %127 = vmatprep.subr.bf16.mxu0 0
  %128 = vmatpush1.bf16.msra.mxu0 %v106
  %129 = vmatprep.subr.bf16.mxu0 0
  %130 = vmatpush1.bf16.msra.mxu0 %v107
  %131 = vmatprep.subr.bf16.mxu0 0
  %132 = vmatpush1.bf16.msra.mxu0 %v108
  %133 = vmatprep.subr.bf16.mxu0 0
  %134 = vmatpush1.bf16.msra.mxu0 0
  %135 = vmatprep.subr.bf16.mxu0 0
  %136 = vmatpush1.bf16.msra.mxu0 0
  %137 = vmatprep.subr.bf16.mxu0 0
  %138 = vmatpush1.bf16.msra.mxu0 0
  %139 = vmatprep.subr.bf16.mxu0 0
  %140 = vmatpush1.bf16.msra.mxu0 0
  %141 = vmatprep.subr.bf16.mxu0 0
  %142 = vmatpush1.bf16.msra.mxu0 0
  %143 = vmatprep.subr.bf16.mxu0 0
  %144 = vmatpush1.bf16.msra.mxu0 0
  %145 = vmatprep.subr.bf16.mxu0 0
  %146 = vmatpush1.bf16.msra.mxu0 0
  %147 = vmatprep.subr.bf16.mxu0 0
  %148 = vmatpush1.bf16.msra.mxu0 0
  %149 = vmatprep.mubr.bf16.mxu0 0
  %150 = vmatmul.mubr.bf16.gmra.mrb[0].mxu0 %v63
  %v151 = vpop.f32.mrb[0].mxu0
  %v152 = vadd.f32 0.0, %v151
  %v153 = vpop.f32.mrb[0].mxu0
  %v154 = vpop.f32.mrb[0].mxu0
  %v155 = vadd.f32 0.0, %v154
  %v156 = vpop.f32.mrb[0].mxu0
  %157 = vmatprep.mubr.bf16.mxu0 0
  %158 = vmatmul.mubr.bf16.gmra.mrb[0].mxu0 %v64
  %v159 = vpop.f32.mrb[0].mxu0
  %v160 = vadd.f32 0.0, %v159
  %v161 = vpop.f32.mrb[0].mxu0
  %v162 = vpop.f32.mrb[0].mxu0
  %v163 = vadd.f32 0.0, %v162
  %v164 = vpop.f32.mrb[0].mxu0
  %165 = vmatprep.mubr.bf16.mxu0 0
  %166 = vmatmul.mubr.bf16.gmra.mrb[0].mxu0 %v65
  %v167 = vpop.f32.mrb[0].mxu0
  %v168 = vadd.f32 0.0, %v167
  %v169 = vpop.f32.mrb[0].mxu0
  %v170 = vpop.f32.mrb[0].mxu0
  %v171 = vpop.f32.mrb[0].mxu0
  %172 = vdwg.mxu0
  %v173 = vadd.f32 %v32, %v152
  %v174 = vadd.f32 %v33, %v155
  %v175 = vadd.f32 %v34, %v160
  %v176 = vadd.f32 %v35, %v163
  %v177 = vadd.f32 %v36, %v168
  %178 = vst [vmem:[#allocation2] sm:$0xff] %v173
  %179 = vst [vmem:[#allocation2 + $0x8] sm:$0xff] %v174
  %180 = vst [vmem:[#allocation2 + $0x10] sm:$0xff] %v175
  %181 = vst [vmem:[#allocation2 + $0x18] sm:$0xff] %v176
  %182 = vst [vmem:[#allocation2 + $0x20] sm:$0x3] %v177
  // Predicated region
  $region22: #{clip_img_encoder_forward.18} parent=0 // pred_check
    %p183 = pneg %p18
  $region23: #{clip_img_encoder_forward.18} parent=0 // pred_check_branch
    %185 = sbr.rel (%p183) target = $region25
  $region24: #{clip_img_encoder_forward.18} parent=0 // pred_region
    %v186 = vld [vmem:[#allocation2] sm:$0xff]
    %v187 = vld [vmem:[#allocation2 + $0x8] sm:$0xff]
    %v188 = vld [vmem:[#allocation2 + $0x10] sm:$0xff]
    %v189 = vld [vmem:[#allocation2 + $0x18] sm:$0xff]
    %v190 = vld [vmem:[#allocation2 + $0x20] sm:$0x3]
    %v191 = vld [vmem:[%s2] sm:$0x1]
    %v193 = vlaneseq
    %v194 = vshrl.u32 %v193, 7
    %v195 = vsub.s32 0, %v194
    %v196 = vrot.slane %v191, %v195
    %v198 = vadd.f32 %v186, %v196
    %v199 = vadd.f32 %v187, %v196
    %v200 = vadd.f32 %v188, %v196
    %v201 = vadd.f32 %v189, %v196
    %v202 = vadd.f32 %v190, %v196
    %v203 = vld [vmem:[%s3] sm:$0xff]
    %v204 = vld [vmem:[%s3 + $0x8] sm:$0xff]
    %v205 = vld [vmem:[%s3 + $0x10] sm:$0xff]
    %v206 = vld [vmem:[%s3 + $0x18] sm:$0xff]
    %v207 = vld [vmem:[%s3 + $0x20] sm:$0x3]
    %v208 = vadd.f32 %v198, %v203
    %v209 = vadd.f32 %v199, %v204
    %v210 = vadd.f32 %v200, %v205
    %v211 = vadd.f32 %v201, %v206
    %v212 = vadd.f32 %v202, %v207
    %213 = vst [vmem:[%s4] sm:$0xff] %v208
    %214 = vst [vmem:[%s4 + $0x8] sm:$0xff] %v209
    %215 = vst [vmem:[%s4 + $0x10] sm:$0xff] %v210
    %216 = vst [vmem:[%s4 + $0x18] sm:$0xff] %v211
    %217 = vst [vmem:[%s4 + $0x20] sm:$0x3] %v212
  $region25: #{clip_img_encoder_forward.18} parent=0 // pred_fallthru
    _
  // Predicated region
  $region26: #{clip_img_encoder_forward.18} parent=0 // pred_check
    _
  $region27: #{clip_img_encoder_forward.18} parent=0 // pred_check_branch
    %219 = sbr.rel (0) target = $region29
  $region28: #{clip_img_encoder_forward.18} parent=0 // pred_region
    _
  $region29: #{clip_img_encoder_forward.18} parent=0 // pred_fallthru
    _
  // Predicated region
  $region30: #{clip_img_encoder_forward.18} parent=0 // pred_check
    _
  $region31: #{clip_img_encoder_forward.18} parent=0 // pred_check_branch
    %221 = sbr.rel (0) target = $region33
  $region32: #{clip_img_encoder_forward.18} parent=0 // pred_region
    _
  $region33: #{clip_img_encoder_forward.18} parent=0 // pred_fallthru
    _

// kernel: clip_img_encoder_forward.20
$region0: #{clip_img_encoder_forward.20}
  #allocation0 [shape = 'u32[]', space=smem, size = 0x4, offset = 0x4, fixed_abs, tag = 'smem constant byte address 0x4 - core index']
  #allocation1 [shape = 'u32[144,128]{1,0:T(1,128)}', space=vmem, size = 0x12000, scoped, tag = 'internal scratch']
  #allocation2 [shape = 'f32[34,128]{1,0:T(8,128)}', space=vmem, size = 0x5000, scoped, tag = 'scratch operand']
  %s0 = inlined_call_operand.vmem [shape: bf16[34,512], index: 0, kind: input, shape index: {}]
  %s1 = inlined_call_operand.vmem [shape: bf16[512,128], index: 1, kind: input, shape index: {}]
  %s2 = inlined_call_operand.vmem [shape: f32[1,128], index: 2, kind: input, shape index: {}]
  %s3 = inlined_call_operand.vmem [shape: f32[34,128], index: 3, kind: input, shape index: {}]
  %s4 = inlined_call_operand.vmem [shape: f32[34,128], index: 4, kind: output, shape index: {}]
  %s5 = sld [smem:[#allocation0]]
  $region34: #{clip_img_encoder_forward.20} parent=0
    _
  %s7 = ssub.s32 1, %s5
  %s8 = scalar_select 0, %s7, %s5
  // Predicated region
  $region2: #{clip_img_encoder_forward.20} parent=0 // pred_check
    _
  $region3: #{clip_img_encoder_forward.20} parent=0 // pred_check_branch
    %10 = sbr.rel (0) target = $region5
  $region4: #{clip_img_encoder_forward.20} parent=0 // pred_region
    _
  $region5: #{clip_img_encoder_forward.20} parent=0 // pred_fallthru
    _
  // Predicated region
  $region6: #{clip_img_encoder_forward.20} parent=0 // pred_check
    _
  $region7: #{clip_img_encoder_forward.20} parent=0 // pred_check_branch
    %12 = sbr.rel (0) target = $region9
  $region8: #{clip_img_encoder_forward.20} parent=0 // pred_region
    _
  $region9: #{clip_img_encoder_forward.20} parent=0 // pred_fallthru
    _
  // Predicated region
  $region10: #{clip_img_encoder_forward.20} parent=0 // pred_check
    _
  $region11: #{clip_img_encoder_forward.20} parent=0 // pred_check_branch
    %14 = sbr.rel (0) target = $region13
  $region12: #{clip_img_encoder_forward.20} parent=0 // pred_region
    _
  $region13: #{clip_img_encoder_forward.20} parent=0 // pred_fallthru
    _
  // Predicated region
  $region14: #{clip_img_encoder_forward.20} parent=0 // pred_check
    _
  $region15: #{clip_img_encoder_forward.20} parent=0 // pred_check_branch
    %16 = sbr.rel (0) target = $region17
  $region16: #{clip_img_encoder_forward.20} parent=0 // pred_region
    _
  $region17: #{clip_img_encoder_forward.20} parent=0 // pred_fallthru
    _
  %p18 = scmp.eq.s32.totalorder 0, 0
  // Predicated region
  $region18: #{clip_img_encoder_forward.20} parent=0 // pred_check
    %p19 = pneg %p18
  $region19: #{clip_img_encoder_forward.20} parent=0 // pred_check_branch
    %21 = sbr.rel (%p19) target = $region21
  $region20: #{clip_img_encoder_forward.20} parent=0 // pred_region
    %22 = vst [vmem:[#allocation2] sm:$0xff] 0.0
    %23 = vst [vmem:[#allocation2 + $0x8] sm:$0xff] 0.0
    %24 = vst [vmem:[#allocation2 + $0x10] sm:$0xff] 0.0
    %25 = vst [vmem:[#allocation2 + $0x18] sm:$0xff] 0.0
    %26 = vst [vmem:[#allocation2 + $0x20] sm:$0x3] 0.0
  $region21: #{clip_img_encoder_forward.20} parent=0 // pred_fallthru
    _
  %v27 = vld [vmem:[%s0] sm:$0xff]
  %v28 = vld [vmem:[%s0 + $0x8] sm:$0xff]
  %v29 = vld [vmem:[%s0 + $0x10] sm:$0xff]
  %v30 = vld [vmem:[%s0 + $0x18] sm:$0xff]
  %v31 = vld [vmem:[%s0 + $0x20] sm:$0xff]
  %v32 = vld [vmem:[%s0 + $0x28] sm:$0xff]
  %v33 = vld [vmem:[%s0 + $0x30] sm:$0xff]
  %v34 = vld [vmem:[%s0 + $0x38] sm:$0xff]
  %v35 = vld [vmem:[%s0 + $0x40] sm:$0x11]
  %v36 = vld [vmem:[%s0 + $0x48] sm:$0x11]
  %v37 = vld [vmem:[#allocation2] sm:$0xff]
  %v38 = vld [vmem:[#allocation2 + $0x8] sm:$0xff]
  %v39 = vld [vmem:[#allocation2 + $0x10] sm:$0xff]
  %v40 = vld [vmem:[#allocation2 + $0x18] sm:$0xff]
  %v41 = vld [vmem:[#allocation2 + $0x20] sm:$0x3]
  %v42 = vld [vmem:[%s1] sm:$0xf]
  %v43 = vld [vmem:[%s1 + $0x4] sm:$0xf]
  %v44 = vld [vmem:[%s1 + $0x8] sm:$0xf]
  %v45 = vld [vmem:[%s1 + $0xc] sm:$0xf]
  %v46 = vld [vmem:[%s1 + $0x10] sm:$0xf]
  %v47 = vld [vmem:[%s1 + $0x14] sm:$0xf]
  %v48 = vld [vmem:[%s1 + $0x18] sm:$0xf]
  %v49 = vld [vmem:[%s1 + $0x1c] sm:$0xf]
  %v50 = vld [vmem:[%s1 + $0x20] sm:$0xf]
  %v51 = vld [vmem:[%s1 + $0x24] sm:$0xf]
  %v52 = vld [vmem:[%s1 + $0x28] sm:$0xf]
  %v53 = vld [vmem:[%s1 + $0x2c] sm:$0xf]
  %v54 = vld [vmem:[%s1 + $0x30] sm:$0xf]
  %v55 = vld [vmem:[%s1 + $0x34] sm:$0xf]
  %v56 = vld [vmem:[%s1 + $0x38] sm:$0xf]
  %v57 = vld [vmem:[%s1 + $0x3c] sm:$0xf]
  %v58 = vld [vmem:[%s1 + $0x40] sm:$0xf]
  %v59 = vld [vmem:[%s1 + $0x44] sm:$0xf]
  %v60 = vld [vmem:[%s1 + $0x48] sm:$0xf]
  %v61 = vld [vmem:[%s1 + $0x4c] sm:$0xf]
  %v62 = vld [vmem:[%s1 + $0x50] sm:$0xf]
  %v63 = vld [vmem:[%s1 + $0x54] sm:$0xf]
  %v64 = vld [vmem:[%s1 + $0x58] sm:$0xf]
  %v65 = vld [vmem:[%s1 + $0x5c] sm:$0xf]
  %v66 = vld [vmem:[%s1 + $0x60] sm:$0xf]
  %v67 = vld [vmem:[%s1 + $0x64] sm:$0xf]
  %v68 = vld [vmem:[%s1 + $0x68] sm:$0xf]
  %v69 = vld [vmem:[%s1 + $0x6c] sm:$0xf]
  %v70 = vld [vmem:[%s1 + $0x70] sm:$0xf]
  %v71 = vld [vmem:[%s1 + $0x74] sm:$0xf]
  %v72 = vld [vmem:[%s1 + $0x78] sm:$0xf]
  %v73 = vld [vmem:[%s1 + $0x7c] sm:$0xf]
  %v74 = vld [vmem:[%s1 + $0x80] sm:$0xf]
  %v75 = vld [vmem:[%s1 + $0x84] sm:$0xf]
  %v76 = vld [vmem:[%s1 + $0x88] sm:$0xf]
  %v77 = vld [vmem:[%s1 + $0x8c] sm:$0xf]
  %v78 = vld [vmem:[%s1 + $0x90] sm:$0xf]
  %v79 = vld [vmem:[%s1 + $0x94] sm:$0xf]
  %v80 = vld [vmem:[%s1 + $0x98] sm:$0xf]
  %v81 = vld [vmem:[%s1 + $0x9c] sm:$0xf]
  %v82 = vld [vmem:[%s1 + $0xa0] sm:$0xf]
  %v83 = vld [vmem:[%s1 + $0xa4] sm:$0xf]
  %v84 = vld [vmem:[%s1 + $0xa8] sm:$0xf]
  %v85 = vld [vmem:[%s1 + $0xac] sm:$0xf]
  %v86 = vld [vmem:[%s1 + $0xb0] sm:$0xf]
  %v87 = vld [vmem:[%s1 + $0xb4] sm:$0xf]
  %v88 = vld [vmem:[%s1 + $0xb8] sm:$0xf]
  %v89 = vld [vmem:[%s1 + $0xbc] sm:$0xf]
  %v90 = vld [vmem:[%s1 + $0xc0] sm:$0xf]
  %v91 = vld [vmem:[%s1 + $0xc4] sm:$0xf]
  %v92 = vld [vmem:[%s1 + $0xc8] sm:$0xf]
  %v93 = vld [vmem:[%s1 + $0xcc] sm:$0xf]
  %v94 = vld [vmem:[%s1 + $0xd0] sm:$0xf]
  %v95 = vld [vmem:[%s1 + $0xd4] sm:$0xf]
  %v96 = vld [vmem:[%s1 + $0xd8] sm:$0xf]
  %v97 = vld [vmem:[%s1 + $0xdc] sm:$0xf]
  %v98 = vld [vmem:[%s1 + $0xe0] sm:$0xf]
  %v99 = vld [vmem:[%s1 + $0xe4] sm:$0xf]
  %v100 = vld [vmem:[%s1 + $0xe8] sm:$0xf]
  %v101 = vld [vmem:[%s1 + $0xec] sm:$0xf]
  %v102 = vld [vmem:[%s1 + $0xf0] sm:$0xf]
  %v103 = vld [vmem:[%s1 + $0xf4] sm:$0xf]
  %v104 = vld [vmem:[%s1 + $0xf8] sm:$0xf]
  %v105 = vld [vmem:[%s1 + $0xfc] sm:$0xf]
  %v116 = vunpack.c.l.b16 %v27
  %v117 = vunpack.c.h.b16 %v27
  %v118 = vunpack.c.l.b16 %v28
  %v119 = vunpack.c.h.b16 %v28
  %v120 = vunpack.c.l.b16 %v29
  %v121 = vunpack.c.h.b16 %v29
  %v122 = vunpack.c.l.b16 %v30
  %v123 = vunpack.c.h.b16 %v30
  %v124 = vunpack.c.l.b16 %v31
  %v125 = vunpack.c.h.b16 %v31
  %v126 = vunpack.c.l.b16 %v32
  %v127 = vunpack.c.h.b16 %v32
  %v128 = vunpack.c.l.b16 %v33
  %v129 = vunpack.c.h.b16 %v33
  %v130 = vunpack.c.l.b16 %v34
  %v131 = vunpack.c.h.b16 %v34
  %v132 = vunpack.c.l.b16 %v35
  %v133 = vunpack.c.h.b16 %v35
  %v134 = vunpack.c.l.b16 %v36
  %v135 = vunpack.c.h.b16 %v36
  %v136 = vpack.c.b16 %v120, %v116
  %v137 = vpack.c.b16 %v121, %v117
  %v138 = vpack.c.b16 %v122, %v118
  %v139 = vpack.c.b16 %v123, %v119
  %v140 = vpack.c.b16 %v128, %v124
  %v141 = vpack.c.b16 %v129, %v125
  %v142 = vpack.c.b16 %v130, %v126
  %v143 = vpack.c.b16 %v131, %v127
  %v144 = vpack.c.b16 %v132, %v132
  %v145 = vpack.c.b16 %v133, %v133
  %v146 = vpack.c.b16 %v134, %v134
  %v147 = vpack.c.b16 %v135, %v135
  %v224 = vunpack.c.l.b16 %v42
  %v225 = vunpack.c.l.b16 %v43
  %v226 = vunpack.c.l.b16 %v44
  %v227 = vunpack.c.l.b16 %v45
  %v228 = vunpack.c.l.b16 %v46
  %v229 = vunpack.c.l.b16 %v47
  %v230 = vunpack.c.l.b16 %v48
  %v231 = vunpack.c.l.b16 %v49
  %v232 = vunpack.c.l.b16 %v50
  %v233 = vunpack.c.l.b16 %v51
  %v234 = vunpack.c.l.b16 %v52
  %v235 = vunpack.c.l.b16 %v53
  %v236 = vunpack.c.l.b16 %v54
  %v237 = vunpack.c.l.b16 %v55
  %v238 = vunpack.c.l.b16 %v56
  %v239 = vunpack.c.l.b16 %v57
  %v240 = vunpack.c.l.b16 %v58
  %v241 = vunpack.c.l.b16 %v59
  %v242 = vunpack.c.l.b16 %v60
  %v243 = vunpack.c.l.b16 %v61
  %v244 = vunpack.c.l.b16 %v62
  %v245 = vunpack.c.l.b16 %v63
  %v246 = vunpack.c.l.b16 %v64
  %v247 = vunpack.c.l.b16 %v65
  %v248 = vunpack.c.l.b16 %v66
  %v249 = vunpack.c.l.b16 %v67
  %v250 = vunpack.c.l.b16 %v68
  %v251 = vunpack.c.l.b16 %v69
  %v252 = vunpack.c.l.b16 %v70
  %v253 = vunpack.c.l.b16 %v71
  %v254 = vunpack.c.l.b16 %v72
  %v255 = vunpack.c.l.b16 %v73
  %v256 = vunpack.c.l.b16 %v74
  %v257 = vunpack.c.l.b16 %v75
  %v258 = vunpack.c.l.b16 %v76
  %v259 = vunpack.c.l.b16 %v77
  %v260 = vunpack.c.l.b16 %v78
  %v261 = vunpack.c.l.b16 %v79
  %v262 = vunpack.c.l.b16 %v80
  %v263 = vunpack.c.l.b16 %v81
  %v264 = vunpack.c.l.b16 %v82
  %v265 = vunpack.c.l.b16 %v83
  %v266 = vunpack.c.l.b16 %v84
  %v267 = vunpack.c.l.b16 %v85
  %v268 = vunpack.c.l.b16 %v86
  %v269 = vunpack.c.l.b16 %v87
  %v270 = vunpack.c.l.b16 %v88
  %v271 = vunpack.c.l.b16 %v89
  %v272 = vunpack.c.l.b16 %v90
  %v273 = vunpack.c.l.b16 %v91
  %v274 = vunpack.c.l.b16 %v92
  %v275 = vunpack.c.l.b16 %v93
  %v276 = vunpack.c.l.b16 %v94
  %v277 = vunpack.c.l.b16 %v95
  %v278 = vunpack.c.l.b16 %v96
  %v279 = vunpack.c.l.b16 %v97
  %v280 = vunpack.c.l.b16 %v98
  %v281 = vunpack.c.l.b16 %v99
  %v282 = vunpack.c.l.b16 %v100
  %v283 = vunpack.c.l.b16 %v101
  %v284 = vunpack.c.l.b16 %v102
  %v285 = vunpack.c.l.b16 %v103
  %v286 = vunpack.c.l.b16 %v104
  %v287 = vunpack.c.l.b16 %v105
  %v288 = vpack.c.b16 %v225, %v224
  %v289 = vpack.c.b16 %v227, %v226
  %v290 = vpack.c.b16 %v229, %v228
  %v291 = vpack.c.b16 %v231, %v230
  %v292 = vpack.c.b16 %v233, %v232
  %v293 = vpack.c.b16 %v235, %v234
  %v294 = vpack.c.b16 %v237, %v236
  %v295 = vpack.c.b16 %v239, %v238
  %v296 = vpack.c.b16 %v241, %v240
  %v297 = vpack.c.b16 %v243, %v242
  %v298 = vpack.c.b16 %v245, %v244
  %v299 = vpack.c.b16 %v247, %v246
  %v300 = vpack.c.b16 %v249, %v248
  %v301 = vpack.c.b16 %v251, %v250
  %v302 = vpack.c.b16 %v253, %v252
  %v303 = vpack.c.b16 %v255, %v254
  %v304 = vpack.c.b16 %v257, %v256
  %v305 = vpack.c.b16 %v259, %v258
  %v306 = vpack.c.b16 %v261, %v260
  %v307 = vpack.c.b16 %v263, %v262
  %v308 = vpack.c.b16 %v265, %v264
  %v309 = vpack.c.b16 %v267, %v266
  %v310 = vpack.c.b16 %v269, %v268
  %v311 = vpack.c.b16 %v271, %v270
  %v312 = vpack.c.b16 %v273, %v272
  %v313 = vpack.c.b16 %v275, %v274
  %v314 = vpack.c.b16 %v277, %v276
  %v315 = vpack.c.b16 %v279, %v278
  %v316 = vpack.c.b16 %v281, %v280
  %v317 = vpack.c.b16 %v283, %v282
  %v318 = vpack.c.b16 %v285, %v284
  %v319 = vpack.c.b16 %v287, %v286
  %352 = vmatprep.subr.bf16.mxu0 0
  %353 = vmatpush1.bf16.msra.mxu0 %v288
  %354 = vmatprep.subr.bf16.mxu0 0
  %355 = vmatpush1.bf16.msra.mxu0 %v289
  %356 = vmatprep.subr.bf16.mxu0 0
  %357 = vmatpush1.bf16.msra.mxu0 %v290
  %358 = vmatprep.subr.bf16.mxu0 0
  %359 = vmatpush1.bf16.msra.mxu0 %v291
  %360 = vmatprep.subr.bf16.mxu0 0
  %361 = vmatpush1.bf16.msra.mxu0 %v292
  %362 = vmatprep.subr.bf16.mxu0 0
  %363 = vmatpush1.bf16.msra.mxu0 %v293
  %364 = vmatprep.subr.bf16.mxu0 0
  %365 = vmatpush1.bf16.msra.mxu0 %v294
  %366 = vmatprep.subr.bf16.mxu0 0
  %367 = vmatpush1.bf16.msra.mxu0 %v295
  %368 = vmatprep.subr.bf16.mxu0 0
  %369 = vmatpush1.bf16.msra.mxu0 %v296
  %370 = vmatprep.subr.bf16.mxu0 0
  %371 = vmatpush1.bf16.msra.mxu0 %v297
  %372 = vmatprep.subr.bf16.mxu0 0
  %373 = vmatpush1.bf16.msra.mxu0 %v298
  %374 = vmatprep.subr.bf16.mxu0 0
  %375 = vmatpush1.bf16.msra.mxu0 %v299
  %376 = vmatprep.subr.bf16.mxu0 0
  %377 = vmatpush1.bf16.msra.mxu0 %v300
  %378 = vmatprep.subr.bf16.mxu0 0
  %379 = vmatpush1.bf16.msra.mxu0 %v301
  %380 = vmatprep.subr.bf16.mxu0 0
  %381 = vmatpush1.bf16.msra.mxu0 %v302
  %382 = vmatprep.subr.bf16.mxu0 0
  %383 = vmatpush1.bf16.msra.mxu0 %v303
  %384 = vmatprep.mubr.bf16.mxu0 %v137
  %385 = vmatmul.mubr.bf16.gmra.mrb[0].mxu0 %v136
  %v386 = vpop.f32.mrb[0].mxu0
  %v387 = vadd.f32 0.0, %v386
  %v388 = vpop.f32.mrb[0].mxu0
  %v389 = vpop.f32.mrb[0].mxu0
  %v390 = vadd.f32 0.0, %v389
  %v391 = vpop.f32.mrb[0].mxu0
  %392 = vmatprep.mubr.bf16.mxu0 %v141
  %393 = vmatmul.mubr.bf16.gmra.mrb[0].mxu0 %v140
  %v394 = vpop.f32.mrb[0].mxu0
  %v395 = vadd.f32 0.0, %v394
  %v396 = vpop.f32.mrb[0].mxu0
  %v397 = vpop.f32.mrb[0].mxu0
  %v398 = vadd.f32 0.0, %v397
  %v399 = vpop.f32.mrb[0].mxu0
  %400 = vmatprep.mubr.bf16.mxu0 %v145
  %401 = vmatmul.mubr.bf16.gmra.mrb[0].mxu0 %v144
  %v402 = vpop.f32.mrb[0].mxu0
  %v403 = vadd.f32 0.0, %v402
  %v404 = vpop.f32.mrb[0].mxu0
  %v405 = vpop.f32.mrb[0].mxu0
  %v406 = vpop.f32.mrb[0].mxu0
  %407 = vdwg.mxu0
  %408 = vmatprep.subr.bf16.mxu0 0
  %409 = vmatpush1.bf16.msra.mxu0 %v304
  %410 = vmatprep.subr.bf16.mxu0 0
  %411 = vmatpush1.bf16.msra.mxu0 %v305
  %412 = vmatprep.subr.bf16.mxu0 0
  %413 = vmatpush1.bf16.msra.mxu0 %v306
  %414 = vmatprep.subr.bf16.mxu0 0
  %415 = vmatpush1.bf16.msra.mxu0 %v307
  %416 = vmatprep.subr.bf16.mxu0 0
  %417 = vmatpush1.bf16.msra.mxu0 %v308
  %418 = vmatprep.subr.bf16.mxu0 0
  %419 = vmatpush1.bf16.msra.mxu0 %v309
  %420 = vmatprep.subr.bf16.mxu0 0
  %421 = vmatpush1.bf16.msra.mxu0 %v310
  %422 = vmatprep.subr.bf16.mxu0 0
  %423 = vmatpush1.bf16.msra.mxu0 %v311
  %424 = vmatprep.subr.bf16.mxu0 0
  %425 = vmatpush1.bf16.msra.mxu0 %v312
  %426 = vmatprep.subr.bf16.mxu0 0
  %427 = vmatpush1.bf16.msra.mxu0 %v313
  %428 = vmatprep.subr.bf16.mxu0 0
  %429 = vmatpush1.bf16.msra.mxu0 %v314
  %430 = vmatprep.subr.bf16.mxu0 0
  %431 = vmatpush1.bf16.msra.mxu0 %v315
  %432 = vmatprep.subr.bf16.mxu0 0
  %433 = vmatpush1.bf16.msra.mxu0 %v316
  %434 = vmatprep.subr.bf16.mxu0 0
  %435 = vmatpush1.bf16.msra.mxu0 %v317
  %436 = vmatprep.subr.bf16.mxu0 0
  %437 = vmatpush1.bf16.msra.mxu0 %v318
  %438 = vmatprep.subr.bf16.mxu0 0
  %439 = vmatpush1.bf16.msra.mxu0 %v319
  %440 = vmatprep.mubr.bf16.mxu0 %v139
  %441 = vmatmul.mubr.bf16.gmra.mrb[0].mxu0 %v138
  %v442 = vpop.f32.mrb[0].mxu0
  %v443 = vadd.f32 %v387, %v442
  %v444 = vpop.f32.mrb[0].mxu0
  %v445 = vpop.f32.mrb[0].mxu0
  %v446 = vadd.f32 %v390, %v445
  %v447 = vpop.f32.mrb[0].mxu0
  %448 = vmatprep.mubr.bf16.mxu0 %v143
  %449 = vmatmul.mubr.bf16.gmra.mrb[0].mxu0 %v142
  %v450 = vpop.f32.mrb[0].mxu0
  %v451 = vadd.f32 %v395, %v450
  %v452 = vpop.f32.mrb[0].mxu0
  %v453 = vpop.f32.mrb[0].mxu0
  %v454 = vadd.f32 %v398, %v453
  %v455 = vpop.f32.mrb[0].mxu0
  %456 = vmatprep.mubr.bf16.mxu0 %v147
  %457 = vmatmul.mubr.bf16.gmra.mrb[0].mxu0 %v146
  %v458 = vpop.f32.mrb[0].mxu0
  %v459 = vadd.f32 %v403, %v458
  %v460 = vpop.f32.mrb[0].mxu0
  %v461 = vpop.f32.mrb[0].mxu0
  %v462 = vpop.f32.mrb[0].mxu0
  %463 = vdwg.mxu0
  %v464 = vadd.f32 %v37, %v443
  %v465 = vadd.f32 %v38, %v446
  %v466 = vadd.f32 %v39, %v451
  %v467 = vadd.f32 %v40, %v454
  %v468 = vadd.f32 %v41, %v459
  %469 = vst [vmem:[#allocation2] sm:$0xff] %v464
  %470 = vst [vmem:[#allocation2 + $0x8] sm:$0xff] %v465
  %471 = vst [vmem:[#allocation2 + $0x10] sm:$0xff] %v466
  %472 = vst [vmem:[#allocation2 + $0x18] sm:$0xff] %v467
  %473 = vst [vmem:[#allocation2 + $0x20] sm:$0x3] %v468
  // Predicated region
  $region22: #{clip_img_encoder_forward.20} parent=0 // pred_check
    %p474 = pneg %p18
  $region23: #{clip_img_encoder_forward.20} parent=0 // pred_check_branch
    %476 = sbr.rel (%p474) target = $region25
  $region24: #{clip_img_encoder_forward.20} parent=0 // pred_region
    %v477 = vld [vmem:[#allocation2] sm:$0xff]
    %v478 = vld [vmem:[#allocation2 + $0x8] sm:$0xff]
    %v479 = vld [vmem:[#allocation2 + $0x10] sm:$0xff]
    %v480 = vld [vmem:[#allocation2 + $0x18] sm:$0xff]
    %v481 = vld [vmem:[#allocation2 + $0x20] sm:$0x3]
    %v482 = vld [vmem:[%s2] sm:$0x1]
    %v484 = vlaneseq
    %v485 = vshrl.u32 %v484, 7
    %v486 = vsub.s32 0, %v485
    %v487 = vrot.slane %v482, %v486
    %v489 = vadd.f32 %v477, %v487
    %v490 = vadd.f32 %v478, %v487
    %v491 = vadd.f32 %v479, %v487
    %v492 = vadd.f32 %v480, %v487
    %v493 = vadd.f32 %v481, %v487
    %v494 = vld [vmem:[%s3] sm:$0xff]
    %v495 = vld [vmem:[%s3 + $0x8] sm:$0xff]
    %v496 = vld [vmem:[%s3 + $0x10] sm:$0xff]
    %v497 = vld [vmem:[%s3 + $0x18] sm:$0xff]
    %v498 = vld [vmem:[%s3 + $0x20] sm:$0x3]
    %v499 = vadd.f32 %v489, %v494
    %v500 = vadd.f32 %v490, %v495
    %v501 = vadd.f32 %v491, %v496
    %v502 = vadd.f32 %v492, %v497
    %v503 = vadd.f32 %v493, %v498
    %504 = vst [vmem:[%s4] sm:$0xff] %v499
    %505 = vst [vmem:[%s4 + $0x8] sm:$0xff] %v500
    %506 = vst [vmem:[%s4 + $0x10] sm:$0xff] %v501
    %507 = vst [vmem:[%s4 + $0x18] sm:$0xff] %v502
    %508 = vst [vmem:[%s4 + $0x20] sm:$0x3] %v503
  $region25: #{clip_img_encoder_forward.20} parent=0 // pred_fallthru
    _
  // Predicated region
  $region26: #{clip_img_encoder_forward.20} parent=0 // pred_check
    _
  $region27: #{clip_img_encoder_forward.20} parent=0 // pred_check_branch
    %510 = sbr.rel (0) target = $region29
  $region28: #{clip_img_encoder_forward.20} parent=0 // pred_region
    _
  $region29: #{clip_img_encoder_forward.20} parent=0 // pred_fallthru
    _
  // Predicated region
  $region30: #{clip_img_encoder_forward.20} parent=0 // pred_check
    _
  $region31: #{clip_img_encoder_forward.20} parent=0 // pred_check_branch
    %512 = sbr.rel (0) target = $region33
  $region32: #{clip_img_encoder_forward.20} parent=0 // pred_region
    _
  $region33: #{clip_img_encoder_forward.20} parent=0 // pred_fallthru
    _

// kernel: clip_img_encoder_forward.19
$region0: #{clip_img_encoder_forward.19}
  #allocation0 [shape = 'u32[]', space=smem, size = 0x4, offset = 0x4, fixed_abs, tag = 'smem constant byte address 0x4 - core index']
  #allocation1 [shape = 'u32[144,128]{1,0:T(1,128)}', space=vmem, size = 0x12000, scoped, tag = 'internal scratch']
  #allocation2 [shape = 'f32[34,512]{1,0:T(8,128)}', space=vmem, size = 0x14000, scoped, tag = 'scratch operand']
  %s0 = inlined_call_operand.vmem [shape: f32[34,128], index: 0, kind: input, shape index: {}]
  %s1 = inlined_call_operand.vmem [shape: f32[1,128], index: 1, kind: input, shape index: {}]
  %s2 = inlined_call_operand.vmem [shape: f32[1,128], index: 2, kind: input, shape index: {}]
  %s3 = inlined_call_operand.vmem [shape: bf16[128,512], index: 3, kind: input, shape index: {}]
  %s4 = inlined_call_operand.vmem [shape: f32[1,512], index: 4, kind: input, shape index: {}]
  %s5 = inlined_call_operand.vmem [shape: bf16[34,512], index: 5, kind: output, shape index: {}]
  %s6 = sld [smem:[#allocation0]]
  $region38: #{clip_img_encoder_forward.19} parent=0
    _
  %s8 = ssub.s32 1, %s6
  %s9 = scalar_select 0, %s8, %s6
  // Predicated region
  $region2: #{clip_img_encoder_forward.19} parent=0 // pred_check
    _
  $region3: #{clip_img_encoder_forward.19} parent=0 // pred_check_branch
    %11 = sbr.rel (0) target = $region5
  $region4: #{clip_img_encoder_forward.19} parent=0 // pred_region
    _
  $region5: #{clip_img_encoder_forward.19} parent=0 // pred_fallthru
    _
  // Predicated region
  $region6: #{clip_img_encoder_forward.19} parent=0 // pred_check
    _
  $region7: #{clip_img_encoder_forward.19} parent=0 // pred_check_branch
    %13 = sbr.rel (0) target = $region9
  $region8: #{clip_img_encoder_forward.19} parent=0 // pred_region
    _
  $region9: #{clip_img_encoder_forward.19} parent=0 // pred_fallthru
    _
  // Predicated region
  $region10: #{clip_img_encoder_forward.19} parent=0 // pred_check
    _
  $region11: #{clip_img_encoder_forward.19} parent=0 // pred_check_branch
    %15 = sbr.rel (0) target = $region13
  $region12: #{clip_img_encoder_forward.19} parent=0 // pred_region
    _
  $region13: #{clip_img_encoder_forward.19} parent=0 // pred_fallthru
    _
  // Predicated region
  $region14: #{clip_img_encoder_forward.19} parent=0 // pred_check
    _
  $region15: #{clip_img_encoder_forward.19} parent=0 // pred_check_branch
    %17 = sbr.rel (0) target = $region17
  $region16: #{clip_img_encoder_forward.19} parent=0 // pred_region
    _
  $region17: #{clip_img_encoder_forward.19} parent=0 // pred_fallthru
    _
  // Predicated region
  $region18: #{clip_img_encoder_forward.19} parent=0 // pred_check
    _
  $region19: #{clip_img_encoder_forward.19} parent=0 // pred_check_branch
    %19 = sbr.rel (0) target = $region21
  $region20: #{clip_img_encoder_forward.19} parent=0 // pred_region
    _
  $region21: #{clip_img_encoder_forward.19} parent=0 // pred_fallthru
    _
  %p21 = scmp.eq.s32.totalorder 0, 0
  // Predicated region
  $region22: #{clip_img_encoder_forward.19} parent=0 // pred_check
    %p22 = pneg %p21
  $region23: #{clip_img_encoder_forward.19} parent=0 // pred_check_branch
    %24 = sbr.rel (%p22) target = $region25
  $region24: #{clip_img_encoder_forward.19} parent=0 // pred_region
    %25 = vst [vmem:[#allocation2] sm:$0xff] 0.0
    %26 = vst [vmem:[#allocation2 + $0x8] sm:$0xff] 0.0
    %27 = vst [vmem:[#allocation2 + $0x10] sm:$0xff] 0.0
    %28 = vst [vmem:[#allocation2 + $0x18] sm:$0xff] 0.0
    %29 = vst [vmem:[#allocation2 + $0x20] sm:$0xff] 0.0
    %30 = vst [vmem:[#allocation2 + $0x28] sm:$0xff] 0.0
    %31 = vst [vmem:[#allocation2 + $0x30] sm:$0xff] 0.0
    %32 = vst [vmem:[#allocation2 + $0x38] sm:$0xff] 0.0
    %33 = vst [vmem:[#allocation2 + $0x40] sm:$0xff] 0.0
    %34 = vst [vmem:[#allocation2 + $0x48] sm:$0xff] 0.0
    %35 = vst [vmem:[#allocation2 + $0x50] sm:$0xff] 0.0
    %36 = vst [vmem:[#allocation2 + $0x58] sm:$0xff] 0.0
    %37 = vst [vmem:[#allocation2 + $0x60] sm:$0xff] 0.0
    %38 = vst [vmem:[#allocation2 + $0x68] sm:$0xff] 0.0
    %39 = vst [vmem:[#allocation2 + $0x70] sm:$0xff] 0.0
    %40 = vst [vmem:[#allocation2 + $0x78] sm:$0xff] 0.0
    %41 = vst [vmem:[#allocation2 + $0x80] sm:$0x3] 0.0
    %42 = vst [vmem:[#allocation2 + $0x88] sm:$0x3] 0.0
    %43 = vst [vmem:[#allocation2 + $0x90] sm:$0x3] 0.0
    %44 = vst [vmem:[#allocation2 + $0x98] sm:$0x3] 0.0
  $region25: #{clip_img_encoder_forward.19} parent=0 // pred_fallthru
    _
  %v45 = vld [vmem:[%s0] sm:$0xff]
  %v46 = vld [vmem:[%s0 + $0x8] sm:$0xff]
  %v47 = vld [vmem:[%s0 + $0x10] sm:$0xff]
  %v48 = vld [vmem:[%s0 + $0x18] sm:$0xff]
  %v49 = vld [vmem:[%s0 + $0x20] sm:$0x3]
  %50 = vadd.xlane.f32.xlu0 %v45
  %v51 = vpop.xlane.xlu0 %50
  %52 = vadd.xlane.f32.xlu0 %v46
  %v53 = vpop.xlane.xlu0 %52
  %54 = vadd.xlane.f32.xlu0 %v47
  %v55 = vpop.xlane.xlu0 %54
  %56 = vadd.xlane.f32.xlu0 %v48
  %v57 = vpop.xlane.xlu0 %56
  %vm58 = vcmask 1041408
  %v59 = vsel %vm58, %v49, 0.0
  %60 = vadd.xlane.f32.xlu0 %v59
  %v61 = vpop.xlane.xlu0 %60
  %v62 = vrcp.pop 128.0
  %v63 = vmul.f32 %v51, %v62
  %v64 = vmul.f32 %v53, %v62
  %v65 = vmul.f32 %v55, %v62
  %v66 = vmul.f32 %v57, %v62
  %v67 = vmul.f32 %v61, %v62
  %v68 = vsub.f32 %v45, %v63
  %v69 = vsub.f32 %v46, %v64
  %v70 = vsub.f32 %v47, %v65
  %v71 = vsub.f32 %v48, %v66
  %v72 = vsub.f32 %v49, %v67
  %v73 = vmul.f32 %v68, %v68
  %v74 = vmul.f32 %v69, %v69
  %v75 = vmul.f32 %v70, %v70
  %v76 = vmul.f32 %v71, %v71
  %v77 = vmul.f32 %v72, %v72
  %78 = vadd.xlane.f32.xlu0 %v73
  %v79 = vpop.xlane.xlu0 %78
  %80 = vadd.xlane.f32.xlu0 %v74
  %v81 = vpop.xlane.xlu0 %80
  %82 = vadd.xlane.f32.xlu0 %v75
  %v83 = vpop.xlane.xlu0 %82
  %84 = vadd.xlane.f32.xlu0 %v76
  %v85 = vpop.xlane.xlu0 %84
  %v86 = vsel %vm58, %v77, 0.0
  %87 = vadd.xlane.f32.xlu0 %v86
  %v88 = vpop.xlane.xlu0 %87
  %v89 = vmul.f32 %v79, %v62
  %v90 = vmul.f32 %v81, %v62
  %v91 = vmul.f32 %v83, %v62
  %v92 = vmul.f32 %v85, %v62
  %v93 = vmul.f32 %v88, %v62
  %v94 = vadd.f32 %v89, 1e-05
  %v95 = vadd.f32 %v90, 1e-05
  %v96 = vadd.f32 %v91, 1e-05
  %v97 = vadd.f32 %v92, 1e-05
  %v98 = vadd.f32 %v93, 1e-05
  %v99 = vrsqrt.pop %v94
  %v100 = vrsqrt.pop %v95
  %v101 = vrsqrt.pop %v96
  %v102 = vrsqrt.pop %v97
  %v103 = vrsqrt.pop %v98
  %v104 = vmul.f32 %v68, %v99
  %v105 = vmul.f32 %v69, %v100
  %v106 = vmul.f32 %v70, %v101
  %v107 = vmul.f32 %v71, %v102
  %v108 = vmul.f32 %v72, %v103
  %v109 = vld [vmem:[%s1] sm:$0x1]
  %v111 = vlaneseq
  %v112 = vshrl.u32 %v111, 7
  %v113 = vsub.s32 0, %v112
  %v114 = vrot.slane %v109, %v113
  %v116 = vmul.f32 %v104, %v114
  %v117 = vmul.f32 %v105, %v114
  %v118 = vmul.f32 %v106, %v114
  %v119 = vmul.f32 %v107, %v114
  %v120 = vmul.f32 %v108, %v114
  %v121 = vld [vmem:[%s2] sm:$0x1]
  %v123 = vlaneseq
  %v124 = vshrl.u32 %v123, 7
  %v125 = vsub.s32 0, %v124
  %v126 = vrot.slane %v121, %v125
  %v128 = vadd.f32 %v116, %v126
  %v129 = vadd.f32 %v117, %v126
  %v130 = vadd.f32 %v118, %v126
  %v131 = vadd.f32 %v119, %v126
  %v132 = vadd.f32 %v120, %v126
  %v133 = vpack.c.bf16 %v129, %v128
  %v134 = vpack.c.bf16 %v131, %v130
  %v135 = vpack.c.bf16 %v132, %v132
  %v136 = vld [vmem:[#allocation2] sm:$0xff]
  %v137 = vld [vmem:[#allocation2 + $0x8] sm:$0xff]
  %v138 = vld [vmem:[#allocation2 + $0x10] sm:$0xff]
  %v139 = vld [vmem:[#allocation2 + $0x18] sm:$0xff]
  %v140 = vld [vmem:[#allocation2 + $0x20] sm:$0xff]
  %v141 = vld [vmem:[#allocation2 + $0x28] sm:$0xff]
  %v142 = vld [vmem:[#allocation2 + $0x30] sm:$0xff]
  %v143 = vld [vmem:[#allocation2 + $0x38] sm:$0xff]
  %v144 = vld [vmem:[#allocation2 + $0x40] sm:$0xff]
  %v145 = vld [vmem:[#allocation2 + $0x48] sm:$0xff]
  %v146 = vld [vmem:[#allocation2 + $0x50] sm:$0xff]
  %v147 = vld [vmem:[#allocation2 + $0x58] sm:$0xff]
  %v148 = vld [vmem:[#allocation2 + $0x60] sm:$0xff]
  %v149 = vld [vmem:[#allocation2 + $0x68] sm:$0xff]
  %v150 = vld [vmem:[#allocation2 + $0x70] sm:$0xff]
  %v151 = vld [vmem:[#allocation2 + $0x78] sm:$0xff]
  %v152 = vld [vmem:[#allocation2 + $0x80] sm:$0x3]
  %v153 = vld [vmem:[#allocation2 + $0x88] sm:$0x3]
  %v154 = vld [vmem:[#allocation2 + $0x90] sm:$0x3]
  %v155 = vld [vmem:[#allocation2 + $0x98] sm:$0x3]
  %v156 = vld [vmem:[%s3] sm:$0xff]
  %v157 = vld [vmem:[%s3 + $0x8] sm:$0xff]
  %v158 = vld [vmem:[%s3 + $0x10] sm:$0xff]
  %v159 = vld [vmem:[%s3 + $0x18] sm:$0xff]
  %v160 = vld [vmem:[%s3 + $0x20] sm:$0xff]
  %v161 = vld [vmem:[%s3 + $0x28] sm:$0xff]
  %v162 = vld [vmem:[%s3 + $0x30] sm:$0xff]
  %v163 = vld [vmem:[%s3 + $0x38] sm:$0xff]
  %v164 = vld [vmem:[%s3 + $0x40] sm:$0xff]
  %v165 = vld [vmem:[%s3 + $0x48] sm:$0xff]
  %v166 = vld [vmem:[%s3 + $0x50] sm:$0xff]
  %v167 = vld [vmem:[%s3 + $0x58] sm:$0xff]
  %v168 = vld [vmem:[%s3 + $0x60] sm:$0xff]
  %v169 = vld [vmem:[%s3 + $0x68] sm:$0xff]
  %v170 = vld [vmem:[%s3 + $0x70] sm:$0xff]
  %v171 = vld [vmem:[%s3 + $0x78] sm:$0xff]
  %v172 = vld [vmem:[%s3 + $0x80] sm:$0xff]
  %v173 = vld [vmem:[%s3 + $0x88] sm:$0xff]
  %v174 = vld [vmem:[%s3 + $0x90] sm:$0xff]
  %v175 = vld [vmem:[%s3 + $0x98] sm:$0xff]
  %v176 = vld [vmem:[%s3 + $0xa0] sm:$0xff]
  %v177 = vld [vmem:[%s3 + $0xa8] sm:$0xff]
  %v178 = vld [vmem:[%s3 + $0xb0] sm:$0xff]
  %v179 = vld [vmem:[%s3 + $0xb8] sm:$0xff]
  %v180 = vld [vmem:[%s3 + $0xc0] sm:$0xff]
  %v181 = vld [vmem:[%s3 + $0xc8] sm:$0xff]
  %v182 = vld [vmem:[%s3 + $0xd0] sm:$0xff]
  %v183 = vld [vmem:[%s3 + $0xd8] sm:$0xff]
  %v184 = vld [vmem:[%s3 + $0xe0] sm:$0xff]
  %v185 = vld [vmem:[%s3 + $0xe8] sm:$0xff]
  %v186 = vld [vmem:[%s3 + $0xf0] sm:$0xff]
  %v187 = vld [vmem:[%s3 + $0xf8] sm:$0xff]
  %v220 = vunpack.c.l.b16 %v156
  %v221 = vunpack.c.h.b16 %v156
  %v222 = vunpack.c.l.b16 %v157
  %v223 = vunpack.c.h.b16 %v157
  %v224 = vunpack.c.l.b16 %v158
  %v225 = vunpack.c.h.b16 %v158
  %v226 = vunpack.c.l.b16 %v159
  %v227 = vunpack.c.h.b16 %v159
  %v228 = vunpack.c.l.b16 %v160
  %v229 = vunpack.c.h.b16 %v160
  %v230 = vunpack.c.l.b16 %v161
  %v231 = vunpack.c.h.b16 %v161
  %v232 = vunpack.c.l.b16 %v162
  %v233 = vunpack.c.h.b16 %v162
  %v234 = vunpack.c.l.b16 %v163
  %v235 = vunpack.c.h.b16 %v163
  %v236 = vunpack.c.l.b16 %v164
  %v237 = vunpack.c.h.b16 %v164
  %v238 = vunpack.c.l.b16 %v165
  %v239 = vunpack.c.h.b16 %v165
  %v240 = vunpack.c.l.b16 %v166
  %v241 = vunpack.c.h.b16 %v166
  %v242 = vunpack.c.l.b16 %v167
  %v243 = vunpack.c.h.b16 %v167
  %v244 = vunpack.c.l.b16 %v168
  %v245 = vunpack.c.h.b16 %v168
  %v246 = vunpack.c.l.b16 %v169
  %v247 = vunpack.c.h.b16 %v169
  %v248 = vunpack.c.l.b16 %v170
  %v249 = vunpack.c.h.b16 %v170
  %v250 = vunpack.c.l.b16 %v171
  %v251 = vunpack.c.h.b16 %v171
  %v252 = vunpack.c.l.b16 %v172
  %v253 = vunpack.c.h.b16 %v172
  %v254 = vunpack.c.l.b16 %v173
  %v255 = vunpack.c.h.b16 %v173
  %v256 = vunpack.c.l.b16 %v174
  %v257 = vunpack.c.h.b16 %v174
  %v258 = vunpack.c.l.b16 %v175
  %v259 = vunpack.c.h.b16 %v175
  %v260 = vunpack.c.l.b16 %v176
  %v261 = vunpack.c.h.b16 %v176
  %v262 = vunpack.c.l.b16 %v177
  %v263 = vunpack.c.h.b16 %v177
  %v264 = vunpack.c.l.b16 %v178
  %v265 = vunpack.c.h.b16 %v178
  %v266 = vunpack.c.l.b16 %v179
  %v267 = vunpack.c.h.b16 %v179
  %v268 = vunpack.c.l.b16 %v180
  %v269 = vunpack.c.h.b16 %v180
  %v270 = vunpack.c.l.b16 %v181
  %v271 = vunpack.c.h.b16 %v181
  %v272 = vunpack.c.l.b16 %v182
  %v273 = vunpack.c.h.b16 %v182
  %v274 = vunpack.c.l.b16 %v183
  %v275 = vunpack.c.h.b16 %v183
  %v276 = vunpack.c.l.b16 %v184
  %v277 = vunpack.c.h.b16 %v184
  %v278 = vunpack.c.l.b16 %v185
  %v279 = vunpack.c.h.b16 %v185
  %v280 = vunpack.c.l.b16 %v186
  %v281 = vunpack.c.h.b16 %v186
  %v282 = vunpack.c.l.b16 %v187
  %v283 = vunpack.c.h.b16 %v187
  %v284 = vpack.c.b16 %v224, %v220
  %v285 = vpack.c.b16 %v225, %v221
  %v286 = vpack.c.b16 %v226, %v222
  %v287 = vpack.c.b16 %v227, %v223
  %v288 = vpack.c.b16 %v232, %v228
  %v289 = vpack.c.b16 %v233, %v229
  %v290 = vpack.c.b16 %v234, %v230
  %v291 = vpack.c.b16 %v235, %v231
  %v292 = vpack.c.b16 %v240, %v236
  %v293 = vpack.c.b16 %v241, %v237
  %v294 = vpack.c.b16 %v242, %v238
  %v295 = vpack.c.b16 %v243, %v239
  %v296 = vpack.c.b16 %v248, %v244
  %v297 = vpack.c.b16 %v249, %v245
  %v298 = vpack.c.b16 %v250, %v246
  %v299 = vpack.c.b16 %v251, %v247
  %v300 = vpack.c.b16 %v256, %v252
  %v301 = vpack.c.b16 %v257, %v253
  %v302 = vpack.c.b16 %v258, %v254
  %v303 = vpack.c.b16 %v259, %v255
  %v304 = vpack.c.b16 %v264, %v260
  %v305 = vpack.c.b16 %v265, %v261
  %v306 = vpack.c.b16 %v266, %v262
  %v307 = vpack.c.b16 %v267, %v263
  %v308 = vpack.c.b16 %v272, %v268
  %v309 = vpack.c.b16 %v273, %v269
  %v310 = vpack.c.b16 %v274, %v270
  %v311 = vpack.c.b16 %v275, %v271
  %v312 = vpack.c.b16 %v280, %v276
  %v313 = vpack.c.b16 %v281, %v277
  %v314 = vpack.c.b16 %v282, %v278
  %v315 = vpack.c.b16 %v283, %v279
  %348 = vmatprep.subr.bf16.mxu0 %v285
  %349 = vmatpush1.bf16.msra.mxu0 %v284
  %350 = vmatprep.subr.bf16.mxu0 %v289
  %351 = vmatpush1.bf16.msra.mxu0 %v288
  %352 = vmatprep.subr.bf16.mxu0 %v293
  %353 = vmatpush1.bf16.msra.mxu0 %v292
  %354 = vmatprep.subr.bf16.mxu0 %v297
  %355 = vmatpush1.bf16.msra.mxu0 %v296
  %356 = vmatprep.subr.bf16.mxu0 %v301
  %357 = vmatpush1.bf16.msra.mxu0 %v300
  %358 = vmatprep.subr.bf16.mxu0 %v305
  %359 = vmatpush1.bf16.msra.mxu0 %v304
  %360 = vmatprep.subr.bf16.mxu0 %v309
  %361 = vmatpush1.bf16.msra.mxu0 %v308
  %362 = vmatprep.subr.bf16.mxu0 %v313
  %363 = vmatpush1.bf16.msra.mxu0 %v312
  %364 = vmatprep.subr.bf16.mxu0 0
  %365 = vmatpush1.bf16.msra.mxu0 0
  %366 = vmatprep.subr.bf16.mxu0 0
  %367 = vmatpush1.bf16.msra.mxu0 0
  %368 = vmatprep.subr.bf16.mxu0 0
  %369 = vmatpush1.bf16.msra.mxu0 0
  %370 = vmatprep.subr.bf16.mxu0 0
  %371 = vmatpush1.bf16.msra.mxu0 0
  %372 = vmatprep.subr.bf16.mxu0 0
  %373 = vmatpush1.bf16.msra.mxu0 0
  %374 = vmatprep.subr.bf16.mxu0 0
  %375 = vmatpush1.bf16.msra.mxu0 0
  %376 = vmatprep.subr.bf16.mxu0 0
  %377 = vmatpush1.bf16.msra.mxu0 0
  %378 = vmatprep.subr.bf16.mxu0 0
  %379 = vmatpush1.bf16.msra.mxu0 0
  %380 = vmatprep.mubr.bf16.mxu0 0
  %381 = vmatmul.mubr.bf16.gmra.mrb[0].mxu0 %v133
  %v382 = vpop.f32.mrb[0].mxu0
  %v383 = vadd.f32 0.0, %v382
  %v384 = vpop.f32.mrb[0].mxu0
  %v385 = vadd.f32 0.0, %v384
  %v386 = vpop.f32.mrb[0].mxu0
  %v387 = vadd.f32 0.0, %v386
  %v388 = vpop.f32.mrb[0].mxu0
  %v389 = vadd.f32 0.0, %v388
  %390 = vmatprep.mubr.bf16.mxu0 0
  %391 = vmatmul.mubr.bf16.gmra.mrb[0].mxu0 %v134
  %v392 = vpop.f32.mrb[0].mxu0
  %v393 = vadd.f32 0.0, %v392
  %v394 = vpop.f32.mrb[0].mxu0
  %v395 = vadd.f32 0.0, %v394
  %v396 = vpop.f32.mrb[0].mxu0
  %v397 = vadd.f32 0.0, %v396
  %v398 = vpop.f32.mrb[0].mxu0
  %v399 = vadd.f32 0.0, %v398
  %400 = vmatprep.mubr.bf16.mxu0 0
  %401 = vmatmul.mubr.bf16.gmra.mrb[0].mxu0 %v135
  %v402 = vpop.f32.mrb[0].mxu0
  %v403 = vadd.f32 0.0, %v402
  %v404 = vpop.f32.mrb[0].mxu0
  %v405 = vadd.f32 0.0, %v404
  %v406 = vpop.f32.mrb[0].mxu0
  %v407 = vpop.f32.mrb[0].mxu0
  %408 = vdwg.mxu0
  %409 = vmatprep.subr.bf16.mxu0 %v287
  %410 = vmatpush1.bf16.msra.mxu0 %v286
  %411 = vmatprep.subr.bf16.mxu0 %v291
  %412 = vmatpush1.bf16.msra.mxu0 %v290
  %413 = vmatprep.subr.bf16.mxu0 %v295
  %414 = vmatpush1.bf16.msra.mxu0 %v294
  %415 = vmatprep.subr.bf16.mxu0 %v299
  %416 = vmatpush1.bf16.msra.mxu0 %v298
  %417 = vmatprep.subr.bf16.mxu0 %v303
  %418 = vmatpush1.bf16.msra.mxu0 %v302
  %419 = vmatprep.subr.bf16.mxu0 %v307
  %420 = vmatpush1.bf16.msra.mxu0 %v306
  %421 = vmatprep.subr.bf16.mxu0 %v311
  %422 = vmatpush1.bf16.msra.mxu0 %v310
  %423 = vmatprep.subr.bf16.mxu0 %v315
  %424 = vmatpush1.bf16.msra.mxu0 %v314
  %425 = vmatprep.subr.bf16.mxu0 0
  %426 = vmatpush1.bf16.msra.mxu0 0
  %427 = vmatprep.subr.bf16.mxu0 0
  %428 = vmatpush1.bf16.msra.mxu0 0
  %429 = vmatprep.subr.bf16.mxu0 0
  %430 = vmatpush1.bf16.msra.mxu0 0
  %431 = vmatprep.subr.bf16.mxu0 0
  %432 = vmatpush1.bf16.msra.mxu0 0
  %433 = vmatprep.subr.bf16.mxu0 0
  %434 = vmatpush1.bf16.msra.mxu0 0
  %435 = vmatprep.subr.bf16.mxu0 0
  %436 = vmatpush1.bf16.msra.mxu0 0
  %437 = vmatprep.subr.bf16.mxu0 0
  %438 = vmatpush1.bf16.msra.mxu0 0
  %439 = vmatprep.subr.bf16.mxu0 0
  %440 = vmatpush1.bf16.msra.mxu0 0
  %441 = vmatprep.mubr.bf16.mxu0 0
  %442 = vmatmul.mubr.bf16.gmra.mrb[0].mxu0 %v133
  %v443 = vpop.f32.mrb[0].mxu0
  %v444 = vadd.f32 0.0, %v443
  %v445 = vpop.f32.mrb[0].mxu0
  %v446 = vadd.f32 0.0, %v445
  %v447 = vpop.f32.mrb[0].mxu0
  %v448 = vadd.f32 0.0, %v447
  %v449 = vpop.f32.mrb[0].mxu0
  %v450 = vadd.f32 0.0, %v449
  %451 = vmatprep.mubr.bf16.mxu0 0
  %452 = vmatmul.mubr.bf16.gmra.mrb[0].mxu0 %v134
  %v453 = vpop.f32.mrb[0].mxu0
  %v454 = vadd.f32 0.0, %v453
  %v455 = vpop.f32.mrb[0].mxu0
  %v456 = vadd.f32 0.0, %v455
  %v457 = vpop.f32.mrb[0].mxu0
  %v458 = vadd.f32 0.0, %v457
  %v459 = vpop.f32.mrb[0].mxu0
  %v460 = vadd.f32 0.0, %v459
  %461 = vmatprep.mubr.bf16.mxu0 0
  %462 = vmatmul.mubr.bf16.gmra.mrb[0].mxu0 %v135
  %v463 = vpop.f32.mrb[0].mxu0
  %v464 = vadd.f32 0.0, %v463
  %v465 = vpop.f32.mrb[0].mxu0
  %v466 = vadd.f32 0.0, %v465
  %v467 = vpop.f32.mrb[0].mxu0
  %v468 = vpop.f32.mrb[0].mxu0
  %469 = vdwg.mxu0
  %v470 = vadd.f32 %v136, %v383
  %v471 = vadd.f32 %v137, %v385
  %v472 = vadd.f32 %v138, %v444
  %v473 = vadd.f32 %v139, %v446
  %v474 = vadd.f32 %v140, %v387
  %v475 = vadd.f32 %v141, %v389
  %v476 = vadd.f32 %v142, %v448
  %v477 = vadd.f32 %v143, %v450
  %v478 = vadd.f32 %v144, %v393
  %v479 = vadd.f32 %v145, %v395
  %v480 = vadd.f32 %v146, %v454
  %v481 = vadd.f32 %v147, %v456
  %v482 = vadd.f32 %v148, %v397
  %v483 = vadd.f32 %v149, %v399
  %v484 = vadd.f32 %v150, %v458
  %v485 = vadd.f32 %v151, %v460
  %v486 = vadd.f32 %v152, %v403
  %v487 = vadd.f32 %v153, %v405
  %v488 = vadd.f32 %v154, %v464
  %v489 = vadd.f32 %v155, %v466
  %490 = vst [vmem:[#allocation2] sm:$0xff] %v470
  %491 = vst [vmem:[#allocation2 + $0x8] sm:$0xff] %v471
  %492 = vst [vmem:[#allocation2 + $0x10] sm:$0xff] %v472
  %493 = vst [vmem:[#allocation2 + $0x18] sm:$0xff] %v473
  %494 = vst [vmem:[#allocation2 + $0x20] sm:$0xff] %v474
  %495 = vst [vmem:[#allocation2 + $0x28] sm:$0xff] %v475
  %496 = vst [vmem:[#allocation2 + $0x30] sm:$0xff] %v476
  %497 = vst [vmem:[#allocation2 + $0x38] sm:$0xff] %v477
  %498 = vst [vmem:[#allocation2 + $0x40] sm:$0xff] %v478
  %499 = vst [vmem:[#allocation2 + $0x48] sm:$0xff] %v479
  %500 = vst [vmem:[#allocation2 + $0x50] sm:$0xff] %v480
  %501 = vst [vmem:[#allocation2 + $0x58] sm:$0xff] %v481
  %502 = vst [vmem:[#allocation2 + $0x60] sm:$0xff] %v482
  %503 = vst [vmem:[#allocation2 + $0x68] sm:$0xff] %v483
  %504 = vst [vmem:[#allocation2 + $0x70] sm:$0xff] %v484
  %505 = vst [vmem:[#allocation2 + $0x78] sm:$0xff] %v485
  %506 = vst [vmem:[#allocation2 + $0x80] sm:$0x3] %v486
  %507 = vst [vmem:[#allocation2 + $0x88] sm:$0x3] %v487
  %508 = vst [vmem:[#allocation2 + $0x90] sm:$0x3] %v488
  %509 = vst [vmem:[#allocation2 + $0x98] sm:$0x3] %v489
  // Predicated region
  $region26: #{clip_img_encoder_forward.19} parent=0 // pred_check
    %p510 = pneg %p21
  $region27: #{clip_img_encoder_forward.19} parent=0 // pred_check_branch
    %512 = sbr.rel (%p510) target = $region29
  $region28: #{clip_img_encoder_forward.19} parent=0 // pred_region
    %v513 = vld [vmem:[#allocation2] sm:$0xff]
    %v514 = vld [vmem:[#allocation2 + $0x8] sm:$0xff]
    %v515 = vld [vmem:[#allocation2 + $0x10] sm:$0xff]
    %v516 = vld [vmem:[#allocation2 + $0x18] sm:$0xff]
    %v517 = vld [vmem:[#allocation2 + $0x20] sm:$0xff]
    %v518 = vld [vmem:[#allocation2 + $0x28] sm:$0xff]
    %v519 = vld [vmem:[#allocation2 + $0x30] sm:$0xff]
    %v520 = vld [vmem:[#allocation2 + $0x38] sm:$0xff]
    %v521 = vld [vmem:[#allocation2 + $0x40] sm:$0xff]
    %v522 = vld [vmem:[#allocation2 + $0x48] sm:$0xff]
    %v523 = vld [vmem:[#allocation2 + $0x50] sm:$0xff]
    %v524 = vld [vmem:[#allocation2 + $0x58] sm:$0xff]
    %v525 = vld [vmem:[#allocation2 + $0x60] sm:$0xff]
    %v526 = vld [vmem:[#allocation2 + $0x68] sm:$0xff]
    %v527 = vld [vmem:[#allocation2 + $0x70] sm:$0xff]
    %v528 = vld [vmem:[#allocation2 + $0x78] sm:$0xff]
    %v529 = vld [vmem:[#allocation2 + $0x80] sm:$0x3]
    %v530 = vld [vmem:[#allocation2 + $0x88] sm:$0x3]
    %v531 = vld [vmem:[#allocation2 + $0x90] sm:$0x3]
    %v532 = vld [vmem:[#allocation2 + $0x98] sm:$0x3]
    %v533 = vld [vmem:[%s4] sm:$0xf]
    %v535 = vlaneseq
    %v536 = vshrl.u32 %v535, 7
    %v537 = vsub.s32 0, %v536
    %v538 = vrot.slane %v533, %v537
    %v539 = vlaneseq
    %v540 = vshrl.u32 %v539, 7
    %v541 = vsub.s32 1, %v540
    %v542 = vrot.slane %v533, %v541
    %v543 = vlaneseq
    %v544 = vshrl.u32 %v543, 7
    %v545 = vsub.s32 2, %v544
    %v546 = vrot.slane %v533, %v545
    %v547 = vlaneseq
    %v548 = vshrl.u32 %v547, 7
    %v549 = vsub.s32 3, %v548
    %v550 = vrot.slane %v533, %v549
    %v555 = vadd.f32 %v513, %v538
    %v556 = vadd.f32 %v514, %v542
    %v557 = vadd.f32 %v515, %v546
    %v558 = vadd.f32 %v516, %v550
    %v559 = vadd.f32 %v517, %v538
    %v560 = vadd.f32 %v518, %v542
    %v561 = vadd.f32 %v519, %v546
    %v562 = vadd.f32 %v520, %v550
    %v563 = vadd.f32 %v521, %v538
    %v564 = vadd.f32 %v522, %v542
    %v565 = vadd.f32 %v523, %v546
    %v566 = vadd.f32 %v524, %v550
    %v567 = vadd.f32 %v525, %v538
    %v568 = vadd.f32 %v526, %v542
    %v569 = vadd.f32 %v527, %v546
    %v570 = vadd.f32 %v528, %v550
    %v571 = vadd.f32 %v529, %v538
    %v572 = vadd.f32 %v530, %v542
    %v573 = vadd.f32 %v531, %v546
    %v574 = vadd.f32 %v532, %v550
    %v575 = vmul.f32 %v555, 1.702
    %v576 = vmul.f32 %v556, 1.702
    %v577 = vmul.f32 %v557, 1.702
    %v578 = vmul.f32 %v558, 1.702
    %v579 = vmul.f32 %v559, 1.702
    %v580 = vmul.f32 %v560, 1.702
    %v581 = vmul.f32 %v561, 1.702
    %v582 = vmul.f32 %v562, 1.702
    %v583 = vmul.f32 %v563, 1.702
    %v584 = vmul.f32 %v564, 1.702
    %v585 = vmul.f32 %v565, 1.702
    %v586 = vmul.f32 %v566, 1.702
    %v587 = vmul.f32 %v567, 1.702
    %v588 = vmul.f32 %v568, 1.702
    %v589 = vmul.f32 %v569, 1.702
    %v590 = vmul.f32 %v570, 1.702
    %v591 = vmul.f32 %v571, 1.702
    %v592 = vmul.f32 %v572, 1.702
    %v593 = vmul.f32 %v573, 1.702
    %v594 = vmul.f32 %v574, 1.702
    %v595 = vxor.u32 %v575, 2147483648
    %v596 = vxor.u32 %v576, 2147483648
    %v597 = vxor.u32 %v577, 2147483648
    %v598 = vxor.u32 %v578, 2147483648
    %v599 = vxor.u32 %v579, 2147483648
    %v600 = vxor.u32 %v580, 2147483648
    %v601 = vxor.u32 %v581, 2147483648
    %v602 = vxor.u32 %v582, 2147483648
    %v603 = vxor.u32 %v583, 2147483648
    %v604 = vxor.u32 %v584, 2147483648
    %v605 = vxor.u32 %v585, 2147483648
    %v606 = vxor.u32 %v586, 2147483648
    %v607 = vxor.u32 %v587, 2147483648
    %v608 = vxor.u32 %v588, 2147483648
    %v609 = vxor.u32 %v589, 2147483648
    %v610 = vxor.u32 %v590, 2147483648
    %v611 = vxor.u32 %v591, 2147483648
    %v612 = vxor.u32 %v592, 2147483648
    %v613 = vxor.u32 %v593, 2147483648
    %v614 = vxor.u32 %v594, 2147483648
    %v615 = vmul.f32 %v595, 1.442695
    %v616 = vpow.pop %v615
    %v617 = vmul.f32 %v596, 1.442695
    %v618 = vpow.pop %v617
    %v619 = vmul.f32 %v597, 1.442695
    %v620 = vpow.pop %v619
    %v621 = vmul.f32 %v598, 1.442695
    %v622 = vpow.pop %v621
    %v623 = vmul.f32 %v599, 1.442695
    %v624 = vpow.pop %v623
    %v625 = vmul.f32 %v600, 1.442695
    %v626 = vpow.pop %v625
    %v627 = vmul.f32 %v601, 1.442695
    %v628 = vpow.pop %v627
    %v629 = vmul.f32 %v602, 1.442695
    %v630 = vpow.pop %v629
    %v631 = vmul.f32 %v603, 1.442695
    %v632 = vpow.pop %v631
    %v633 = vmul.f32 %v604, 1.442695
    %v634 = vpow.pop %v633
    %v635 = vmul.f32 %v605, 1.442695
    %v636 = vpow.pop %v635
    %v637 = vmul.f32 %v606, 1.442695
    %v638 = vpow.pop %v637
    %v639 = vmul.f32 %v607, 1.442695
    %v640 = vpow.pop %v639
    %v641 = vmul.f32 %v608, 1.442695
    %v642 = vpow.pop %v641
    %v643 = vmul.f32 %v609, 1.442695
    %v644 = vpow.pop %v643
    %v645 = vmul.f32 %v610, 1.442695
    %v646 = vpow.pop %v645
    %v647 = vmul.f32 %v611, 1.442695
    %v648 = vpow.pop %v647
    %v649 = vmul.f32 %v612, 1.442695
    %v650 = vpow.pop %v649
    %v651 = vmul.f32 %v613, 1.442695
    %v652 = vpow.pop %v651
    %v653 = vmul.f32 %v614, 1.442695
    %v654 = vpow.pop %v653
    %v655 = vadd.f32 %v616, 1.0
    %v656 = vadd.f32 %v618, 1.0
    %v657 = vadd.f32 %v620, 1.0
    %v658 = vadd.f32 %v622, 1.0
    %v659 = vadd.f32 %v624, 1.0
    %v660 = vadd.f32 %v626, 1.0
    %v661 = vadd.f32 %v628, 1.0
    %v662 = vadd.f32 %v630, 1.0
    %v663 = vadd.f32 %v632, 1.0
    %v664 = vadd.f32 %v634, 1.0
    %v665 = vadd.f32 %v636, 1.0
    %v666 = vadd.f32 %v638, 1.0
    %v667 = vadd.f32 %v640, 1.0
    %v668 = vadd.f32 %v642, 1.0
    %v669 = vadd.f32 %v644, 1.0
    %v670 = vadd.f32 %v646, 1.0
    %v671 = vadd.f32 %v648, 1.0
    %v672 = vadd.f32 %v650, 1.0
    %v673 = vadd.f32 %v652, 1.0
    %v674 = vadd.f32 %v654, 1.0
    %v675 = vrcp.pop %v655
    %v676 = vmul.f32 1.0, %v675
    %v677 = vrcp.pop %v656
    %v678 = vmul.f32 1.0, %v677
    %v679 = vrcp.pop %v657
    %v680 = vmul.f32 1.0, %v679
    %v681 = vrcp.pop %v658
    %v682 = vmul.f32 1.0, %v681
    %v683 = vrcp.pop %v659
    %v684 = vmul.f32 1.0, %v683
    %v685 = vrcp.pop %v660
    %v686 = vmul.f32 1.0, %v685
    %v687 = vrcp.pop %v661
    %v688 = vmul.f32 1.0, %v687
    %v689 = vrcp.pop %v662
    %v690 = vmul.f32 1.0, %v689
    %v691 = vrcp.pop %v663
    %v692 = vmul.f32 1.0, %v691
    %v693 = vrcp.pop %v664
    %v694 = vmul.f32 1.0, %v693
    %v695 = vrcp.pop %v665
    %v696 = vmul.f32 1.0, %v695
    %v697 = vrcp.pop %v666
    %v698 = vmul.f32 1.0, %v697
    %v699 = vrcp.pop %v667
    %v700 = vmul.f32 1.0, %v699
    %v701 = vrcp.pop %v668
    %v702 = vmul.f32 1.0, %v701
    %v703 = vrcp.pop %v669
    %v704 = vmul.f32 1.0, %v703
    %v705 = vrcp.pop %v670
    %v706 = vmul.f32 1.0, %v705
    %v707 = vrcp.pop %v671
    %v708 = vmul.f32 1.0, %v707
    %v709 = vrcp.pop %v672
    %v710 = vmul.f32 1.0, %v709
    %v711 = vrcp.pop %v673
    %v712 = vmul.f32 1.0, %v711
    %v713 = vrcp.pop %v674
    %v714 = vmul.f32 1.0, %v713
    %v715 = vmul.f32 %v555, %v676
    %v716 = vmul.f32 %v556, %v678
    %v717 = vmul.f32 %v557, %v680
    %v718 = vmul.f32 %v558, %v682
    %v719 = vmul.f32 %v559, %v684
    %v720 = vmul.f32 %v560, %v686
    %v721 = vmul.f32 %v561, %v688
    %v722 = vmul.f32 %v562, %v690
    %v723 = vmul.f32 %v563, %v692
    %v724 = vmul.f32 %v564, %v694
    %v725 = vmul.f32 %v565, %v696
    %v726 = vmul.f32 %v566, %v698
    %v727 = vmul.f32 %v567, %v700
    %v728 = vmul.f32 %v568, %v702
    %v729 = vmul.f32 %v569, %v704
    %v730 = vmul.f32 %v570, %v706
    %v731 = vmul.f32 %v571, %v708
    %v732 = vmul.f32 %v572, %v710
    %v733 = vmul.f32 %v573, %v712
    %v734 = vmul.f32 %v574, %v714
    %v735 = vpack.c.bf16 %v719, %v715
    %v736 = vpack.c.bf16 %v720, %v716
    %v737 = vpack.c.bf16 %v721, %v717
    %v738 = vpack.c.bf16 %v722, %v718
    %v739 = vpack.c.bf16 %v727, %v723
    %v740 = vpack.c.bf16 %v728, %v724
    %v741 = vpack.c.bf16 %v729, %v725
    %v742 = vpack.c.bf16 %v730, %v726
    %v743 = vpack.c.bf16 %v731, %v731
    %v744 = vpack.c.bf16 %v732, %v732
    %v745 = vpack.c.bf16 %v733, %v733
    %v746 = vpack.c.bf16 %v734, %v734
    %v759 = vunpack.c.l.b16 %v735
    %v760 = vunpack.c.l.b16 %v736
    %v761 = vunpack.c.l.b16 %v737
    %v762 = vunpack.c.l.b16 %v738
    %v763 = vunpack.c.h.b16 %v735
    %v764 = vunpack.c.h.b16 %v736
    %v765 = vunpack.c.h.b16 %v737
    %v766 = vunpack.c.h.b16 %v738
    %v767 = vunpack.c.l.b16 %v739
    %v768 = vunpack.c.l.b16 %v740
    %v769 = vunpack.c.l.b16 %v741
    %v770 = vunpack.c.l.b16 %v742
    %v771 = vunpack.c.h.b16 %v739
    %v772 = vunpack.c.h.b16 %v740
    %v773 = vunpack.c.h.b16 %v741
    %v774 = vunpack.c.h.b16 %v742
    %v775 = vunpack.c.l.b16 %v743
    %v776 = vunpack.c.l.b16 %v744
    %v777 = vunpack.c.l.b16 %v745
    %v778 = vunpack.c.l.b16 %v746
    %v779 = vpack.c.b16 %v760, %v759
    %v780 = vpack.c.b16 %v762, %v761
    %v781 = vpack.c.b16 %v764, %v763
    %v782 = vpack.c.b16 %v766, %v765
    %v783 = vpack.c.b16 %v768, %v767
    %v784 = vpack.c.b16 %v770, %v769
    %v785 = vpack.c.b16 %v772, %v771
    %v786 = vpack.c.b16 %v774, %v773
    %v787 = vpack.c.b16 %v776, %v775
    %v788 = vpack.c.b16 %v778, %v777
    %799 = vst [vmem:[%s5] sm:$0xff] %v779
    %800 = vst [vmem:[%s5 + $0x8] sm:$0xff] %v780
    %801 = vst [vmem:[%s5 + $0x10] sm:$0xff] %v781
    %802 = vst [vmem:[%s5 + $0x18] sm:$0xff] %v782
    %803 = vst [vmem:[%s5 + $0x20] sm:$0xff] %v783
    %804 = vst [vmem:[%s5 + $0x28] sm:$0xff] %v784
    %805 = vst [vmem:[%s5 + $0x30] sm:$0xff] %v785
    %806 = vst [vmem:[%s5 + $0x38] sm:$0xff] %v786
    %807 = vst [vmem:[%s5 + $0x40] sm:$0x11] %v787
    %808 = vst [vmem:[%s5 + $0x48] sm:$0x11] %v788
  $region29: #{clip_img_encoder_forward.19} parent=0 // pred_fallthru
    _
  // Predicated region
  $region30: #{clip_img_encoder_forward.19} parent=0 // pred_check
    _
  $region31: #{clip_img_encoder_forward.19} parent=0 // pred_check_branch
    %810 = sbr.rel (0) target = $region33
  $region32: #{clip_img_encoder_forward.19} parent=0 // pred_region
    _
  $region33: #{clip_img_encoder_forward.19} parent=0 // pred_fallthru
    _
  // Predicated region
  $region34: #{clip_img_encoder_forward.19} parent=0 // pred_check
    _
  $region35: #{clip_img_encoder_forward.19} parent=0 // pred_check_branch
    %812 = sbr.rel (0) target = $region37
  $region36: #{clip_img_encoder_forward.19} parent=0 // pred_region
    _
  $region37: #{clip_img_encoder_forward.19} parent=0 // pred_fallthru
    _

// kernel: clip_img_encoder_forward.26
$region0: #{clip_img_encoder_forward.26}
  #allocation0 [shape = 'u32[]', space=smem, size = 0x4, offset = 0x4, fixed_abs, tag = 'smem constant byte address 0x4 - core index']
  #allocation1 [shape = 'u32[144,128]{1,0:T(1,128)}', space=vmem, size = 0x12000, scoped, tag = 'internal scratch']
  #allocation2 [shape = 'f32[2,512]{1,0:T(2,128)}', space=vmem, size = 0x1000, scoped, tag = 'scratch operand']
  %s0 = inlined_call_operand.vmem [shape: f32[2,128], index: 0, kind: input, shape index: {}]
  %s1 = inlined_call_operand.vmem [shape: f32[1,128], index: 1, kind: input, shape index: {}]
  %s2 = inlined_call_operand.vmem [shape: f32[1,128], index: 2, kind: input, shape index: {}]
  %s3 = inlined_call_operand.vmem [shape: bf16[128,512], index: 3, kind: input, shape index: {}]
  %s4 = inlined_call_operand.vmem [shape: f32[2,512], index: 4, kind: output, shape index: {}]
  %s5 = sld [smem:[#allocation0]]
  $region34: #{clip_img_encoder_forward.26} parent=0
    _
  %s7 = ssub.s32 1, %s5
  %s8 = scalar_select 0, %s7, %s5
  // Predicated region
  $region2: #{clip_img_encoder_forward.26} parent=0 // pred_check
    _
  $region3: #{clip_img_encoder_forward.26} parent=0 // pred_check_branch
    %10 = sbr.rel (0) target = $region5
  $region4: #{clip_img_encoder_forward.26} parent=0 // pred_region
    _
  $region5: #{clip_img_encoder_forward.26} parent=0 // pred_fallthru
    _
  // Predicated region
  $region6: #{clip_img_encoder_forward.26} parent=0 // pred_check
    _
  $region7: #{clip_img_encoder_forward.26} parent=0 // pred_check_branch
    %12 = sbr.rel (0) target = $region9
  $region8: #{clip_img_encoder_forward.26} parent=0 // pred_region
    _
  $region9: #{clip_img_encoder_forward.26} parent=0 // pred_fallthru
    _
  // Predicated region
  $region10: #{clip_img_encoder_forward.26} parent=0 // pred_check
    _
  $region11: #{clip_img_encoder_forward.26} parent=0 // pred_check_branch
    %14 = sbr.rel (0) target = $region13
  $region12: #{clip_img_encoder_forward.26} parent=0 // pred_region
    _
  $region13: #{clip_img_encoder_forward.26} parent=0 // pred_fallthru
    _
  // Predicated region
  $region14: #{clip_img_encoder_forward.26} parent=0 // pred_check
    _
  $region15: #{clip_img_encoder_forward.26} parent=0 // pred_check_branch
    %16 = sbr.rel (0) target = $region17
  $region16: #{clip_img_encoder_forward.26} parent=0 // pred_region
    _
  $region17: #{clip_img_encoder_forward.26} parent=0 // pred_fallthru
    _
  %p18 = scmp.eq.s32.totalorder 0, 0
  // Predicated region
  $region18: #{clip_img_encoder_forward.26} parent=0 // pred_check
    %p19 = pneg %p18
  $region19: #{clip_img_encoder_forward.26} parent=0 // pred_check_branch
    %21 = sbr.rel (%p19) target = $region21
  $region20: #{clip_img_encoder_forward.26} parent=0 // pred_region
    %22 = vst [vmem:[#allocation2] sm:$0xff] 0.0
  $region21: #{clip_img_encoder_forward.26} parent=0 // pred_fallthru
    _
  %v23 = vld [vmem:[%s0] sm:$0x3]
  %vm24 = vcmask 1041408
  %v25 = vsel %vm24, %v23, 0.0
  %26 = vadd.xlane.f32.xlu0 %v25
  %v27 = vpop.xlane.xlu0 %26
  %v28 = vrcp.pop 128.0
  %v29 = vmul.f32 %v27, %v28
  %v30 = vsub.f32 %v23, %v29
  %v31 = vmul.f32 %v30, %v30
  %v32 = vsel %vm24, %v31, 0.0
  %33 = vadd.xlane.f32.xlu0 %v32
  %v34 = vpop.xlane.xlu0 %33
  %v35 = vmul.f32 %v34, %v28
  %v36 = vadd.f32 %v35, 1e-05
  %v37 = vrsqrt.pop %v36
  %v38 = vmul.f32 %v30, %v37
  %v39 = vld [vmem:[%s1] sm:$0x1]
  %v41 = vlaneseq
  %v42 = vshrl.u32 %v41, 7
  %v43 = vsub.s32 0, %v42
  %v44 = vrot.slane %v39, %v43
  %v46 = vmul.f32 %v38, %v44
  %v47 = vld [vmem:[%s2] sm:$0x1]
  %v49 = vlaneseq
  %v50 = vshrl.u32 %v49, 7
  %v51 = vsub.s32 0, %v50
  %v52 = vrot.slane %v47, %v51
  %v54 = vadd.f32 %v46, %v52
  %v55 = vpack.c.bf16 %v54, %v54
  %v56 = vld [vmem:[#allocation2] sm:$0xff]
  %v57 = vld [vmem:[%s3] sm:$0xff]
  %v58 = vld [vmem:[%s3 + $0x8] sm:$0xff]
  %v59 = vld [vmem:[%s3 + $0x10] sm:$0xff]
  %v60 = vld [vmem:[%s3 + $0x18] sm:$0xff]
  %v61 = vld [vmem:[%s3 + $0x20] sm:$0xff]
  %v62 = vld [vmem:[%s3 + $0x28] sm:$0xff]
  %v63 = vld [vmem:[%s3 + $0x30] sm:$0xff]
  %v64 = vld [vmem:[%s3 + $0x38] sm:$0xff]
  %v65 = vld [vmem:[%s3 + $0x40] sm:$0xff]
  %v66 = vld [vmem:[%s3 + $0x48] sm:$0xff]
  %v67 = vld [vmem:[%s3 + $0x50] sm:$0xff]
  %v68 = vld [vmem:[%s3 + $0x58] sm:$0xff]
  %v69 = vld [vmem:[%s3 + $0x60] sm:$0xff]
  %v70 = vld [vmem:[%s3 + $0x68] sm:$0xff]
  %v71 = vld [vmem:[%s3 + $0x70] sm:$0xff]
  %v72 = vld [vmem:[%s3 + $0x78] sm:$0xff]
  %v73 = vld [vmem:[%s3 + $0x80] sm:$0xff]
  %v74 = vld [vmem:[%s3 + $0x88] sm:$0xff]
  %v75 = vld [vmem:[%s3 + $0x90] sm:$0xff]
  %v76 = vld [vmem:[%s3 + $0x98] sm:$0xff]
  %v77 = vld [vmem:[%s3 + $0xa0] sm:$0xff]
  %v78 = vld [vmem:[%s3 + $0xa8] sm:$0xff]
  %v79 = vld [vmem:[%s3 + $0xb0] sm:$0xff]
  %v80 = vld [vmem:[%s3 + $0xb8] sm:$0xff]
  %v81 = vld [vmem:[%s3 + $0xc0] sm:$0xff]
  %v82 = vld [vmem:[%s3 + $0xc8] sm:$0xff]
  %v83 = vld [vmem:[%s3 + $0xd0] sm:$0xff]
  %v84 = vld [vmem:[%s3 + $0xd8] sm:$0xff]
  %v85 = vld [vmem:[%s3 + $0xe0] sm:$0xff]
  %v86 = vld [vmem:[%s3 + $0xe8] sm:$0xff]
  %v87 = vld [vmem:[%s3 + $0xf0] sm:$0xff]
  %v88 = vld [vmem:[%s3 + $0xf8] sm:$0xff]
  %v121 = vunpack.c.l.b16 %v57
  %v122 = vunpack.c.h.b16 %v57
  %v123 = vunpack.c.l.b16 %v58
  %v124 = vunpack.c.h.b16 %v58
  %v125 = vunpack.c.l.b16 %v59
  %v126 = vunpack.c.h.b16 %v59
  %v127 = vunpack.c.l.b16 %v60
  %v128 = vunpack.c.h.b16 %v60
  %v129 = vunpack.c.l.b16 %v61
  %v130 = vunpack.c.h.b16 %v61
  %v131 = vunpack.c.l.b16 %v62
  %v132 = vunpack.c.h.b16 %v62
  %v133 = vunpack.c.l.b16 %v63
  %v134 = vunpack.c.h.b16 %v63
  %v135 = vunpack.c.l.b16 %v64
  %v136 = vunpack.c.h.b16 %v64
  %v137 = vunpack.c.l.b16 %v65
  %v138 = vunpack.c.h.b16 %v65
  %v139 = vunpack.c.l.b16 %v66
  %v140 = vunpack.c.h.b16 %v66
  %v141 = vunpack.c.l.b16 %v67
  %v142 = vunpack.c.h.b16 %v67
  %v143 = vunpack.c.l.b16 %v68
  %v144 = vunpack.c.h.b16 %v68
  %v145 = vunpack.c.l.b16 %v69
  %v146 = vunpack.c.h.b16 %v69
  %v147 = vunpack.c.l.b16 %v70
  %v148 = vunpack.c.h.b16 %v70
  %v149 = vunpack.c.l.b16 %v71
  %v150 = vunpack.c.h.b16 %v71
  %v151 = vunpack.c.l.b16 %v72
  %v152 = vunpack.c.h.b16 %v72
  %v153 = vunpack.c.l.b16 %v73
  %v154 = vunpack.c.h.b16 %v73
  %v155 = vunpack.c.l.b16 %v74
  %v156 = vunpack.c.h.b16 %v74
  %v157 = vunpack.c.l.b16 %v75
  %v158 = vunpack.c.h.b16 %v75
  %v159 = vunpack.c.l.b16 %v76
  %v160 = vunpack.c.h.b16 %v76
  %v161 = vunpack.c.l.b16 %v77
  %v162 = vunpack.c.h.b16 %v77
  %v163 = vunpack.c.l.b16 %v78
  %v164 = vunpack.c.h.b16 %v78
  %v165 = vunpack.c.l.b16 %v79
  %v166 = vunpack.c.h.b16 %v79
  %v167 = vunpack.c.l.b16 %v80
  %v168 = vunpack.c.h.b16 %v80
  %v169 = vunpack.c.l.b16 %v81
  %v170 = vunpack.c.h.b16 %v81
  %v171 = vunpack.c.l.b16 %v82
  %v172 = vunpack.c.h.b16 %v82
  %v173 = vunpack.c.l.b16 %v83
  %v174 = vunpack.c.h.b16 %v83
  %v175 = vunpack.c.l.b16 %v84
  %v176 = vunpack.c.h.b16 %v84
  %v177 = vunpack.c.l.b16 %v85
  %v178 = vunpack.c.h.b16 %v85
  %v179 = vunpack.c.l.b16 %v86
  %v180 = vunpack.c.h.b16 %v86
  %v181 = vunpack.c.l.b16 %v87
  %v182 = vunpack.c.h.b16 %v87
  %v183 = vunpack.c.l.b16 %v88
  %v184 = vunpack.c.h.b16 %v88
  %v185 = vpack.c.b16 %v125, %v121
  %v186 = vpack.c.b16 %v126, %v122
  %v187 = vpack.c.b16 %v127, %v123
  %v188 = vpack.c.b16 %v128, %v124
  %v189 = vpack.c.b16 %v133, %v129
  %v190 = vpack.c.b16 %v134, %v130
  %v191 = vpack.c.b16 %v135, %v131
  %v192 = vpack.c.b16 %v136, %v132
  %v193 = vpack.c.b16 %v141, %v137
  %v194 = vpack.c.b16 %v142, %v138
  %v195 = vpack.c.b16 %v143, %v139
  %v196 = vpack.c.b16 %v144, %v140
  %v197 = vpack.c.b16 %v149, %v145
  %v198 = vpack.c.b16 %v150, %v146
  %v199 = vpack.c.b16 %v151, %v147
  %v200 = vpack.c.b16 %v152, %v148
  %v201 = vpack.c.b16 %v157, %v153
  %v202 = vpack.c.b16 %v158, %v154
  %v203 = vpack.c.b16 %v159, %v155
  %v204 = vpack.c.b16 %v160, %v156
  %v205 = vpack.c.b16 %v165, %v161
  %v206 = vpack.c.b16 %v166, %v162
  %v207 = vpack.c.b16 %v167, %v163
  %v208 = vpack.c.b16 %v168, %v164
  %v209 = vpack.c.b16 %v173, %v169
  %v210 = vpack.c.b16 %v174, %v170
  %v211 = vpack.c.b16 %v175, %v171
  %v212 = vpack.c.b16 %v176, %v172
  %v213 = vpack.c.b16 %v181, %v177
  %v214 = vpack.c.b16 %v182, %v178
  %v215 = vpack.c.b16 %v183, %v179
  %v216 = vpack.c.b16 %v184, %v180
  %249 = vmatprep.subr.bf16.mxu0 %v186
  %250 = vmatpush1.bf16.msra.mxu0 %v185
  %251 = vmatprep.subr.bf16.mxu0 %v190
  %252 = vmatpush1.bf16.msra.mxu0 %v189
  %253 = vmatprep.subr.bf16.mxu0 %v194
  %254 = vmatpush1.bf16.msra.mxu0 %v193
  %255 = vmatprep.subr.bf16.mxu0 %v198
  %256 = vmatpush1.bf16.msra.mxu0 %v197
  %257 = vmatprep.subr.bf16.mxu0 %v202
  %258 = vmatpush1.bf16.msra.mxu0 %v201
  %259 = vmatprep.subr.bf16.mxu0 %v206
  %260 = vmatpush1.bf16.msra.mxu0 %v205
  %261 = vmatprep.subr.bf16.mxu0 %v210
  %262 = vmatpush1.bf16.msra.mxu0 %v209
  %263 = vmatprep.subr.bf16.mxu0 %v214
  %264 = vmatpush1.bf16.msra.mxu0 %v213
  %265 = vmatprep.subr.bf16.mxu0 0
  %266 = vmatpush1.bf16.msra.mxu0 0
  %267 = vmatprep.subr.bf16.mxu0 0
  %268 = vmatpush1.bf16.msra.mxu0 0
  %269 = vmatprep.subr.bf16.mxu0 0
  %270 = vmatpush1.bf16.msra.mxu0 0
  %271 = vmatprep.subr.bf16.mxu0 0
  %272 = vmatpush1.bf16.msra.mxu0 0
  %273 = vmatprep.subr.bf16.mxu0 0
  %274 = vmatpush1.bf16.msra.mxu0 0
  %275 = vmatprep.subr.bf16.mxu0 0
  %276 = vmatpush1.bf16.msra.mxu0 0
  %277 = vmatprep.subr.bf16.mxu0 0
  %278 = vmatpush1.bf16.msra.mxu0 0
  %279 = vmatprep.subr.bf16.mxu0 0
  %280 = vmatpush1.bf16.msra.mxu0 0
  %281 = vmatprep.mubr.bf16.mxu0 0
  %282 = vmatmul.mubr.bf16.gmra.mrb[0].mxu0 %v55
  %v283 = vpop.f32.mrb[0].mxu0
  %v284 = vadd.f32 0.0, %v283
  %v285 = vpop.f32.mrb[0].mxu0
  %v286 = vadd.f32 0.0, %v285
  %v287 = vpop.f32.mrb[0].mxu0
  %v288 = vpop.f32.mrb[0].mxu0
  %289 = vdwg.mxu0
  %290 = vmatprep.subr.bf16.mxu0 %v188
  %291 = vmatpush1.bf16.msra.mxu0 %v187
  %292 = vmatprep.subr.bf16.mxu0 %v192
  %293 = vmatpush1.bf16.msra.mxu0 %v191
  %294 = vmatprep.subr.bf16.mxu0 %v196
  %295 = vmatpush1.bf16.msra.mxu0 %v195
  %296 = vmatprep.subr.bf16.mxu0 %v200
  %297 = vmatpush1.bf16.msra.mxu0 %v199
  %298 = vmatprep.subr.bf16.mxu0 %v204
  %299 = vmatpush1.bf16.msra.mxu0 %v203
  %300 = vmatprep.subr.bf16.mxu0 %v208
  %301 = vmatpush1.bf16.msra.mxu0 %v207
  %302 = vmatprep.subr.bf16.mxu0 %v212
  %303 = vmatpush1.bf16.msra.mxu0 %v211
  %304 = vmatprep.subr.bf16.mxu0 %v216
  %305 = vmatpush1.bf16.msra.mxu0 %v215
  %306 = vmatprep.subr.bf16.mxu0 0
  %307 = vmatpush1.bf16.msra.mxu0 0
  %308 = vmatprep.subr.bf16.mxu0 0
  %309 = vmatpush1.bf16.msra.mxu0 0
  %310 = vmatprep.subr.bf16.mxu0 0
  %311 = vmatpush1.bf16.msra.mxu0 0
  %312 = vmatprep.subr.bf16.mxu0 0
  %313 = vmatpush1.bf16.msra.mxu0 0
  %314 = vmatprep.subr.bf16.mxu0 0
  %315 = vmatpush1.bf16.msra.mxu0 0
  %316 = vmatprep.subr.bf16.mxu0 0
  %317 = vmatpush1.bf16.msra.mxu0 0
  %318 = vmatprep.subr.bf16.mxu0 0
  %319 = vmatpush1.bf16.msra.mxu0 0
  %320 = vmatprep.subr.bf16.mxu0 0
  %321 = vmatpush1.bf16.msra.mxu0 0
  %322 = vmatprep.mubr.bf16.mxu0 0
  %323 = vmatmul.mubr.bf16.gmra.mrb[0].mxu0 %v55
  %v324 = vpop.f32.mrb[0].mxu0
  %v325 = vadd.f32 0.0, %v324
  %v326 = vpop.f32.mrb[0].mxu0
  %v327 = vadd.f32 0.0, %v326
  %v328 = vpop.f32.mrb[0].mxu0
  %v329 = vpop.f32.mrb[0].mxu0
  %330 = vdwg.mxu0
  %v335 = vcombine.low %v284, %v286
  %v336 = vcombine.low %v325, %v327
  %v338 = vunpack.c.l.s4 1983009808
  %v339 = vunpack.c.0.s8 %v338
  %v340 = vlaneseq
  %v341 = vshrl.u32 %v340, 7
  %v342 = vsub.s32 %v339, %v341
  %v343 = vrot.slane %v335, %v342
  %v345 = vunpack.c.l.s4 1983009808
  %v346 = vunpack.c.0.s8 %v345
  %v347 = vlaneseq
  %v348 = vshrl.u32 %v347, 7
  %v349 = vsub.s32 %v346, %v348
  %v350 = vrot.slane %v336, %v349
  %v351 = vcombine.low %v343, %v350
  %v353 = vadd.f32 %v56, %v351
  %354 = vst [vmem:[#allocation2] sm:$0xff] %v353
  // Predicated region
  $region22: #{clip_img_encoder_forward.26} parent=0 // pred_check
    %p355 = pneg %p18
  $region23: #{clip_img_encoder_forward.26} parent=0 // pred_check_branch
    %357 = sbr.rel (%p355) target = $region25
  $region24: #{clip_img_encoder_forward.26} parent=0 // pred_region
    %v358 = vld [vmem:[#allocation2] sm:$0xff]
    %359 = vst [vmem:[%s4] sm:$0xff] %v358
  $region25: #{clip_img_encoder_forward.26} parent=0 // pred_fallthru
    _
  // Predicated region
  $region26: #{clip_img_encoder_forward.26} parent=0 // pred_check
    _
  $region27: #{clip_img_encoder_forward.26} parent=0 // pred_check_branch
    %361 = sbr.rel (0) target = $region29
  $region28: #{clip_img_encoder_forward.26} parent=0 // pred_region
    _
  $region29: #{clip_img_encoder_forward.26} parent=0 // pred_fallthru
    _
  // Predicated region
  $region30: #{clip_img_encoder_forward.26} parent=0 // pred_check
    _
  $region31: #{clip_img_encoder_forward.26} parent=0 // pred_check_branch
    %363 = sbr.rel (0) target = $region33
  $region32: #{clip_img_encoder_forward.26} parent=0 // pred_region
    _
  $region33: #{clip_img_encoder_forward.26} parent=0 // pred_fallthru
    _

// kernel: clip_img_encoder_forward.27
$region0: #{clip_img_encoder_forward.27}
  #allocation0 [shape = 'u32[]', space=smem, size = 0x4, offset = 0x4, fixed_abs, tag = 'smem constant byte address 0x4 - core index']
  #allocation1 [shape = 'u32[144,128]{1,0:T(1,128)}', space=vmem, size = 0x12000, scoped, tag = 'internal scratch']
  #allocation2 [shape = 'f32[2,128]{1,0:T(2,128)}', space=vmem, size = 0x400, scoped, tag = 'scratch operand']
  %s0 = inlined_call_operand.vmem [shape: bf16[2,512], index: 0, kind: input, shape index: {}]
  %s1 = inlined_call_operand.vmem [shape: bf16[512,128], index: 1, kind: input, shape index: {}]
  %s2 = inlined_call_operand.vmem [shape: f32[1,128], index: 2, kind: input, shape index: {}]
  %s3 = inlined_call_operand.hbm [shape: f32[2,128], index: 3, kind: output, shape index: {}]
  %s4 = sld [smem:[#allocation0]]
  $region30: #{clip_img_encoder_forward.27} parent=0
    _
  %s6 = ssub.s32 1, %s4
  %s7 = scalar_select 0, %s6, %s4
  $region1: #{clip_img_encoder_forward.27} parent=0
    #allocation3 [shape = 'u8[1024]{0}', space=vmem, size = 0x400, scoped, tag = 'output window, operand 0, single buffered']
    #allocation4 [shape = 's32[1]{0}', space=sflag, size = 0x4, scoped, tag = 'scoped memory for clip_img_encoder_forward.27']
    %8 = vsyncpa [#allocation4], 0
    // Predicated region
    $region2: #{clip_img_encoder_forward.27} parent=1 // pred_check
      _
    $region3: #{clip_img_encoder_forward.27} parent=1 // pred_check_branch
      %10 = sbr.rel (0) target = $region5
    $region4: #{clip_img_encoder_forward.27} parent=1 // pred_region
      _
    $region5: #{clip_img_encoder_forward.27} parent=1 // pred_fallthru
      _
    // Predicated region
    $region6: #{clip_img_encoder_forward.27} parent=1 // pred_check
      _
    $region7: #{clip_img_encoder_forward.27} parent=1 // pred_check_branch
      %12 = sbr.rel (0) target = $region9
    $region8: #{clip_img_encoder_forward.27} parent=1 // pred_region
      _
    $region9: #{clip_img_encoder_forward.27} parent=1 // pred_fallthru
      _
    // Predicated region
    $region10: #{clip_img_encoder_forward.27} parent=1 // pred_check
      _
    $region11: #{clip_img_encoder_forward.27} parent=1 // pred_check_branch
      %14 = sbr.rel (0) target = $region13
    $region12: #{clip_img_encoder_forward.27} parent=1 // pred_region
      _
    $region13: #{clip_img_encoder_forward.27} parent=1 // pred_fallthru
      _
    %p16 = scmp.eq.s32.totalorder 0, 0
    // Predicated region
    $region14: #{clip_img_encoder_forward.27} parent=1 // pred_check
      %p17 = pneg %p16
    $region15: #{clip_img_encoder_forward.27} parent=1 // pred_check_branch
      %19 = sbr.rel (%p17) target = $region17
    $region16: #{clip_img_encoder_forward.27} parent=1 // pred_region
      %20 = vst [vmem:[#allocation2] sm:$0x3] 0.0
    $region17: #{clip_img_encoder_forward.27} parent=1 // pred_fallthru
      _
    %v21 = vld [vmem:[%s0] sm:$0xf]
    %v22 = vld [vmem:[#allocation2] sm:$0x3]
    %v23 = vld [vmem:[%s1] sm:$0xf]
    %v24 = vld [vmem:[%s1 + $0x4] sm:$0xf]
    %v25 = vld [vmem:[%s1 + $0x8] sm:$0xf]
    %v26 = vld [vmem:[%s1 + $0xc] sm:$0xf]
    %v27 = vld [vmem:[%s1 + $0x10] sm:$0xf]
    %v28 = vld [vmem:[%s1 + $0x14] sm:$0xf]
    %v29 = vld [vmem:[%s1 + $0x18] sm:$0xf]
    %v30 = vld [vmem:[%s1 + $0x1c] sm:$0xf]
    %v31 = vld [vmem:[%s1 + $0x20] sm:$0xf]
    %v32 = vld [vmem:[%s1 + $0x24] sm:$0xf]
    %v33 = vld [vmem:[%s1 + $0x28] sm:$0xf]
    %v34 = vld [vmem:[%s1 + $0x2c] sm:$0xf]
    %v35 = vld [vmem:[%s1 + $0x30] sm:$0xf]
    %v36 = vld [vmem:[%s1 + $0x34] sm:$0xf]
    %v37 = vld [vmem:[%s1 + $0x38] sm:$0xf]
    %v38 = vld [vmem:[%s1 + $0x3c] sm:$0xf]
    %v39 = vld [vmem:[%s1 + $0x40] sm:$0xf]
    %v40 = vld [vmem:[%s1 + $0x44] sm:$0xf]
    %v41 = vld [vmem:[%s1 + $0x48] sm:$0xf]
    %v42 = vld [vmem:[%s1 + $0x4c] sm:$0xf]
    %v43 = vld [vmem:[%s1 + $0x50] sm:$0xf]
    %v44 = vld [vmem:[%s1 + $0x54] sm:$0xf]
    %v45 = vld [vmem:[%s1 + $0x58] sm:$0xf]
    %v46 = vld [vmem:[%s1 + $0x5c] sm:$0xf]
    %v47 = vld [vmem:[%s1 + $0x60] sm:$0xf]
    %v48 = vld [vmem:[%s1 + $0x64] sm:$0xf]
    %v49 = vld [vmem:[%s1 + $0x68] sm:$0xf]
    %v50 = vld [vmem:[%s1 + $0x6c] sm:$0xf]
    %v51 = vld [vmem:[%s1 + $0x70] sm:$0xf]
    %v52 = vld [vmem:[%s1 + $0x74] sm:$0xf]
    %v53 = vld [vmem:[%s1 + $0x78] sm:$0xf]
    %v54 = vld [vmem:[%s1 + $0x7c] sm:$0xf]
    %v55 = vld [vmem:[%s1 + $0x80] sm:$0xf]
    %v56 = vld [vmem:[%s1 + $0x84] sm:$0xf]
    %v57 = vld [vmem:[%s1 + $0x88] sm:$0xf]
    %v58 = vld [vmem:[%s1 + $0x8c] sm:$0xf]
    %v59 = vld [vmem:[%s1 + $0x90] sm:$0xf]
    %v60 = vld [vmem:[%s1 + $0x94] sm:$0xf]
    %v61 = vld [vmem:[%s1 + $0x98] sm:$0xf]
    %v62 = vld [vmem:[%s1 + $0x9c] sm:$0xf]
    %v63 = vld [vmem:[%s1 + $0xa0] sm:$0xf]
    %v64 = vld [vmem:[%s1 + $0xa4] sm:$0xf]
    %v65 = vld [vmem:[%s1 + $0xa8] sm:$0xf]
    %v66 = vld [vmem:[%s1 + $0xac] sm:$0xf]
    %v67 = vld [vmem:[%s1 + $0xb0] sm:$0xf]
    %v68 = vld [vmem:[%s1 + $0xb4] sm:$0xf]
    %v69 = vld [vmem:[%s1 + $0xb8] sm:$0xf]
    %v70 = vld [vmem:[%s1 + $0xbc] sm:$0xf]
    %v71 = vld [vmem:[%s1 + $0xc0] sm:$0xf]
    %v72 = vld [vmem:[%s1 + $0xc4] sm:$0xf]
    %v73 = vld [vmem:[%s1 + $0xc8] sm:$0xf]
    %v74 = vld [vmem:[%s1 + $0xcc] sm:$0xf]
    %v75 = vld [vmem:[%s1 + $0xd0] sm:$0xf]
    %v76 = vld [vmem:[%s1 + $0xd4] sm:$0xf]
    %v77 = vld [vmem:[%s1 + $0xd8] sm:$0xf]
    %v78 = vld [vmem:[%s1 + $0xdc] sm:$0xf]
    %v79 = vld [vmem:[%s1 + $0xe0] sm:$0xf]
    %v80 = vld [vmem:[%s1 + $0xe4] sm:$0xf]
    %v81 = vld [vmem:[%s1 + $0xe8] sm:$0xf]
    %v82 = vld [vmem:[%s1 + $0xec] sm:$0xf]
    %v83 = vld [vmem:[%s1 + $0xf0] sm:$0xf]
    %v84 = vld [vmem:[%s1 + $0xf4] sm:$0xf]
    %v85 = vld [vmem:[%s1 + $0xf8] sm:$0xf]
    %v86 = vld [vmem:[%s1 + $0xfc] sm:$0xf]
    %v89 = vunpack.c.l.s4 1966171168
    %v90 = vunpack.c.0.s8 %v89
    %v91 = vlaneseq
    %v92 = vshrl.u32 %v91, 7
    %v93 = vsub.s32 %v90, %v92
    %v94 = vrot.slane %v21, %v93
    %v95 = vcombine.high %v94, %v94
    %v97 = vunpack.c.l.s4 1966171168
    %v98 = vunpack.c.0.s8 %v97
    %v99 = vlaneseq
    %v100 = vshrl.u32 %v99, 7
    %v101 = vsub.s32 %v98, %v100
    %v102 = vrot.slane %v94, %v101
    %v104 = vunpack.c.l.s4 1966171168
    %v105 = vunpack.c.0.s8 %v104
    %v106 = vlaneseq
    %v107 = vshrl.u32 %v106, 7
    %v108 = vsub.s32 %v105, %v107
    %v109 = vrot.slane %v95, %v108
    %v110 = vcombine.high %v102, %v102
    %v111 = vcombine.high %v109, %v109
    %v180 = vunpack.c.l.b16 %v23
    %v181 = vunpack.c.l.b16 %v24
    %v182 = vunpack.c.l.b16 %v25
    %v183 = vunpack.c.l.b16 %v26
    %v184 = vunpack.c.l.b16 %v27
    %v185 = vunpack.c.l.b16 %v28
    %v186 = vunpack.c.l.b16 %v29
    %v187 = vunpack.c.l.b16 %v30
    %v188 = vunpack.c.l.b16 %v31
    %v189 = vunpack.c.l.b16 %v32
    %v190 = vunpack.c.l.b16 %v33
    %v191 = vunpack.c.l.b16 %v34
    %v192 = vunpack.c.l.b16 %v35
    %v193 = vunpack.c.l.b16 %v36
    %v194 = vunpack.c.l.b16 %v37
    %v195 = vunpack.c.l.b16 %v38
    %v196 = vunpack.c.l.b16 %v39
    %v197 = vunpack.c.l.b16 %v40
    %v198 = vunpack.c.l.b16 %v41
    %v199 = vunpack.c.l.b16 %v42
    %v200 = vunpack.c.l.b16 %v43
    %v201 = vunpack.c.l.b16 %v44
    %v202 = vunpack.c.l.b16 %v45
    %v203 = vunpack.c.l.b16 %v46
    %v204 = vunpack.c.l.b16 %v47
    %v205 = vunpack.c.l.b16 %v48
    %v206 = vunpack.c.l.b16 %v49
    %v207 = vunpack.c.l.b16 %v50
    %v208 = vunpack.c.l.b16 %v51
    %v209 = vunpack.c.l.b16 %v52
    %v210 = vunpack.c.l.b16 %v53
    %v211 = vunpack.c.l.b16 %v54
    %v212 = vunpack.c.l.b16 %v55
    %v213 = vunpack.c.l.b16 %v56
    %v214 = vunpack.c.l.b16 %v57
    %v215 = vunpack.c.l.b16 %v58
    %v216 = vunpack.c.l.b16 %v59
    %v217 = vunpack.c.l.b16 %v60
    %v218 = vunpack.c.l.b16 %v61
    %v219 = vunpack.c.l.b16 %v62
    %v220 = vunpack.c.l.b16 %v63
    %v221 = vunpack.c.l.b16 %v64
    %v222 = vunpack.c.l.b16 %v65
    %v223 = vunpack.c.l.b16 %v66
    %v224 = vunpack.c.l.b16 %v67
    %v225 = vunpack.c.l.b16 %v68
    %v226 = vunpack.c.l.b16 %v69
    %v227 = vunpack.c.l.b16 %v70
    %v228 = vunpack.c.l.b16 %v71
    %v229 = vunpack.c.l.b16 %v72
    %v230 = vunpack.c.l.b16 %v73
    %v231 = vunpack.c.l.b16 %v74
    %v232 = vunpack.c.l.b16 %v75
    %v233 = vunpack.c.l.b16 %v76
    %v234 = vunpack.c.l.b16 %v77
    %v235 = vunpack.c.l.b16 %v78
    %v236 = vunpack.c.l.b16 %v79
    %v237 = vunpack.c.l.b16 %v80
    %v238 = vunpack.c.l.b16 %v81
    %v239 = vunpack.c.l.b16 %v82
    %v240 = vunpack.c.l.b16 %v83
    %v241 = vunpack.c.l.b16 %v84
    %v242 = vunpack.c.l.b16 %v85
    %v243 = vunpack.c.l.b16 %v86
    %v244 = vpack.c.b16 %v181, %v180
    %v245 = vpack.c.b16 %v183, %v182
    %v246 = vpack.c.b16 %v185, %v184
    %v247 = vpack.c.b16 %v187, %v186
    %v248 = vpack.c.b16 %v189, %v188
    %v249 = vpack.c.b16 %v191, %v190
    %v250 = vpack.c.b16 %v193, %v192
    %v251 = vpack.c.b16 %v195, %v194
    %v252 = vpack.c.b16 %v197, %v196
    %v253 = vpack.c.b16 %v199, %v198
    %v254 = vpack.c.b16 %v201, %v200
    %v255 = vpack.c.b16 %v203, %v202
    %v256 = vpack.c.b16 %v205, %v204
    %v257 = vpack.c.b16 %v207, %v206
    %v258 = vpack.c.b16 %v209, %v208
    %v259 = vpack.c.b16 %v211, %v210
    %v260 = vpack.c.b16 %v213, %v212
    %v261 = vpack.c.b16 %v215, %v214
    %v262 = vpack.c.b16 %v217, %v216
    %v263 = vpack.c.b16 %v219, %v218
    %v264 = vpack.c.b16 %v221, %v220
    %v265 = vpack.c.b16 %v223, %v222
    %v266 = vpack.c.b16 %v225, %v224
    %v267 = vpack.c.b16 %v227, %v226
    %v268 = vpack.c.b16 %v229, %v228
    %v269 = vpack.c.b16 %v231, %v230
    %v270 = vpack.c.b16 %v233, %v232
    %v271 = vpack.c.b16 %v235, %v234
    %v272 = vpack.c.b16 %v237, %v236
    %v273 = vpack.c.b16 %v239, %v238
    %v274 = vpack.c.b16 %v241, %v240
    %v275 = vpack.c.b16 %v243, %v242
    %308 = vmatprep.subr.bf16.mxu0 0
    %309 = vmatpush1.bf16.msra.mxu0 %v244
    %310 = vmatprep.subr.bf16.mxu0 0
    %311 = vmatpush1.bf16.msra.mxu0 %v245
    %312 = vmatprep.subr.bf16.mxu0 0
    %313 = vmatpush1.bf16.msra.mxu0 %v246
    %314 = vmatprep.subr.bf16.mxu0 0
    %315 = vmatpush1.bf16.msra.mxu0 %v247
    %316 = vmatprep.subr.bf16.mxu0 0
    %317 = vmatpush1.bf16.msra.mxu0 %v248
    %318 = vmatprep.subr.bf16.mxu0 0
    %319 = vmatpush1.bf16.msra.mxu0 %v249
    %320 = vmatprep.subr.bf16.mxu0 0
    %321 = vmatpush1.bf16.msra.mxu0 %v250
    %322 = vmatprep.subr.bf16.mxu0 0
    %323 = vmatpush1.bf16.msra.mxu0 %v251
    %324 = vmatprep.subr.bf16.mxu0 0
    %325 = vmatpush1.bf16.msra.mxu0 %v252
    %326 = vmatprep.subr.bf16.mxu0 0
    %327 = vmatpush1.bf16.msra.mxu0 %v253
    %328 = vmatprep.subr.bf16.mxu0 0
    %329 = vmatpush1.bf16.msra.mxu0 %v254
    %330 = vmatprep.subr.bf16.mxu0 0
    %331 = vmatpush1.bf16.msra.mxu0 %v255
    %332 = vmatprep.subr.bf16.mxu0 0
    %333 = vmatpush1.bf16.msra.mxu0 %v256
    %334 = vmatprep.subr.bf16.mxu0 0
    %335 = vmatpush1.bf16.msra.mxu0 %v257
    %336 = vmatprep.subr.bf16.mxu0 0
    %337 = vmatpush1.bf16.msra.mxu0 %v258
    %338 = vmatprep.subr.bf16.mxu0 0
    %339 = vmatpush1.bf16.msra.mxu0 %v259
    %340 = vmatprep.mubr.bf16.mxu0 %v109
    %341 = vmatmul.mubr.bf16.gmra.mrb[0].mxu0 %v102
    %v342 = vpop.f32.mrb[0].mxu0
    %v343 = vadd.f32 0.0, %v342
    %v344 = vpop.f32.mrb[0].mxu0
    %v345 = vpop.f32.mrb[0].mxu0
    %v346 = vpop.f32.mrb[0].mxu0
    %347 = vdwg.mxu0
    %348 = vmatprep.subr.bf16.mxu0 0
    %349 = vmatpush1.bf16.msra.mxu0 %v260
    %350 = vmatprep.subr.bf16.mxu0 0
    %351 = vmatpush1.bf16.msra.mxu0 %v261
    %352 = vmatprep.subr.bf16.mxu0 0
    %353 = vmatpush1.bf16.msra.mxu0 %v262
    %354 = vmatprep.subr.bf16.mxu0 0
    %355 = vmatpush1.bf16.msra.mxu0 %v263
    %356 = vmatprep.subr.bf16.mxu0 0
    %357 = vmatpush1.bf16.msra.mxu0 %v264
    %358 = vmatprep.subr.bf16.mxu0 0
    %359 = vmatpush1.bf16.msra.mxu0 %v265
    %360 = vmatprep.subr.bf16.mxu0 0
    %361 = vmatpush1.bf16.msra.mxu0 %v266
    %362 = vmatprep.subr.bf16.mxu0 0
    %363 = vmatpush1.bf16.msra.mxu0 %v267
    %364 = vmatprep.subr.bf16.mxu0 0
    %365 = vmatpush1.bf16.msra.mxu0 %v268
    %366 = vmatprep.subr.bf16.mxu0 0
    %367 = vmatpush1.bf16.msra.mxu0 %v269
    %368 = vmatprep.subr.bf16.mxu0 0
    %369 = vmatpush1.bf16.msra.mxu0 %v270
    %370 = vmatprep.subr.bf16.mxu0 0
    %371 = vmatpush1.bf16.msra.mxu0 %v271
    %372 = vmatprep.subr.bf16.mxu0 0
    %373 = vmatpush1.bf16.msra.mxu0 %v272
    %374 = vmatprep.subr.bf16.mxu0 0
    %375 = vmatpush1.bf16.msra.mxu0 %v273
    %376 = vmatprep.subr.bf16.mxu0 0
    %377 = vmatpush1.bf16.msra.mxu0 %v274
    %378 = vmatprep.subr.bf16.mxu0 0
    %379 = vmatpush1.bf16.msra.mxu0 %v275
    %380 = vmatprep.mubr.bf16.mxu0 %v111
    %381 = vmatmul.mubr.bf16.gmra.mrb[0].mxu0 %v110
    %v382 = vpop.f32.mrb[0].mxu0
    %v383 = vadd.f32 %v343, %v382
    %v384 = vpop.f32.mrb[0].mxu0
    %v385 = vpop.f32.mrb[0].mxu0
    %v386 = vpop.f32.mrb[0].mxu0
    %387 = vdwg.mxu0
    %v388 = vadd.f32 %v22, %v383
    %389 = vst [vmem:[#allocation2] sm:$0x3] %v388
    // Predicated region
    $region18: #{clip_img_encoder_forward.27} parent=1 // pred_check
      %p390 = pneg %p16
    $region19: #{clip_img_encoder_forward.27} parent=1 // pred_check_branch
      %392 = sbr.rel (%p390) target = $region21
    $region20: #{clip_img_encoder_forward.27} parent=1 // pred_region
      %v393 = vld [vmem:[#allocation2] sm:$0x3]
      %v394 = vld [vmem:[%s2] sm:$0x1]
      %v396 = vlaneseq
      %v397 = vshrl.u32 %v396, 7
      %v398 = vsub.s32 0, %v397
      %v399 = vrot.slane %v394, %v398
      %v401 = vadd.f32 %v393, %v399
      %v402 = vmax.f32 %v401, 0.0
      %403 = vst [vmem:[#allocation3] sm:$0x3] %v402
    $region21: #{clip_img_encoder_forward.27} parent=1 // pred_fallthru
      _
    // Predicated region
    $region22: #{clip_img_encoder_forward.27} parent=1 // pred_check
      _
    $region23: #{clip_img_encoder_forward.27} parent=1 // pred_check_branch
      %405 = sbr.rel (0) target = $region25
    $region24: #{clip_img_encoder_forward.27} parent=1 // pred_region
      %s407 = ssub.s32 32, 32
      %408 = vsyncadd [#allocation4], %s407
      %s410 = sshll.u32 [#allocation3], 4
      %s411 = int_to_ptr.vmem [resolvable:$true] %s410
      %413 = dma.vmem_to_hbm [thread:$0]  %s411, 32, %s3, [#allocation4]
    $region25: #{clip_img_encoder_forward.27} parent=1 // pred_fallthru
      _
    // Predicated region
    $region26: #{clip_img_encoder_forward.27} parent=1 // pred_check
      _
    $region27: #{clip_img_encoder_forward.27} parent=1 // pred_check_branch
      %415 = sbr.rel (0) target = $region29
    $region28: #{clip_img_encoder_forward.27} parent=1 // pred_region
      %416 = dma.done [#allocation4], 32
    $region29: #{clip_img_encoder_forward.27} parent=1 // pred_fallthru
      _
    %417 = vsyncpa [#allocation4], 1

</llo_original>
